<compile_context>
chip_gen: v6e
topology: v6e:2x2x1
jax: 0.10.0
libtpu: 0.0.40
codegen_flags: <defaults>
</compile_context>

<pallas_src>
import jax
import jax.numpy as jnp
from jax.experimental import pallas as pl
from jax.experimental.pallas import tpu as pltpu

# Spherical-harmonics constants (deg <= 3), identical to eval_sh in TeTriRF/svox.
C0 = 0.28209479177387814
C1 = 0.4886025119029199
C2 = (1.0925484305920792, -1.0925484305920792, 0.31539156525252005,
      -1.0925484305920792, 0.5462742152960396)
C3 = (-0.5900435899266435, 2.890611442640554, -0.4570457994644658,
      0.3731763325901154, -0.4570457994644658, 1.445305721320277,
      -0.5900435899266435)


def _sh_basis_terms(x, y, z, deg):
    """(deg+1)**2 SH basis terms; purely elementwise, so layout-agnostic."""
    terms = [jnp.full_like(x, C0)]
    if deg > 0:
        terms += [-C1 * y, C1 * z, -C1 * x]
        if deg > 1:
            xx, yy, zz = x * x, y * y, z * z
            xy, yz, xz = x * y, y * z, x * z
            terms += [C2[0] * xy,
                      C2[1] * yz,
                      C2[2] * (2.0 * zz - xx - yy),
                      C2[3] * xz,
                      C2[4] * (xx - yy)]
            if deg > 2:
                terms += [C3[0] * y * (3.0 * xx - yy),
                          C3[1] * xy * z,
                          C3[2] * y * (4.0 * zz - xx - yy),
                          C3[3] * z * (2.0 * zz - 3.0 * xx - 3.0 * yy),
                          C3[4] * x * (4.0 * zz - xx - yy),
                          C3[5] * z * (xx - yy),
                          C3[6] * x * (xx - 3.0 * yy)]
    return terms


def _make_kernel(n_layers, deg, out_pad, mm_dtype):
    n_basis = (deg + 1) ** 2
    n_coef = 3 * n_basis

    def kernel(x_ref, dirs_ref, *refs):
        param_refs = refs[:2 * n_layers]
        out_ref = refs[2 * n_layers]            # (3, tm) transposed output tile

        # ---- MLP hot path: MXU matmuls (mm_dtype operands, f32 accumulation).
        #      Activations / ReLU stay f32; only matmul inputs are cast. ----
        h = x_ref[...]
        for l in range(n_layers):
            w = param_refs[2 * l][...]
            b = param_refs[2 * l + 1][...]
            h = jnp.dot(h.astype(mm_dtype), w,
                        preferred_element_type=jnp.float32) + b
            if l < n_layers - 1:
                h = jnp.maximum(h, 0.0)
        coeffs = h                               # [tm, out_pad] f32 (padded cols are 0)

        # ---- lane-dense SH basis from the transposed dirs stream ----
        d = dirs_ref[...]                        # [3, tm] f32 (full-precision dirs)
        dx, dy, dz = d[0:1, :], d[1:2, :], d[2:3, :]      # [1, tm], lane-dense
        basis_t = jnp.concatenate(
            _sh_basis_terms(dx, dy, dz, deg), axis=0)     # [n_basis, tm]
        parts = [basis_t, basis_t, basis_t]               # channel-major replication
        if out_pad > n_coef:
            parts.append(jnp.zeros((out_pad - n_coef, basis_t.shape[1]),
                                   jnp.float32))
        rep_t = jnp.concatenate(parts, axis=0)            # [out_pad, tm]
        tiled = jnp.transpose(rep_t)                      # [tm, out_pad] aligned f32 transpose

        weighted = coeffs * tiled                          # one full-width VPU multiply

        # 0/1 channel selector built from iotas (compile-time pattern, no input DMA).
        ch = jax.lax.broadcasted_iota(jnp.int32, (3, out_pad), 0)
        co = jax.lax.broadcasted_iota(jnp.int32, (3, out_pad), 1)
        sel_t = jnp.where((co >= ch * n_basis) & (co < (ch + 1) * n_basis),
                          1.0, 0.0).astype(mm_dtype)       # [3, out_pad], exact 0/1

        # res_t[c, n] = sum_k coeffs[n, c*n_basis + k] * basis[n, k]
        res_t = jax.lax.dot_general(
            sel_t, weighted.astype(mm_dtype),
            (((1,), (1,)), ((), ())),
            preferred_element_type=jnp.float32)             # [3, tm]

        out_ref[...] = jax.nn.sigmoid(res_t)                # lane-dense sigmoid + store

    return kernel


def prepare_params(params, lane=128, dtype=jnp.float32):
    """Cast weights to the matmul dtype and zero-pad the last layer's output
    dim to a multiple of `lane` so coefficient vregs / MXU results are lane-dense."""
    n_layers = len(params)
    prepared = []
    for l, (w, b) in enumerate(params):
        w = jnp.asarray(w, jnp.float32)
        b = jnp.asarray(b, jnp.float32)
        if l == n_layers - 1:
            out_dim = w.shape[1]
            out_pad = -(-out_dim // lane) * lane
            if out_pad != out_dim:
                w = jnp.pad(w, ((0, 0), (0, out_pad - out_dim)))
                b = jnp.pad(b, ((0, 0), (0, out_pad - out_dim)))
        prepared.append((w.astype(dtype), b))   # bias stays f32 (f32 accumulation)
    return prepared


def rgb_sh_net_forward(x, dirs, params, deg=3, tm=1024, use_bf16=True):
    """Pallas wrapper. x: (N, dim0) f32, dirs: (N, 3) f32 -> (N, 3) f32."""
    N, dim0 = x.shape
    n_layers = len(params)
    mm_dtype = jnp.bfloat16 if use_bf16 else jnp.float32

    prepared = prepare_params(params, lane=128, dtype=mm_dtype)
    out_pad = prepared[-1][0].shape[1]

    # Pad rows up to a tile multiple (padded rows sliced off below).
    n_rows = -(-N // tm) * tm
    x_in = x.astype(mm_dtype)
    dirs_f32 = dirs.astype(jnp.float32)          # dirs stay f32 for SH accuracy
    if n_rows != N:
        x_in = jnp.pad(x_in, ((0, n_rows - N), (0, 0)))
        dirs_f32 = jnp.pad(dirs_f32, ((0, n_rows - N), (0, 0)))
    dirs_t = jnp.transpose(dirs_f32)             # (3, n_rows): lane-dense dirs stream

    in_specs = [
        pl.BlockSpec((tm, dim0), lambda i: (i, 0)),
        pl.BlockSpec((3, tm), lambda i: (0, i)),
    ]
    flat_params = []
    for (w, b) in prepared:
        in_specs.append(pl.BlockSpec(w.shape, lambda i: (0, 0)))
        in_specs.append(pl.BlockSpec(b.shape, lambda i: (0, 0)))
        flat_params += [w, b]

    kernel = _make_kernel(n_layers, deg, out_pad, mm_dtype)
    out_t = pl.pallas_call(
        kernel,
        out_shape=jax.ShapeDtypeStruct((3, n_rows), jnp.float32),
        grid_spec=pltpu.PrefetchScalarGridSpec(
            num_scalar_prefetch=0,
            grid=(n_rows // tm,),
            in_specs=in_specs,
            out_specs=pl.BlockSpec((3, tm), lambda i: (0, i)),
        ),
        compiler_params=pltpu.CompilerParams(
            dimension_semantics=("parallel",)),
    )(x_in, dirs_t, *flat_params)
    return jnp.transpose(out_t[:, :N])           # back to (N, 3)


def init_params(key, dim0, width, depth, out_dim):
    """Deterministic init matching the module's layer shapes; last bias = 0."""
    dims = [dim0] + [width] * (depth - 1) + [out_dim]
    params = []
    for l in range(depth):
        key, kw, kb = jax.random.split(key, 3)
        w = jax.random.normal(kw, (dims[l], dims[l + 1]), jnp.float32) / jnp.sqrt(dims[l])
        if l == depth - 1:
            b = jnp.zeros((1, dims[l + 1]), jnp.float32)  # nn.init.constant_(bias, 0)
        else:
            b = 0.01 * jax.random.normal(kb, (1, dims[l + 1]), jnp.float32)
        params.append((w, b))
    return params


def reference_forward(x, dirs, params, deg=3):
    """Pure-JAX reference mirroring RGB_SH_Net.forward (f32 throughout)."""
    h = x
    for l, (w, b) in enumerate(params):
        h = jnp.dot(h, w, precision=jax.lax.Precision.HIGHEST) + b
        if l < len(params) - 1:
            h = jnp.maximum(h, 0.0)
    n_basis = (deg + 1) ** 2
    coeffs = h.reshape(x.shape[0], 3, n_basis)
    dx, dy, dz = dirs[:, 0:1], dirs[:, 1:2], dirs[:, 2:3]
    basis = jnp.concatenate(_sh_basis_terms(dx, dy, dz, deg), axis=1)  # (N, n_basis)
    res = jnp.sum(coeffs * basis[:, None, :], axis=-1)                 # (N, 3)
    return jax.nn.sigmoid(res)


if __name__ == "__main__":
    # Small shapes consistent with the module: dim0-dim feature vector per
    # sample, rgbnet_width hidden units, rgbnet_depth linear layers, deg=3 ->
    # 48 SH coefficients.  N is not a tile multiple (exercises row padding);
    # the padded grid has exactly 2 steps so v7x's two TensorCores balance.
    N, DIM0, WIDTH, DEPTH, DEG = 2000, 16, 32, 3, 3
    OUT_DIM = 3 * (DEG + 1) ** 2

    key = jax.random.PRNGKey(0)
    kx, kd, kp = jax.random.split(key, 3)
    x = jax.random.normal(kx, (N, DIM0), jnp.float32)
    dirs = jax.random.normal(kd, (N, 3), jnp.float32)
    dirs = dirs / jnp.linalg.norm(dirs, axis=-1, keepdims=True)
    params = init_params(kp, DIM0, WIDTH, DEPTH, OUT_DIM)

    ref = reference_forward(x, dirs, params, deg=DEG)

    # Default bf16-matmul path (MXU-native on v5e/v6e/v7x, f32 accumulation).
    out_bf16 = jax.block_until_ready(
        rgb_sh_net_forward(x, dirs, params, deg=DEG, tm=1024, use_bf16=True))
    assert out_bf16.shape == (N, 3) and out_bf16.dtype == jnp.float32
    err_bf16 = float(jnp.max(jnp.abs(out_bf16 - ref)))
    assert err_bf16 < 5e-2, err_bf16

    # f32 path (exact module semantics).
    out_f32 = jax.block_until_ready(
        rgb_sh_net_forward(x, dirs, params, deg=DEG, tm=1024, use_bf16=False))
    assert out_f32.shape == (N, 3) and out_f32.dtype == jnp.float32
    err_f32 = float(jnp.max(jnp.abs(out_f32 - ref)))
    assert err_f32 < 1e-4, err_f32

    print("KERNEL_OK")
</pallas_src>

<mosaic_0001>
module attributes {stable_mosaic.version = 11 : i64} {
  func.func @kernel(%arg0: i32, %arg1: memref<1024x16xbf16, #tpu.memory_space<vmem>>, %arg2: memref<3x1024xf32, #tpu.memory_space<vmem>>, %arg3: memref<16x32xbf16, #tpu.memory_space<vmem>>, %arg4: memref<1x32xf32, #tpu.memory_space<vmem>>, %arg5: memref<32x32xbf16, #tpu.memory_space<vmem>>, %arg6: memref<1x32xf32, #tpu.memory_space<vmem>>, %arg7: memref<32x128xbf16, #tpu.memory_space<vmem>>, %arg8: memref<1x128xf32, #tpu.memory_space<vmem>>, %arg9: memref<3x1024xf32, #tpu.memory_space<vmem>>) attributes {dimension_semantics = [#tpu.dimension_semantics<parallel>], iteration_bounds = array<i64: 2>, scalar_prefetch = 0 : i64, scratch_operands = 0 : i64, tpu.core_type = #tpu.core_type<tc>, window_params = [{transform_indices = @transform_0, window_bounds = array<i64: 1024, 16>}, {transform_indices = @transform_1, window_bounds = array<i64: 3, 1024>}, {pipeline_mode = #tpu.pipeline_mode<synchronous>, transform_indices = @transform_2, window_bounds = array<i64: 16, 32>}, {pipeline_mode = #tpu.pipeline_mode<synchronous>, transform_indices = @transform_3, window_bounds = array<i64: 1, 32>}, {pipeline_mode = #tpu.pipeline_mode<synchronous>, transform_indices = @transform_4, window_bounds = array<i64: 32, 32>}, {pipeline_mode = #tpu.pipeline_mode<synchronous>, transform_indices = @transform_5, window_bounds = array<i64: 1, 32>}, {pipeline_mode = #tpu.pipeline_mode<synchronous>, transform_indices = @transform_6, window_bounds = array<i64: 32, 128>}, {pipeline_mode = #tpu.pipeline_mode<synchronous>, transform_indices = @transform_7, window_bounds = array<i64: 1, 128>}, {transform_indices = @transform_8, window_bounds = array<i64: 3, 1024>}]} {
    %c0 = arith.constant 0 : index
    %c0_0 = arith.constant 0 : index
    %0 = vector.load %arg1[%c0, %c0_0] : memref<1024x16xbf16, #tpu.memory_space<vmem>>, vector<1024x16xbf16>
    %c0_1 = arith.constant 0 : index
    %c0_2 = arith.constant 0 : index
    %1 = vector.load %arg3[%c0_1, %c0_2] : memref<16x32xbf16, #tpu.memory_space<vmem>>, vector<16x32xbf16>
    %c0_3 = arith.constant 0 : index
    %c0_4 = arith.constant 0 : index
    %2 = vector.load %arg4[%c0_3, %c0_4] : memref<1x32xf32, #tpu.memory_space<vmem>>, vector<1x32xf32>
    %cst = arith.constant dense<0.000000e+00> : vector<1024x32xf32>
    %3 = tpu.matmul %0, %1, %cst {dimension_numbers = #tpu.dot_dimension_numbers<[1], [0], [0], [1], [0, 0, 1, 1], [], []>} : vector<1024x16xbf16>, vector<16x32xbf16>, vector<1024x32xf32> -> vector<1024x32xf32>
    %4 = vector.broadcast %2 : vector<1x32xf32> to vector<1024x32xf32>
    %5 = arith.addf %3, %4 : vector<1024x32xf32>
    %cst_5 = arith.constant 0.000000e+00 : f32
    %6 = vector.broadcast %cst_5 : f32 to vector<1024x32xf32>
    %7 = arith.maximumf %5, %6 : vector<1024x32xf32>
    %c0_6 = arith.constant 0 : index
    %c0_7 = arith.constant 0 : index
    %8 = vector.load %arg5[%c0_6, %c0_7] : memref<32x32xbf16, #tpu.memory_space<vmem>>, vector<32x32xbf16>
    %c0_8 = arith.constant 0 : index
    %c0_9 = arith.constant 0 : index
    %9 = vector.load %arg6[%c0_8, %c0_9] : memref<1x32xf32, #tpu.memory_space<vmem>>, vector<1x32xf32>
    %10 = arith.truncf %7 : vector<1024x32xf32> to vector<1024x32xbf16>
    %cst_10 = arith.constant dense<0.000000e+00> : vector<1024x32xf32>
    %11 = tpu.matmul %10, %8, %cst_10 {dimension_numbers = #tpu.dot_dimension_numbers<[1], [0], [0], [1], [0, 0, 1, 1], [], []>} : vector<1024x32xbf16>, vector<32x32xbf16>, vector<1024x32xf32> -> vector<1024x32xf32>
    %12 = vector.broadcast %9 : vector<1x32xf32> to vector<1024x32xf32>
    %13 = arith.addf %11, %12 : vector<1024x32xf32>
    %cst_11 = arith.constant 0.000000e+00 : f32
    %14 = vector.broadcast %cst_11 : f32 to vector<1024x32xf32>
    %15 = arith.maximumf %13, %14 : vector<1024x32xf32>
    %c0_12 = arith.constant 0 : index
    %c0_13 = arith.constant 0 : index
    %16 = vector.load %arg7[%c0_12, %c0_13] : memref<32x128xbf16, #tpu.memory_space<vmem>>, vector<32x128xbf16>
    %c0_14 = arith.constant 0 : index
    %c0_15 = arith.constant 0 : index
    %17 = vector.load %arg8[%c0_14, %c0_15] : memref<1x128xf32, #tpu.memory_space<vmem>>, vector<1x128xf32>
    %18 = arith.truncf %15 : vector<1024x32xf32> to vector<1024x32xbf16>
    %cst_16 = arith.constant dense<0.000000e+00> : vector<1024x128xf32>
    %19 = tpu.matmul %18, %16, %cst_16 {dimension_numbers = #tpu.dot_dimension_numbers<[1], [0], [0], [1], [0, 0, 1, 1], [], []>} : vector<1024x32xbf16>, vector<32x128xbf16>, vector<1024x128xf32> -> vector<1024x128xf32>
    %20 = vector.broadcast %17 : vector<1x128xf32> to vector<1024x128xf32>
    %21 = arith.addf %19, %20 : vector<1024x128xf32>
    %c0_17 = arith.constant 0 : index
    %c0_18 = arith.constant 0 : index
    %22 = vector.load %arg2[%c0_17, %c0_18] : memref<3x1024xf32, #tpu.memory_space<vmem>>, vector<3x1024xf32>
    %23 = vector.extract_strided_slice %22 {offsets = [0, 0], sizes = [1, 1024], strides = [1, 1]} : vector<3x1024xf32> to vector<1x1024xf32>
    %24 = vector.extract_strided_slice %22 {offsets = [1, 0], sizes = [1, 1024], strides = [1, 1]} : vector<3x1024xf32> to vector<1x1024xf32>
    %25 = vector.extract_strided_slice %22 {offsets = [2, 0], sizes = [1, 1024], strides = [1, 1]} : vector<3x1024xf32> to vector<1x1024xf32>
    %cst_19 = arith.constant 0.282094806 : f32
    %26 = vector.broadcast %cst_19 : f32 to vector<1x1024xf32>
    %cst_20 = arith.constant -0.488602519 : f32
    %27 = vector.broadcast %cst_20 : f32 to vector<1x1024xf32>
    %28 = arith.mulf %27, %24 : vector<1x1024xf32>
    %cst_21 = arith.constant 0.488602519 : f32
    %29 = vector.broadcast %cst_21 : f32 to vector<1x1024xf32>
    %30 = arith.mulf %29, %25 : vector<1x1024xf32>
    %cst_22 = arith.constant -0.488602519 : f32
    %31 = vector.broadcast %cst_22 : f32 to vector<1x1024xf32>
    %32 = arith.mulf %31, %23 : vector<1x1024xf32>
    %33 = arith.mulf %23, %23 : vector<1x1024xf32>
    %34 = arith.mulf %24, %24 : vector<1x1024xf32>
    %35 = arith.mulf %25, %25 : vector<1x1024xf32>
    %36 = arith.mulf %23, %24 : vector<1x1024xf32>
    %37 = arith.mulf %24, %25 : vector<1x1024xf32>
    %38 = arith.mulf %23, %25 : vector<1x1024xf32>
    %cst_23 = arith.constant 1.09254849 : f32
    %39 = vector.broadcast %cst_23 : f32 to vector<1x1024xf32>
    %40 = arith.mulf %39, %36 : vector<1x1024xf32>
    %cst_24 = arith.constant -1.09254849 : f32
    %41 = vector.broadcast %cst_24 : f32 to vector<1x1024xf32>
    %42 = arith.mulf %41, %37 : vector<1x1024xf32>
    %cst_25 = arith.constant 2.000000e+00 : f32
    %43 = vector.broadcast %cst_25 : f32 to vector<1x1024xf32>
    %44 = arith.mulf %43, %35 : vector<1x1024xf32>
    %45 = arith.subf %44, %33 : vector<1x1024xf32>
    %46 = arith.subf %45, %34 : vector<1x1024xf32>
    %cst_26 = arith.constant 0.31539157 : f32
    %47 = vector.broadcast %cst_26 : f32 to vector<1x1024xf32>
    %48 = arith.mulf %47, %46 : vector<1x1024xf32>
    %cst_27 = arith.constant -1.09254849 : f32
    %49 = vector.broadcast %cst_27 : f32 to vector<1x1024xf32>
    %50 = arith.mulf %49, %38 : vector<1x1024xf32>
    %51 = arith.subf %33, %34 : vector<1x1024xf32>
    %cst_28 = arith.constant 0.546274245 : f32
    %52 = vector.broadcast %cst_28 : f32 to vector<1x1024xf32>
    %53 = arith.mulf %52, %51 : vector<1x1024xf32>
    %cst_29 = arith.constant -0.590043604 : f32
    %54 = vector.broadcast %cst_29 : f32 to vector<1x1024xf32>
    %55 = arith.mulf %54, %24 : vector<1x1024xf32>
    %cst_30 = arith.constant 3.000000e+00 : f32
    %56 = vector.broadcast %cst_30 : f32 to vector<1x1024xf32>
    %57 = arith.mulf %56, %33 : vector<1x1024xf32>
    %58 = arith.subf %57, %34 : vector<1x1024xf32>
    %59 = arith.mulf %55, %58 : vector<1x1024xf32>
    %cst_31 = arith.constant 2.89061141 : f32
    %60 = vector.broadcast %cst_31 : f32 to vector<1x1024xf32>
    %61 = arith.mulf %60, %36 : vector<1x1024xf32>
    %62 = arith.mulf %61, %25 : vector<1x1024xf32>
    %cst_32 = arith.constant -0.457045794 : f32
    %63 = vector.broadcast %cst_32 : f32 to vector<1x1024xf32>
    %64 = arith.mulf %63, %24 : vector<1x1024xf32>
    %cst_33 = arith.constant 4.000000e+00 : f32
    %65 = vector.broadcast %cst_33 : f32 to vector<1x1024xf32>
    %66 = arith.mulf %65, %35 : vector<1x1024xf32>
    %67 = arith.subf %66, %33 : vector<1x1024xf32>
    %68 = arith.subf %67, %34 : vector<1x1024xf32>
    %69 = arith.mulf %64, %68 : vector<1x1024xf32>
    %cst_34 = arith.constant 0.373176336 : f32
    %70 = vector.broadcast %cst_34 : f32 to vector<1x1024xf32>
    %71 = arith.mulf %70, %25 : vector<1x1024xf32>
    %cst_35 = arith.constant 2.000000e+00 : f32
    %72 = vector.broadcast %cst_35 : f32 to vector<1x1024xf32>
    %73 = arith.mulf %72, %35 : vector<1x1024xf32>
    %cst_36 = arith.constant 3.000000e+00 : f32
    %74 = vector.broadcast %cst_36 : f32 to vector<1x1024xf32>
    %75 = arith.mulf %74, %33 : vector<1x1024xf32>
    %76 = arith.subf %73, %75 : vector<1x1024xf32>
    %cst_37 = arith.constant 3.000000e+00 : f32
    %77 = vector.broadcast %cst_37 : f32 to vector<1x1024xf32>
    %78 = arith.mulf %77, %34 : vector<1x1024xf32>
    %79 = arith.subf %76, %78 : vector<1x1024xf32>
    %80 = arith.mulf %71, %79 : vector<1x1024xf32>
    %cst_38 = arith.constant -0.457045794 : f32
    %81 = vector.broadcast %cst_38 : f32 to vector<1x1024xf32>
    %82 = arith.mulf %81, %23 : vector<1x1024xf32>
    %cst_39 = arith.constant 4.000000e+00 : f32
    %83 = vector.broadcast %cst_39 : f32 to vector<1x1024xf32>
    %84 = arith.mulf %83, %35 : vector<1x1024xf32>
    %85 = arith.subf %84, %33 : vector<1x1024xf32>
    %86 = arith.subf %85, %34 : vector<1x1024xf32>
    %87 = arith.mulf %82, %86 : vector<1x1024xf32>
    %cst_40 = arith.constant 1.44530571 : f32
    %88 = vector.broadcast %cst_40 : f32 to vector<1x1024xf32>
    %89 = arith.mulf %88, %25 : vector<1x1024xf32>
    %90 = arith.subf %33, %34 : vector<1x1024xf32>
    %91 = arith.mulf %89, %90 : vector<1x1024xf32>
    %cst_41 = arith.constant -0.590043604 : f32
    %92 = vector.broadcast %cst_41 : f32 to vector<1x1024xf32>
    %93 = arith.mulf %92, %23 : vector<1x1024xf32>
    %cst_42 = arith.constant 3.000000e+00 : f32
    %94 = vector.broadcast %cst_42 : f32 to vector<1x1024xf32>
    %95 = arith.mulf %94, %34 : vector<1x1024xf32>
    %96 = arith.subf %33, %95 : vector<1x1024xf32>
    %97 = arith.mulf %93, %96 : vector<1x1024xf32>
    %98 = tpu.concatenate %26, %28, %30, %32, %40, %42, %48, %50, %53, %59, %62, %69, %80, %87, %91, %97 in 0 : vector<1x1024xf32>, vector<1x1024xf32>, vector<1x1024xf32>, vector<1x1024xf32>, vector<1x1024xf32>, vector<1x1024xf32>, vector<1x1024xf32>, vector<1x1024xf32>, vector<1x1024xf32>, vector<1x1024xf32>, vector<1x1024xf32>, vector<1x1024xf32>, vector<1x1024xf32>, vector<1x1024xf32>, vector<1x1024xf32>, vector<1x1024xf32> -> vector<16x1024xf32>
    %cst_43 = arith.constant 0.000000e+00 : f32
    %99 = vector.broadcast %cst_43 : f32 to vector<80x1024xf32>
    %100 = tpu.concatenate %98, %98, %98, %99 in 0 : vector<16x1024xf32>, vector<16x1024xf32>, vector<16x1024xf32>, vector<80x1024xf32> -> vector<128x1024xf32>
    %101 = tpu.transpose %100, [1, 0] : vector<128x1024xf32> -> vector<1024x128xf32>
    %102 = arith.mulf %21, %101 : vector<1024x128xf32>
    %103 = tpu.iota {dimensions = array<i32: 0>} : vector<3x128xi32>
    %104 = tpu.iota {dimensions = array<i32: 1>} : vector<3x128xi32>
    %c16_i32 = arith.constant 16 : i32
    %105 = vector.broadcast %c16_i32 : i32 to vector<3x128xi32>
    %106 = arith.muli %103, %105 : vector<3x128xi32>
    %107 = arith.cmpi sge, %104, %106 : vector<3x128xi32>
    %c1_i32 = arith.constant 1 : i32
    %108 = vector.broadcast %c1_i32 : i32 to vector<3x128xi32>
    %109 = arith.addi %103, %108 : vector<3x128xi32>
    %c16_i32_44 = arith.constant 16 : i32
    %110 = vector.broadcast %c16_i32_44 : i32 to vector<3x128xi32>
    %111 = arith.muli %109, %110 : vector<3x128xi32>
    %112 = arith.cmpi slt, %104, %111 : vector<3x128xi32>
    %113 = arith.andi %107, %112 : vector<3x128xi1>
    %cst_45 = arith.constant 1.000000e+00 : f32
    %cst_46 = arith.constant 0.000000e+00 : f32
    %114 = vector.broadcast %cst_45 : f32 to vector<3x128xf32>
    %115 = vector.broadcast %cst_46 : f32 to vector<3x128xf32>
    %116 = arith.select %113, %114, %115 : vector<3x128xi1>, vector<3x128xf32>
    %117 = arith.truncf %116 : vector<3x128xf32> to vector<3x128xbf16>
    %118 = arith.truncf %102 : vector<1024x128xf32> to vector<1024x128xbf16>
    %cst_47 = arith.constant dense<0.000000e+00> : vector<3x1024xf32>
    %119 = tpu.matmul %117, %118, %cst_47 {dimension_numbers = #tpu.dot_dimension_numbers<[1], [1], [0], [0], [0, 0, 1, 0], [], []>} : vector<3x128xbf16>, vector<1024x128xbf16>, vector<3x1024xf32> -> vector<3x1024xf32>
    %120 = arith.negf %119 : vector<3x1024xf32>
    %121 = math.exp %120 : vector<3x1024xf32>
    %cst_48 = arith.constant 1.000000e+00 : f32
    %122 = vector.broadcast %cst_48 : f32 to vector<3x1024xf32>
    %123 = arith.addf %122, %121 : vector<3x1024xf32>
    %124 = arith.divf %122, %123 : vector<3x1024xf32>
    %c0_49 = arith.constant 0 : index
    %c0_50 = arith.constant 0 : index
    %125 = vector.load %arg9[%c0_49, %c0_50] : memref<3x1024xf32, #tpu.memory_space<vmem>>, vector<3x1024xf32>
    tpu.vector_store %arg9[%c0_49, %c0_50], %124 {strides = array<i32>} : memref<3x1024xf32, #tpu.memory_space<vmem>>, vector<3x1024xf32>,
    return
  }
  func.func @transform_0(%arg0: i32) -> (i32, i32) {
    %c0_i32 = arith.constant 0 : i32
    %c0_i32_0 = arith.constant 0 : i32
    return %arg0, %c0_i32 : i32, i32
  }
  func.func @transform_1(%arg0: i32) -> (i32, i32) {
    %c0_i32 = arith.constant 0 : i32
    %c0_i32_0 = arith.constant 0 : i32
    return %c0_i32, %arg0 : i32, i32
  }
  func.func @transform_2(%arg0: i32) -> (i32, i32) {
    %c0_i32 = arith.constant 0 : i32
    %c0_i32_0 = arith.constant 0 : i32
    %c0_i32_1 = arith.constant 0 : i32
    return %c0_i32, %c0_i32_0 : i32, i32
  }
  func.func @transform_3(%arg0: i32) -> (i32, i32) {
    %c0_i32 = arith.constant 0 : i32
    %c0_i32_0 = arith.constant 0 : i32
    %c0_i32_1 = arith.constant 0 : i32
    return %c0_i32, %c0_i32_0 : i32, i32
  }
  func.func @transform_4(%arg0: i32) -> (i32, i32) {
    %c0_i32 = arith.constant 0 : i32
    %c0_i32_0 = arith.constant 0 : i32
    %c0_i32_1 = arith.constant 0 : i32
    return %c0_i32, %c0_i32_0 : i32, i32
  }
  func.func @transform_5(%arg0: i32) -> (i32, i32) {
    %c0_i32 = arith.constant 0 : i32
    %c0_i32_0 = arith.constant 0 : i32
    %c0_i32_1 = arith.constant 0 : i32
    return %c0_i32, %c0_i32_0 : i32, i32
  }
  func.func @transform_6(%arg0: i32) -> (i32, i32) {
    %c0_i32 = arith.constant 0 : i32
    %c0_i32_0 = arith.constant 0 : i32
    %c0_i32_1 = arith.constant 0 : i32
    return %c0_i32, %c0_i32_0 : i32, i32
  }
  func.func @transform_7(%arg0: i32) -> (i32, i32) {
    %c0_i32 = arith.constant 0 : i32
    %c0_i32_0 = arith.constant 0 : i32
    %c0_i32_1 = arith.constant 0 : i32
    return %c0_i32, %c0_i32_0 : i32, i32
  }
  func.func @transform_8(%arg0: i32) -> (i32, i32) {
    %c0_i32 = arith.constant 0 : i32
    %c0_i32_0 = arith.constant 0 : i32
    return %c0_i32, %arg0 : i32, i32
  }
}

</mosaic_0001>

<llo_original>
// kernel: tpu_custom_call.1
$region0: #{tpu_custom_call.1}
  #allocation0 [shape = 'u32[]', space=smem, size = 0x4, offset = 0x4, fixed_abs, tag = 'smem constant byte address 0x4 - core index']
  #allocation1 [shape = 'u32[144,128]{1,0:T(1,128)}', space=vmem, size = 0x12000, scoped, tag = 'internal scratch']
  %s0 = inlined_call_operand.vmem [shape: bf16[2048,16], index: 0, kind: input, shape index: {}]
  %s1 = inlined_call_operand.vmem [shape: f32[3,2048], index: 1, kind: input, shape index: {}]
  %s2 = inlined_call_operand.vmem [shape: bf16[16,32], index: 2, kind: input, shape index: {}]
  %s3 = inlined_call_operand.vmem [shape: f32[1,32], index: 3, kind: input, shape index: {}]
  %s4 = inlined_call_operand.vmem [shape: bf16[32,32], index: 4, kind: input, shape index: {}]
  %s5 = inlined_call_operand.vmem [shape: f32[1,32], index: 5, kind: input, shape index: {}]
  %s6 = inlined_call_operand.vmem [shape: bf16[32,128], index: 6, kind: input, shape index: {}]
  %s7 = inlined_call_operand.vmem [shape: f32[1,128], index: 7, kind: input, shape index: {}]
  %s8 = inlined_call_operand.hbm [shape: f32[3,2048], index: 8, kind: output, shape index: {}]
  %s9 = sld [smem:[#allocation0]]
  $region65: #{tpu_custom_call.1} parent=0
    _
  %s11 = ssub.s32 1, %s9
  %s12 = scalar_select 0, %s11, %s9
  $region1: #{tpu_custom_call.1} parent=0
    #allocation2 [shape = 'u8[32768]{0}', space=vmem, size = 0x8000, scoped, tag = 'output window, operand 0']
    #allocation3 [shape = 's32[2]{0}', space=sflag, size = 0x8, scoped, tag = 'scoped memory for tpu_custom_call.1']
    %13 = vsyncpa [#allocation3], 0
    %s14 = scalar_lea.sflag [#allocation3], 1
    %15 = vsyncpa %s14, 0
    loop: start=0, step=1, limit=4
    $region2: #{tpu_custom_call.1} parent=1 // loop_pre_header
      _
    $region3: #{tpu_custom_call.1} parent=1 // loop_header
      %s17 = sphi 0, %s21
      %p18 = scmp.ge.s32.totalorder %s17, 4
      %s27 = sphi 0, %s29
      %s30 = sphi 0, %s27
      %s31 = sphi 0, %s30
      %s47 = sphi 0, %s31
      %s53 = sphi 0, %s55
      %s56 = sphi 0, %s53
      %s57 = sphi 0, %s56
      %s73 = sphi 0, %s57
      %s77 = sphi 0, %s77
      %s79 = sphi 0, %s77
      %s80 = sphi 0, %s79
      %s94 = sphi 0, %s80
      %s98 = sphi 0, %s98
      %s100 = sphi 0, %s98
      %s101 = sphi 0, %s100
      %s115 = sphi 0, %s101
      %s119 = sphi 0, %s119
      %s121 = sphi 0, %s119
      %s122 = sphi 0, %s121
      %s136 = sphi 0, %s122
      %s140 = sphi 0, %s140
      %s142 = sphi 0, %s140
      %s143 = sphi 0, %s142
      %s157 = sphi 0, %s143
      %s161 = sphi 0, %s161
      %s163 = sphi 0, %s161
      %s164 = sphi 0, %s163
      %s178 = sphi 0, %s164
      %s182 = sphi 0, %s182
      %s184 = sphi 0, %s182
      %s185 = sphi 0, %s184
      %s199 = sphi 0, %s185
      %s205 = sphi 0, %s207
      %s208 = sphi 0, %s205
      %s209 = sphi 0, %s208
      %s225 = sphi 0, %s209
    $region4: #{tpu_custom_call.1} parent=1 // loop_header_branch
      %20 = sbr.rel (%p18) target = $region8
    $region5: #{tpu_custom_call.1} parent=1 // loop_body
      %s22 = ssub.s32 %s17, 1
      %s23 = ssub.s32 %s17, 2
      %s24 = sadd.s32 %s17, 1
      %s25 = ssub.s32 %s17, %s24
      %p26 = scmp.eq.s32.totalorder %s25, 0
      %s28 = sadd.s32 %s27, 1
      %s29 = scalar_select %p26, %s27, %s28
      %p32 = pneg %p26
      %p33 = scmp.eq.s32.totalorder %s17, 1
      %p34 = por %p32, %p33
      %p35 = scmp.ne.s32.totalorder %s27, %s30
      %p36 = scmp.eq.s32.totalorder %s17, 0
      %p37 = por %p35, %p36
      %p38 = scmp.ne.s32.totalorder %s27, %s30
      %p39 = scmp.eq.s32.totalorder %s22, 1
      %p40 = por %p38, %p39
      %p41 = scmp.ne.s32.totalorder %s30, %s31
      %p42 = scmp.eq.s32.totalorder %s22, 0
      %p43 = por %p41, %p42
      %p44 = scmp.ne.s32.totalorder %s30, %s31
      %p45 = scmp.eq.s32.totalorder %s23, 1
      %p46 = por %p44, %p45
      %p48 = scmp.ne.s32.totalorder %s31, %s47
      %p49 = scmp.eq.s32.totalorder %s23, 0
      %p50 = por %p48, %p49
      %s51 = ssub.s32 %s17, %s24
      %p52 = scmp.eq.s32.totalorder %s51, 0
      %s54 = sadd.s32 %s53, 1
      %s55 = scalar_select %p52, %s53, %s54
      %p58 = pneg %p52
      %p59 = scmp.eq.s32.totalorder %s17, 1
      %p60 = por %p58, %p59
      %p61 = scmp.ne.s32.totalorder %s53, %s56
      %p62 = scmp.eq.s32.totalorder %s17, 0
      %p63 = por %p61, %p62
      %p64 = scmp.ne.s32.totalorder %s53, %s56
      %p65 = scmp.eq.s32.totalorder %s22, 1
      %p66 = por %p64, %p65
      %p67 = scmp.ne.s32.totalorder %s56, %s57
      %p68 = scmp.eq.s32.totalorder %s22, 0
      %p69 = por %p67, %p68
      %p70 = scmp.ne.s32.totalorder %s56, %s57
      %p71 = scmp.eq.s32.totalorder %s23, 1
      %p72 = por %p70, %p71
      %p74 = scmp.ne.s32.totalorder %s57, %s73
      %p75 = scmp.eq.s32.totalorder %s23, 0
      %p76 = por %p74, %p75
      %s78 = sadd.s32 %s77, 1
      %p81 = scmp.eq.s32.totalorder %s17, 1
      %p82 = scmp.ne.s32.totalorder %s77, %s79
      %p83 = scmp.eq.s32.totalorder %s17, 0
      %p84 = por %p82, %p83
      %p85 = scmp.ne.s32.totalorder %s77, %s79
      %p86 = scmp.eq.s32.totalorder %s22, 1
      %p87 = por %p85, %p86
      %p88 = scmp.ne.s32.totalorder %s79, %s80
      %p89 = scmp.eq.s32.totalorder %s22, 0
      %p90 = por %p88, %p89
      %p91 = scmp.ne.s32.totalorder %s79, %s80
      %p92 = scmp.eq.s32.totalorder %s23, 1
      %p93 = por %p91, %p92
      %p95 = scmp.ne.s32.totalorder %s80, %s94
      %p96 = scmp.eq.s32.totalorder %s23, 0
      %p97 = por %p95, %p96
      %s99 = sadd.s32 %s98, 1
      %p102 = scmp.eq.s32.totalorder %s17, 1
      %p103 = scmp.ne.s32.totalorder %s98, %s100
      %p104 = scmp.eq.s32.totalorder %s17, 0
      %p105 = por %p103, %p104
      %p106 = scmp.ne.s32.totalorder %s98, %s100
      %p107 = scmp.eq.s32.totalorder %s22, 1
      %p108 = por %p106, %p107
      %p109 = scmp.ne.s32.totalorder %s100, %s101
      %p110 = scmp.eq.s32.totalorder %s22, 0
      %p111 = por %p109, %p110
      %p112 = scmp.ne.s32.totalorder %s100, %s101
      %p113 = scmp.eq.s32.totalorder %s23, 1
      %p114 = por %p112, %p113
      %p116 = scmp.ne.s32.totalorder %s101, %s115
      %p117 = scmp.eq.s32.totalorder %s23, 0
      %p118 = por %p116, %p117
      %s120 = sadd.s32 %s119, 1
      %p123 = scmp.eq.s32.totalorder %s17, 1
      %p124 = scmp.ne.s32.totalorder %s119, %s121
      %p125 = scmp.eq.s32.totalorder %s17, 0
      %p126 = por %p124, %p125
      %p127 = scmp.ne.s32.totalorder %s119, %s121
      %p128 = scmp.eq.s32.totalorder %s22, 1
      %p129 = por %p127, %p128
      %p130 = scmp.ne.s32.totalorder %s121, %s122
      %p131 = scmp.eq.s32.totalorder %s22, 0
      %p132 = por %p130, %p131
      %p133 = scmp.ne.s32.totalorder %s121, %s122
      %p134 = scmp.eq.s32.totalorder %s23, 1
      %p135 = por %p133, %p134
      %p137 = scmp.ne.s32.totalorder %s122, %s136
      %p138 = scmp.eq.s32.totalorder %s23, 0
      %p139 = por %p137, %p138
      %s141 = sadd.s32 %s140, 1
      %p144 = scmp.eq.s32.totalorder %s17, 1
      %p145 = scmp.ne.s32.totalorder %s140, %s142
      %p146 = scmp.eq.s32.totalorder %s17, 0
      %p147 = por %p145, %p146
      %p148 = scmp.ne.s32.totalorder %s140, %s142
      %p149 = scmp.eq.s32.totalorder %s22, 1
      %p150 = por %p148, %p149
      %p151 = scmp.ne.s32.totalorder %s142, %s143
      %p152 = scmp.eq.s32.totalorder %s22, 0
      %p153 = por %p151, %p152
      %p154 = scmp.ne.s32.totalorder %s142, %s143
      %p155 = scmp.eq.s32.totalorder %s23, 1
      %p156 = por %p154, %p155
      %p158 = scmp.ne.s32.totalorder %s143, %s157
      %p159 = scmp.eq.s32.totalorder %s23, 0
      %p160 = por %p158, %p159
      %s162 = sadd.s32 %s161, 1
      %p165 = scmp.eq.s32.totalorder %s17, 1
      %p166 = scmp.ne.s32.totalorder %s161, %s163
      %p167 = scmp.eq.s32.totalorder %s17, 0
      %p168 = por %p166, %p167
      %p169 = scmp.ne.s32.totalorder %s161, %s163
      %p170 = scmp.eq.s32.totalorder %s22, 1
      %p171 = por %p169, %p170
      %p172 = scmp.ne.s32.totalorder %s163, %s164
      %p173 = scmp.eq.s32.totalorder %s22, 0
      %p174 = por %p172, %p173
      %p175 = scmp.ne.s32.totalorder %s163, %s164
      %p176 = scmp.eq.s32.totalorder %s23, 1
      %p177 = por %p175, %p176
      %p179 = scmp.ne.s32.totalorder %s164, %s178
      %p180 = scmp.eq.s32.totalorder %s23, 0
      %p181 = por %p179, %p180
      %s183 = sadd.s32 %s182, 1
      %p186 = scmp.eq.s32.totalorder %s17, 1
      %p187 = scmp.ne.s32.totalorder %s182, %s184
      %p188 = scmp.eq.s32.totalorder %s17, 0
      %p189 = por %p187, %p188
      %p190 = scmp.ne.s32.totalorder %s182, %s184
      %p191 = scmp.eq.s32.totalorder %s22, 1
      %p192 = por %p190, %p191
      %p193 = scmp.ne.s32.totalorder %s184, %s185
      %p194 = scmp.eq.s32.totalorder %s22, 0
      %p195 = por %p193, %p194
      %p196 = scmp.ne.s32.totalorder %s184, %s185
      %p197 = scmp.eq.s32.totalorder %s23, 1
      %p198 = por %p196, %p197
      %p200 = scmp.ne.s32.totalorder %s185, %s199
      %p201 = scmp.eq.s32.totalorder %s23, 0
      %p202 = por %p200, %p201
      %s203 = ssub.s32 %s17, %s24
      %p204 = scmp.eq.s32.totalorder %s203, 0
      %s206 = sadd.s32 %s205, 1
      %s207 = scalar_select %p204, %s205, %s206
      %p210 = pneg %p204
      %p211 = scmp.eq.s32.totalorder %s17, 1
      %p212 = por %p210, %p211
      %p213 = scmp.ne.s32.totalorder %s205, %s208
      %p214 = scmp.eq.s32.totalorder %s17, 0
      %p215 = por %p213, %p214
      %p216 = scmp.ne.s32.totalorder %s205, %s208
      %p217 = scmp.eq.s32.totalorder %s22, 1
      %p218 = por %p216, %p217
      %p219 = scmp.ne.s32.totalorder %s208, %s209
      %p220 = scmp.eq.s32.totalorder %s22, 0
      %p221 = por %p219, %p220
      %p222 = scmp.ne.s32.totalorder %s208, %s209
      %p223 = scmp.eq.s32.totalorder %s23, 1
      %p224 = por %p222, %p223
      %p226 = scmp.ne.s32.totalorder %s209, %s225
      %p227 = scmp.eq.s32.totalorder %s23, 0
      %p228 = por %p226, %p227
      %p229 = scmp.le.s32.totalorder 1, %s17
      %p230 = scmp.lt.s32.totalorder %s17, 3
      %p231 = pnand %p229, %p230
      %p232 = pneg %p231
      // Predicated region
      $region9: #{tpu_custom_call.1} parent=5 // pred_check
        _
      $region10: #{tpu_custom_call.1} parent=5 // pred_check_branch
        %234 = sbr.rel (%p231) target = $region12
      $region11: #{tpu_custom_call.1} parent=5 // pred_region
        %s235 = ssub.s32 %s17, 1
        // Predicated region
        $region13: #{tpu_custom_call.1} parent=11 // pred_check
          %p236 = pneg %p90
        $region14: #{tpu_custom_call.1} parent=11 // pred_check_branch
          %238 = sbr.rel (%p236) target = $region16
        $region15: #{tpu_custom_call.1} parent=11 // pred_region
          _
        $region16: #{tpu_custom_call.1} parent=11 // pred_fallthru
          _
        // Predicated region
        $region17: #{tpu_custom_call.1} parent=11 // pred_check
          %p239 = pneg %p111
        $region18: #{tpu_custom_call.1} parent=11 // pred_check_branch
          %241 = sbr.rel (%p239) target = $region20
        $region19: #{tpu_custom_call.1} parent=11 // pred_region
          _
        $region20: #{tpu_custom_call.1} parent=11 // pred_fallthru
          _
        // Predicated region
        $region21: #{tpu_custom_call.1} parent=11 // pred_check
          %p242 = pneg %p132
        $region22: #{tpu_custom_call.1} parent=11 // pred_check_branch
          %244 = sbr.rel (%p242) target = $region24
        $region23: #{tpu_custom_call.1} parent=11 // pred_region
          _
        $region24: #{tpu_custom_call.1} parent=11 // pred_fallthru
          _
        // Predicated region
        $region25: #{tpu_custom_call.1} parent=11 // pred_check
          %p245 = pneg %p153
        $region26: #{tpu_custom_call.1} parent=11 // pred_check_branch
          %247 = sbr.rel (%p245) target = $region28
        $region27: #{tpu_custom_call.1} parent=11 // pred_region
          _
        $region28: #{tpu_custom_call.1} parent=11 // pred_fallthru
          _
        // Predicated region
        $region29: #{tpu_custom_call.1} parent=11 // pred_check
          %p248 = pneg %p174
        $region30: #{tpu_custom_call.1} parent=11 // pred_check_branch
          %250 = sbr.rel (%p248) target = $region32
        $region31: #{tpu_custom_call.1} parent=11 // pred_region
          _
        $region32: #{tpu_custom_call.1} parent=11 // pred_fallthru
          _
        // Predicated region
        $region33: #{tpu_custom_call.1} parent=11 // pred_check
          %p251 = pneg %p195
        $region34: #{tpu_custom_call.1} parent=11 // pred_check_branch
          %253 = sbr.rel (%p251) target = $region36
        $region35: #{tpu_custom_call.1} parent=11 // pred_region
          _
        $region36: #{tpu_custom_call.1} parent=11 // pred_fallthru
          _
      $region12: #{tpu_custom_call.1} parent=5 // pred_fallthru
        _
      %p254 = scmp.lt.s32.totalorder %s17, 2
      // Predicated region
      $region37: #{tpu_custom_call.1} parent=5 // pred_check
        %p255 = pneg %p254
      $region38: #{tpu_custom_call.1} parent=5 // pred_check_branch
        %257 = sbr.rel (%p255) target = $region40
      $region39: #{tpu_custom_call.1} parent=5 // pred_region
        // Predicated region
        $region41: #{tpu_custom_call.1} parent=39 // pred_check
          %p258 = pneg %p37
        $region42: #{tpu_custom_call.1} parent=39 // pred_check_branch
          %260 = sbr.rel (%p258) target = $region44
        $region43: #{tpu_custom_call.1} parent=39 // pred_region
          %s261 = smul.u32 128, %s17
          %p262 = scmp.lt.s32.totalorder %s261, 255
          %s263 = scalar_select %p262, %s261, 255
          %s264 = smul.addr %s263, 4
          %s265 = scalar_lea.vmem %s0, %s264
          %s266 = smul.u32 128, %s17
        $region44: #{tpu_custom_call.1} parent=39 // pred_fallthru
          _
        // Predicated region
        $region45: #{tpu_custom_call.1} parent=39 // pred_check
          %p267 = pneg %p63
        $region46: #{tpu_custom_call.1} parent=39 // pred_check_branch
          %269 = sbr.rel (%p267) target = $region48
        $region47: #{tpu_custom_call.1} parent=39 // pred_region
          %s270 = smul.u32 8, %s17
          %p271 = scmp.lt.s32.totalorder %s270, 15
          %s272 = scalar_select %p271, %s270, 15
          %s273 = smul.addr %s272, 4
          %s274 = scalar_lea.vmem %s1, %s273
          %s275 = smul.u32 8, %s17
        $region48: #{tpu_custom_call.1} parent=39 // pred_fallthru
          _
      $region40: #{tpu_custom_call.1} parent=5 // pred_fallthru
        _
      %p276 = scmp.le.s32.totalorder 1, %s17
      %p277 = scmp.lt.s32.totalorder %s17, 3
      %p278 = pnand %p276, %p277
      %p279 = pneg %p278
      // Predicated region
      $region49: #{tpu_custom_call.1} parent=5 // pred_check
        _
      $region50: #{tpu_custom_call.1} parent=5 // pred_check_branch
        %281 = sbr.rel (%p278) target = $region52
      $region51: #{tpu_custom_call.1} parent=5 // pred_region
        %s282 = ssub.s32 %s17, 1
        %s283 = smul.u32 128, %s22
        %p284 = scmp.lt.s32.totalorder %s283, 255
        %s285 = scalar_select %p284, %s283, 255
        %s286 = smul.addr %s285, 4
        %s287 = scalar_lea.vmem %s0, %s286
        %p288 = pneg %p43
        %p289 = pneg %p40
        %s290 = smul.u32 8, %s22
        %p291 = scmp.lt.s32.totalorder %s290, 15
        %s292 = scalar_select %p291, %s290, 15
        %s293 = smul.addr %s292, 4
        %s294 = scalar_lea.vmem %s1, %s293
        %p295 = pneg %p69
        %p296 = pneg %p66
        %p297 = pneg %p90
        %p298 = pneg %p87
        %p299 = pneg %p111
        %p300 = pneg %p108
        %p301 = pneg %p132
        %p302 = pneg %p129
        %p303 = pneg %p153
        %p304 = pneg %p150
        %p305 = pneg %p174
        %p306 = pneg %p171
        %p307 = pneg %p195
        %p308 = pneg %p192
        %p309 = pneg %p221
        %p310 = pneg %p218
        %s311 = sand.u32 %s208, 1
        %s312 = scalar_lea.sflag [#allocation3], %s311
        %s313 = sand.u32 %s208, 1
        %s314 = smul.addr %s313, 32
        %s315 = scalar_lea.vmem [#allocation2], %s314
        %s316 = smul.u32 128, %s22
        %p317 = scmp.lt.s32.totalorder %s316, 255
        %s318 = scalar_select %p317, %s316, 255
        %s319 = smul.addr %s318, 4
        %s320 = scalar_lea.vmem %s0, %s319
        %s321 = smul.u32 128, %s22
        %s322 = smul.u32 8, %s22
        %p323 = scmp.lt.s32.totalorder %s322, 15
        %s324 = scalar_select %p323, %s322, 15
        %s325 = smul.addr %s324, 4
        %s326 = scalar_lea.vmem %s1, %s325
        %s327 = smul.u32 8, %s22
        %s328 = smul.u32 8, %s22
        %v330 = vld [vmem:[%s320] sm:$0xf]
        %v331 = vld [vmem:[%s320 + $0x4] sm:$0xf]
        %v332 = vld [vmem:[%s320 + $0x8] sm:$0xf]
        %v333 = vld [vmem:[%s320 + $0xc] sm:$0xf]
        %v334 = vld [vmem:[%s320 + $0x10] sm:$0xf]
        %v335 = vld [vmem:[%s320 + $0x14] sm:$0xf]
        %v336 = vld [vmem:[%s320 + $0x18] sm:$0xf]
        %v337 = vld [vmem:[%s320 + $0x1c] sm:$0xf]
        %v338 = vld [vmem:[%s320 + $0x20] sm:$0xf]
        %v339 = vld [vmem:[%s320 + $0x24] sm:$0xf]
        %v340 = vld [vmem:[%s320 + $0x28] sm:$0xf]
        %v341 = vld [vmem:[%s320 + $0x2c] sm:$0xf]
        %v342 = vld [vmem:[%s320 + $0x30] sm:$0xf]
        %v343 = vld [vmem:[%s320 + $0x34] sm:$0xf]
        %v344 = vld [vmem:[%s320 + $0x38] sm:$0xf]
        %v345 = vld [vmem:[%s320 + $0x3c] sm:$0xf]
        %v346 = vld [vmem:[%s320 + $0x40] sm:$0xf]
        %v347 = vld [vmem:[%s320 + $0x44] sm:$0xf]
        %v348 = vld [vmem:[%s320 + $0x48] sm:$0xf]
        %v349 = vld [vmem:[%s320 + $0x4c] sm:$0xf]
        %v350 = vld [vmem:[%s320 + $0x50] sm:$0xf]
        %v351 = vld [vmem:[%s320 + $0x54] sm:$0xf]
        %v352 = vld [vmem:[%s320 + $0x58] sm:$0xf]
        %v353 = vld [vmem:[%s320 + $0x5c] sm:$0xf]
        %v354 = vld [vmem:[%s320 + $0x60] sm:$0xf]
        %v355 = vld [vmem:[%s320 + $0x64] sm:$0xf]
        %v356 = vld [vmem:[%s320 + $0x68] sm:$0xf]
        %v357 = vld [vmem:[%s320 + $0x6c] sm:$0xf]
        %v358 = vld [vmem:[%s320 + $0x70] sm:$0xf]
        %v359 = vld [vmem:[%s320 + $0x74] sm:$0xf]
        %v360 = vld [vmem:[%s320 + $0x78] sm:$0xf]
        %v361 = vld [vmem:[%s320 + $0x7c] sm:$0xf]
        %v362 = vld [vmem:[%s320 + $0x80] sm:$0xf]
        %v363 = vld [vmem:[%s320 + $0x84] sm:$0xf]
        %v364 = vld [vmem:[%s320 + $0x88] sm:$0xf]
        %v365 = vld [vmem:[%s320 + $0x8c] sm:$0xf]
        %v366 = vld [vmem:[%s320 + $0x90] sm:$0xf]
        %v367 = vld [vmem:[%s320 + $0x94] sm:$0xf]
        %v368 = vld [vmem:[%s320 + $0x98] sm:$0xf]
        %v369 = vld [vmem:[%s320 + $0x9c] sm:$0xf]
        %v370 = vld [vmem:[%s320 + $0xa0] sm:$0xf]
        %v371 = vld [vmem:[%s320 + $0xa4] sm:$0xf]
        %v372 = vld [vmem:[%s320 + $0xa8] sm:$0xf]
        %v373 = vld [vmem:[%s320 + $0xac] sm:$0xf]
        %v374 = vld [vmem:[%s320 + $0xb0] sm:$0xf]
        %v375 = vld [vmem:[%s320 + $0xb4] sm:$0xf]
        %v376 = vld [vmem:[%s320 + $0xb8] sm:$0xf]
        %v377 = vld [vmem:[%s320 + $0xbc] sm:$0xf]
        %v378 = vld [vmem:[%s320 + $0xc0] sm:$0xf]
        %v379 = vld [vmem:[%s320 + $0xc4] sm:$0xf]
        %v380 = vld [vmem:[%s320 + $0xc8] sm:$0xf]
        %v381 = vld [vmem:[%s320 + $0xcc] sm:$0xf]
        %v382 = vld [vmem:[%s320 + $0xd0] sm:$0xf]
        %v383 = vld [vmem:[%s320 + $0xd4] sm:$0xf]
        %v384 = vld [vmem:[%s320 + $0xd8] sm:$0xf]
        %v385 = vld [vmem:[%s320 + $0xdc] sm:$0xf]
        %v386 = vld [vmem:[%s320 + $0xe0] sm:$0xf]
        %v387 = vld [vmem:[%s320 + $0xe4] sm:$0xf]
        %v388 = vld [vmem:[%s320 + $0xe8] sm:$0xf]
        %v389 = vld [vmem:[%s320 + $0xec] sm:$0xf]
        %v390 = vld [vmem:[%s320 + $0xf0] sm:$0xf]
        %v391 = vld [vmem:[%s320 + $0xf4] sm:$0xf]
        %v392 = vld [vmem:[%s320 + $0xf8] sm:$0xf]
        %v393 = vld [vmem:[%s320 + $0xfc] sm:$0xf]
        %v394 = vld [vmem:[%s320 + $0x100] sm:$0xf]
        %v395 = vld [vmem:[%s320 + $0x104] sm:$0xf]
        %v396 = vld [vmem:[%s320 + $0x108] sm:$0xf]
        %v397 = vld [vmem:[%s320 + $0x10c] sm:$0xf]
        %v398 = vld [vmem:[%s320 + $0x110] sm:$0xf]
        %v399 = vld [vmem:[%s320 + $0x114] sm:$0xf]
        %v400 = vld [vmem:[%s320 + $0x118] sm:$0xf]
        %v401 = vld [vmem:[%s320 + $0x11c] sm:$0xf]
        %v402 = vld [vmem:[%s320 + $0x120] sm:$0xf]
        %v403 = vld [vmem:[%s320 + $0x124] sm:$0xf]
        %v404 = vld [vmem:[%s320 + $0x128] sm:$0xf]
        %v405 = vld [vmem:[%s320 + $0x12c] sm:$0xf]
        %v406 = vld [vmem:[%s320 + $0x130] sm:$0xf]
        %v407 = vld [vmem:[%s320 + $0x134] sm:$0xf]
        %v408 = vld [vmem:[%s320 + $0x138] sm:$0xf]
        %v409 = vld [vmem:[%s320 + $0x13c] sm:$0xf]
        %v410 = vld [vmem:[%s320 + $0x140] sm:$0xf]
        %v411 = vld [vmem:[%s320 + $0x144] sm:$0xf]
        %v412 = vld [vmem:[%s320 + $0x148] sm:$0xf]
        %v413 = vld [vmem:[%s320 + $0x14c] sm:$0xf]
        %v414 = vld [vmem:[%s320 + $0x150] sm:$0xf]
        %v415 = vld [vmem:[%s320 + $0x154] sm:$0xf]
        %v416 = vld [vmem:[%s320 + $0x158] sm:$0xf]
        %v417 = vld [vmem:[%s320 + $0x15c] sm:$0xf]
        %v418 = vld [vmem:[%s320 + $0x160] sm:$0xf]
        %v419 = vld [vmem:[%s320 + $0x164] sm:$0xf]
        %v420 = vld [vmem:[%s320 + $0x168] sm:$0xf]
        %v421 = vld [vmem:[%s320 + $0x16c] sm:$0xf]
        %v422 = vld [vmem:[%s320 + $0x170] sm:$0xf]
        %v423 = vld [vmem:[%s320 + $0x174] sm:$0xf]
        %v424 = vld [vmem:[%s320 + $0x178] sm:$0xf]
        %v425 = vld [vmem:[%s320 + $0x17c] sm:$0xf]
        %v426 = vld [vmem:[%s320 + $0x180] sm:$0xf]
        %v427 = vld [vmem:[%s320 + $0x184] sm:$0xf]
        %v428 = vld [vmem:[%s320 + $0x188] sm:$0xf]
        %v429 = vld [vmem:[%s320 + $0x18c] sm:$0xf]
        %v430 = vld [vmem:[%s320 + $0x190] sm:$0xf]
        %v431 = vld [vmem:[%s320 + $0x194] sm:$0xf]
        %v432 = vld [vmem:[%s320 + $0x198] sm:$0xf]
        %v433 = vld [vmem:[%s320 + $0x19c] sm:$0xf]
        %v434 = vld [vmem:[%s320 + $0x1a0] sm:$0xf]
        %v435 = vld [vmem:[%s320 + $0x1a4] sm:$0xf]
        %v436 = vld [vmem:[%s320 + $0x1a8] sm:$0xf]
        %v437 = vld [vmem:[%s320 + $0x1ac] sm:$0xf]
        %v438 = vld [vmem:[%s320 + $0x1b0] sm:$0xf]
        %v439 = vld [vmem:[%s320 + $0x1b4] sm:$0xf]
        %v440 = vld [vmem:[%s320 + $0x1b8] sm:$0xf]
        %v441 = vld [vmem:[%s320 + $0x1bc] sm:$0xf]
        %v442 = vld [vmem:[%s320 + $0x1c0] sm:$0xf]
        %v443 = vld [vmem:[%s320 + $0x1c4] sm:$0xf]
        %v444 = vld [vmem:[%s320 + $0x1c8] sm:$0xf]
        %v445 = vld [vmem:[%s320 + $0x1cc] sm:$0xf]
        %v446 = vld [vmem:[%s320 + $0x1d0] sm:$0xf]
        %v447 = vld [vmem:[%s320 + $0x1d4] sm:$0xf]
        %v448 = vld [vmem:[%s320 + $0x1d8] sm:$0xf]
        %v449 = vld [vmem:[%s320 + $0x1dc] sm:$0xf]
        %v450 = vld [vmem:[%s320 + $0x1e0] sm:$0xf]
        %v451 = vld [vmem:[%s320 + $0x1e4] sm:$0xf]
        %v452 = vld [vmem:[%s320 + $0x1e8] sm:$0xf]
        %v453 = vld [vmem:[%s320 + $0x1ec] sm:$0xf]
        %v454 = vld [vmem:[%s320 + $0x1f0] sm:$0xf]
        %v455 = vld [vmem:[%s320 + $0x1f4] sm:$0xf]
        %v456 = vld [vmem:[%s320 + $0x1f8] sm:$0xf]
        %v457 = vld [vmem:[%s320 + $0x1fc] sm:$0xf]
        %v458 = vld [vmem:[%s2] sm:$0xf]
        %v459 = vld [vmem:[%s2 + $0x4] sm:$0xf]
        %v460 = vld [vmem:[%s3] sm:$0x1]
        %v462 = vlaneseq
        %v463 = vshrl.u32 %v462, 7
        %v464 = vsub.s32 0, %v463
        %v465 = vrot.slane %v460, %v464
        %v595 = vunpack.c.l.b16 %v330
        %v596 = vunpack.c.l.b16 %v331
        %v597 = vunpack.c.l.b16 %v332
        %v598 = vunpack.c.l.b16 %v333
        %v599 = vunpack.c.l.b16 %v334
        %v600 = vunpack.c.l.b16 %v335
        %v601 = vunpack.c.l.b16 %v336
        %v602 = vunpack.c.l.b16 %v337
        %v603 = vunpack.c.l.b16 %v338
        %v604 = vunpack.c.l.b16 %v339
        %v605 = vunpack.c.l.b16 %v340
        %v606 = vunpack.c.l.b16 %v341
        %v607 = vunpack.c.l.b16 %v342
        %v608 = vunpack.c.l.b16 %v343
        %v609 = vunpack.c.l.b16 %v344
        %v610 = vunpack.c.l.b16 %v345
        %v611 = vunpack.c.l.b16 %v346
        %v612 = vunpack.c.l.b16 %v347
        %v613 = vunpack.c.l.b16 %v348
        %v614 = vunpack.c.l.b16 %v349
        %v615 = vunpack.c.l.b16 %v350
        %v616 = vunpack.c.l.b16 %v351
        %v617 = vunpack.c.l.b16 %v352
        %v618 = vunpack.c.l.b16 %v353
        %v619 = vunpack.c.l.b16 %v354
        %v620 = vunpack.c.l.b16 %v355
        %v621 = vunpack.c.l.b16 %v356
        %v622 = vunpack.c.l.b16 %v357
        %v623 = vunpack.c.l.b16 %v358
        %v624 = vunpack.c.l.b16 %v359
        %v625 = vunpack.c.l.b16 %v360
        %v626 = vunpack.c.l.b16 %v361
        %v627 = vunpack.c.l.b16 %v362
        %v628 = vunpack.c.l.b16 %v363
        %v629 = vunpack.c.l.b16 %v364
        %v630 = vunpack.c.l.b16 %v365
        %v631 = vunpack.c.l.b16 %v366
        %v632 = vunpack.c.l.b16 %v367
        %v633 = vunpack.c.l.b16 %v368
        %v634 = vunpack.c.l.b16 %v369
        %v635 = vunpack.c.l.b16 %v370
        %v636 = vunpack.c.l.b16 %v371
        %v637 = vunpack.c.l.b16 %v372
        %v638 = vunpack.c.l.b16 %v373
        %v639 = vunpack.c.l.b16 %v374
        %v640 = vunpack.c.l.b16 %v375
        %v641 = vunpack.c.l.b16 %v376
        %v642 = vunpack.c.l.b16 %v377
        %v643 = vunpack.c.l.b16 %v378
        %v644 = vunpack.c.l.b16 %v379
        %v645 = vunpack.c.l.b16 %v380
        %v646 = vunpack.c.l.b16 %v381
        %v647 = vunpack.c.l.b16 %v382
        %v648 = vunpack.c.l.b16 %v383
        %v649 = vunpack.c.l.b16 %v384
        %v650 = vunpack.c.l.b16 %v385
        %v651 = vunpack.c.l.b16 %v386
        %v652 = vunpack.c.l.b16 %v387
        %v653 = vunpack.c.l.b16 %v388
        %v654 = vunpack.c.l.b16 %v389
        %v655 = vunpack.c.l.b16 %v390
        %v656 = vunpack.c.l.b16 %v391
        %v657 = vunpack.c.l.b16 %v392
        %v658 = vunpack.c.l.b16 %v393
        %v659 = vunpack.c.l.b16 %v394
        %v660 = vunpack.c.l.b16 %v395
        %v661 = vunpack.c.l.b16 %v396
        %v662 = vunpack.c.l.b16 %v397
        %v663 = vunpack.c.l.b16 %v398
        %v664 = vunpack.c.l.b16 %v399
        %v665 = vunpack.c.l.b16 %v400
        %v666 = vunpack.c.l.b16 %v401
        %v667 = vunpack.c.l.b16 %v402
        %v668 = vunpack.c.l.b16 %v403
        %v669 = vunpack.c.l.b16 %v404
        %v670 = vunpack.c.l.b16 %v405
        %v671 = vunpack.c.l.b16 %v406
        %v672 = vunpack.c.l.b16 %v407
        %v673 = vunpack.c.l.b16 %v408
        %v674 = vunpack.c.l.b16 %v409
        %v675 = vunpack.c.l.b16 %v410
        %v676 = vunpack.c.l.b16 %v411
        %v677 = vunpack.c.l.b16 %v412
        %v678 = vunpack.c.l.b16 %v413
        %v679 = vunpack.c.l.b16 %v414
        %v680 = vunpack.c.l.b16 %v415
        %v681 = vunpack.c.l.b16 %v416
        %v682 = vunpack.c.l.b16 %v417
        %v683 = vunpack.c.l.b16 %v418
        %v684 = vunpack.c.l.b16 %v419
        %v685 = vunpack.c.l.b16 %v420
        %v686 = vunpack.c.l.b16 %v421
        %v687 = vunpack.c.l.b16 %v422
        %v688 = vunpack.c.l.b16 %v423
        %v689 = vunpack.c.l.b16 %v424
        %v690 = vunpack.c.l.b16 %v425
        %v691 = vunpack.c.l.b16 %v426
        %v692 = vunpack.c.l.b16 %v427
        %v693 = vunpack.c.l.b16 %v428
        %v694 = vunpack.c.l.b16 %v429
        %v695 = vunpack.c.l.b16 %v430
        %v696 = vunpack.c.l.b16 %v431
        %v697 = vunpack.c.l.b16 %v432
        %v698 = vunpack.c.l.b16 %v433
        %v699 = vunpack.c.l.b16 %v434
        %v700 = vunpack.c.l.b16 %v435
        %v701 = vunpack.c.l.b16 %v436
        %v702 = vunpack.c.l.b16 %v437
        %v703 = vunpack.c.l.b16 %v438
        %v704 = vunpack.c.l.b16 %v439
        %v705 = vunpack.c.l.b16 %v440
        %v706 = vunpack.c.l.b16 %v441
        %v707 = vunpack.c.l.b16 %v442
        %v708 = vunpack.c.l.b16 %v443
        %v709 = vunpack.c.l.b16 %v444
        %v710 = vunpack.c.l.b16 %v445
        %v711 = vunpack.c.l.b16 %v446
        %v712 = vunpack.c.l.b16 %v447
        %v713 = vunpack.c.l.b16 %v448
        %v714 = vunpack.c.l.b16 %v449
        %v715 = vunpack.c.l.b16 %v450
        %v716 = vunpack.c.l.b16 %v451
        %v717 = vunpack.c.l.b16 %v452
        %v718 = vunpack.c.l.b16 %v453
        %v719 = vunpack.c.l.b16 %v454
        %v720 = vunpack.c.l.b16 %v455
        %v721 = vunpack.c.l.b16 %v456
        %v722 = vunpack.c.l.b16 %v457
        %v723 = vpack.c.b16 %v596, %v595
        %v724 = vpack.c.b16 %v598, %v597
        %v725 = vpack.c.b16 %v600, %v599
        %v726 = vpack.c.b16 %v602, %v601
        %v727 = vpack.c.b16 %v604, %v603
        %v728 = vpack.c.b16 %v606, %v605
        %v729 = vpack.c.b16 %v608, %v607
        %v730 = vpack.c.b16 %v610, %v609
        %v731 = vpack.c.b16 %v612, %v611
        %v732 = vpack.c.b16 %v614, %v613
        %v733 = vpack.c.b16 %v616, %v615
        %v734 = vpack.c.b16 %v618, %v617
        %v735 = vpack.c.b16 %v620, %v619
        %v736 = vpack.c.b16 %v622, %v621
        %v737 = vpack.c.b16 %v624, %v623
        %v738 = vpack.c.b16 %v626, %v625
        %v739 = vpack.c.b16 %v628, %v627
        %v740 = vpack.c.b16 %v630, %v629
        %v741 = vpack.c.b16 %v632, %v631
        %v742 = vpack.c.b16 %v634, %v633
        %v743 = vpack.c.b16 %v636, %v635
        %v744 = vpack.c.b16 %v638, %v637
        %v745 = vpack.c.b16 %v640, %v639
        %v746 = vpack.c.b16 %v642, %v641
        %v747 = vpack.c.b16 %v644, %v643
        %v748 = vpack.c.b16 %v646, %v645
        %v749 = vpack.c.b16 %v648, %v647
        %v750 = vpack.c.b16 %v650, %v649
        %v751 = vpack.c.b16 %v652, %v651
        %v752 = vpack.c.b16 %v654, %v653
        %v753 = vpack.c.b16 %v656, %v655
        %v754 = vpack.c.b16 %v658, %v657
        %v755 = vpack.c.b16 %v660, %v659
        %v756 = vpack.c.b16 %v662, %v661
        %v757 = vpack.c.b16 %v664, %v663
        %v758 = vpack.c.b16 %v666, %v665
        %v759 = vpack.c.b16 %v668, %v667
        %v760 = vpack.c.b16 %v670, %v669
        %v761 = vpack.c.b16 %v672, %v671
        %v762 = vpack.c.b16 %v674, %v673
        %v763 = vpack.c.b16 %v676, %v675
        %v764 = vpack.c.b16 %v678, %v677
        %v765 = vpack.c.b16 %v680, %v679
        %v766 = vpack.c.b16 %v682, %v681
        %v767 = vpack.c.b16 %v684, %v683
        %v768 = vpack.c.b16 %v686, %v685
        %v769 = vpack.c.b16 %v688, %v687
        %v770 = vpack.c.b16 %v690, %v689
        %v771 = vpack.c.b16 %v692, %v691
        %v772 = vpack.c.b16 %v694, %v693
        %v773 = vpack.c.b16 %v696, %v695
        %v774 = vpack.c.b16 %v698, %v697
        %v775 = vpack.c.b16 %v700, %v699
        %v776 = vpack.c.b16 %v702, %v701
        %v777 = vpack.c.b16 %v704, %v703
        %v778 = vpack.c.b16 %v706, %v705
        %v779 = vpack.c.b16 %v708, %v707
        %v780 = vpack.c.b16 %v710, %v709
        %v781 = vpack.c.b16 %v712, %v711
        %v782 = vpack.c.b16 %v714, %v713
        %v783 = vpack.c.b16 %v716, %v715
        %v784 = vpack.c.b16 %v718, %v717
        %v785 = vpack.c.b16 %v720, %v719
        %v786 = vpack.c.b16 %v722, %v721
        %v789 = vunpack.c.l.b16 %v458
        %v790 = vunpack.c.l.b16 %v459
        %v791 = vpack.c.b16 %v790, %v789
        %vm793 = vcmask 130048
        %v795 = vsel %vm793, %v723, 0
        %v798 = vsel %vm793, %v724, 0
        %v801 = vsel %vm793, %v725, 0
        %v804 = vsel %vm793, %v726, 0
        %v807 = vsel %vm793, %v727, 0
        %v810 = vsel %vm793, %v728, 0
        %v813 = vsel %vm793, %v729, 0
        %v816 = vsel %vm793, %v730, 0
        %v819 = vsel %vm793, %v731, 0
        %v822 = vsel %vm793, %v732, 0
        %v825 = vsel %vm793, %v733, 0
        %v828 = vsel %vm793, %v734, 0
        %v831 = vsel %vm793, %v735, 0
        %v834 = vsel %vm793, %v736, 0
        %v837 = vsel %vm793, %v737, 0
        %v840 = vsel %vm793, %v738, 0
        %v843 = vsel %vm793, %v739, 0
        %v846 = vsel %vm793, %v740, 0
        %v849 = vsel %vm793, %v741, 0
        %v852 = vsel %vm793, %v742, 0
        %v855 = vsel %vm793, %v743, 0
        %v858 = vsel %vm793, %v744, 0
        %v861 = vsel %vm793, %v745, 0
        %v864 = vsel %vm793, %v746, 0
        %v867 = vsel %vm793, %v747, 0
        %v870 = vsel %vm793, %v748, 0
        %v873 = vsel %vm793, %v749, 0
        %v876 = vsel %vm793, %v750, 0
        %v879 = vsel %vm793, %v751, 0
        %v882 = vsel %vm793, %v752, 0
        %v885 = vsel %vm793, %v753, 0
        %v888 = vsel %vm793, %v754, 0
        %v891 = vsel %vm793, %v755, 0
        %v894 = vsel %vm793, %v756, 0
        %v897 = vsel %vm793, %v757, 0
        %v900 = vsel %vm793, %v758, 0
        %v903 = vsel %vm793, %v759, 0
        %v906 = vsel %vm793, %v760, 0
        %v909 = vsel %vm793, %v761, 0
        %v912 = vsel %vm793, %v762, 0
        %v915 = vsel %vm793, %v763, 0
        %v918 = vsel %vm793, %v764, 0
        %v921 = vsel %vm793, %v765, 0
        %v924 = vsel %vm793, %v766, 0
        %v927 = vsel %vm793, %v767, 0
        %v930 = vsel %vm793, %v768, 0
        %v933 = vsel %vm793, %v769, 0
        %v936 = vsel %vm793, %v770, 0
        %v939 = vsel %vm793, %v771, 0
        %v942 = vsel %vm793, %v772, 0
        %v945 = vsel %vm793, %v773, 0
        %v948 = vsel %vm793, %v774, 0
        %v951 = vsel %vm793, %v775, 0
        %v954 = vsel %vm793, %v776, 0
        %v957 = vsel %vm793, %v777, 0
        %v960 = vsel %vm793, %v778, 0
        %v963 = vsel %vm793, %v779, 0
        %v966 = vsel %vm793, %v780, 0
        %v969 = vsel %vm793, %v781, 0
        %v972 = vsel %vm793, %v782, 0
        %v975 = vsel %vm793, %v783, 0
        %v978 = vsel %vm793, %v784, 0
        %v981 = vsel %vm793, %v785, 0
        %v984 = vsel %vm793, %v786, 0
        %986 = vmatprep.subr.bf16.mxu0 0
        %987 = vmatpush1.bf16.msra.mxu0 0
        %988 = vmatprep.subr.bf16.mxu0 0
        %989 = vmatpush1.bf16.msra.mxu0 0
        %990 = vmatprep.subr.bf16.mxu0 0
        %991 = vmatpush1.bf16.msra.mxu0 0
        %992 = vmatprep.subr.bf16.mxu0 0
        %993 = vmatpush1.bf16.msra.mxu0 0
        %994 = vmatprep.subr.bf16.mxu0 0
        %995 = vmatpush1.bf16.msra.mxu0 0
        %996 = vmatprep.subr.bf16.mxu0 0
        %997 = vmatpush1.bf16.msra.mxu0 0
        %998 = vmatprep.subr.bf16.mxu0 0
        %999 = vmatpush1.bf16.msra.mxu0 0
        %1000 = vmatprep.subr.bf16.mxu0 0
        %1001 = vmatpush1.bf16.msra.mxu0 %v791
        %1002 = vmatprep.subr.bf16.mxu0 0
        %1003 = vmatpush2.bf16.msra.mxu0 0
        %1004 = vmatprep.subr.bf16.mxu0 0
        %1005 = vmatpush2.bf16.msra.mxu0 0
        %1006 = vmatprep.subr.bf16.mxu0 0
        %1007 = vmatpush2.bf16.msra.mxu0 0
        %1008 = vmatprep.subr.bf16.mxu0 0
        %1009 = vmatpush2.bf16.msra.mxu0 0
        %1010 = vmatprep.subr.bf16.mxu0 0
        %1011 = vmatpush2.bf16.msra.mxu0 0
        %1012 = vmatprep.subr.bf16.mxu0 0
        %1013 = vmatpush2.bf16.msra.mxu0 0
        %1014 = vmatprep.subr.bf16.mxu0 0
        %1015 = vmatpush2.bf16.msra.mxu0 0
        %1016 = vmatprep.subr.bf16.mxu0 0
        %1017 = vmatpush2.bf16.msra.mxu0 0
        %1018 = vmatprep.mubr.bf16.mxu0 0
        %1019 = vmatmul.mubr.bf16.gmra.mxu0 %v795
        %v1020 = vpop.f32.mrf.mxu0
        %v1021 = vadd.f32 %v465, %v1020
        %v1022 = vpop.f32.mrf.mxu0
        %v1023 = vpop.f32.mrf.mxu0
        %v1024 = vadd.f32 %v465, %v1023
        %v1025 = vpop.f32.mrf.mxu0
        %1026 = vmatprep.mubr.bf16.mxu0 0
        %1027 = vmatmul.mubr.bf16.gmra.mxu0 %v798
        %v1028 = vpop.f32.mrf.mxu0
        %v1029 = vadd.f32 %v465, %v1028
        %v1030 = vpop.f32.mrf.mxu0
        %v1031 = vpop.f32.mrf.mxu0
        %v1032 = vadd.f32 %v465, %v1031
        %v1033 = vpop.f32.mrf.mxu0
        %1034 = vmatprep.mubr.bf16.mxu0 0
        %1035 = vmatmul.mubr.bf16.gmra.mxu0 %v801
        %v1036 = vpop.f32.mrf.mxu0
        %v1037 = vadd.f32 %v465, %v1036
        %v1038 = vpop.f32.mrf.mxu0
        %v1039 = vpop.f32.mrf.mxu0
        %v1040 = vadd.f32 %v465, %v1039
        %v1041 = vpop.f32.mrf.mxu0
        %1042 = vmatprep.mubr.bf16.mxu0 0
        %1043 = vmatmul.mubr.bf16.gmra.mxu0 %v804
        %v1044 = vpop.f32.mrf.mxu0
        %v1045 = vadd.f32 %v465, %v1044
        %v1046 = vpop.f32.mrf.mxu0
        %v1047 = vpop.f32.mrf.mxu0
        %v1048 = vadd.f32 %v465, %v1047
        %v1049 = vpop.f32.mrf.mxu0
        %1050 = vmatprep.mubr.bf16.mxu0 0
        %1051 = vmatmul.mubr.bf16.gmra.mxu0 %v807
        %v1052 = vpop.f32.mrf.mxu0
        %v1053 = vadd.f32 %v465, %v1052
        %v1054 = vpop.f32.mrf.mxu0
        %v1055 = vpop.f32.mrf.mxu0
        %v1056 = vadd.f32 %v465, %v1055
        %v1057 = vpop.f32.mrf.mxu0
        %1058 = vmatprep.mubr.bf16.mxu0 0
        %1059 = vmatmul.mubr.bf16.gmra.mxu0 %v810
        %v1060 = vpop.f32.mrf.mxu0
        %v1061 = vadd.f32 %v465, %v1060
        %v1062 = vpop.f32.mrf.mxu0
        %v1063 = vpop.f32.mrf.mxu0
        %v1064 = vadd.f32 %v465, %v1063
        %v1065 = vpop.f32.mrf.mxu0
        %1066 = vmatprep.mubr.bf16.mxu0 0
        %1067 = vmatmul.mubr.bf16.gmra.mxu0 %v813
        %v1068 = vpop.f32.mrf.mxu0
        %v1069 = vadd.f32 %v465, %v1068
        %v1070 = vpop.f32.mrf.mxu0
        %v1071 = vpop.f32.mrf.mxu0
        %v1072 = vadd.f32 %v465, %v1071
        %v1073 = vpop.f32.mrf.mxu0
        %1074 = vmatprep.mubr.bf16.mxu0 0
        %1075 = vmatmul.mubr.bf16.gmra.mxu0 %v816
        %v1076 = vpop.f32.mrf.mxu0
        %v1077 = vadd.f32 %v465, %v1076
        %v1078 = vpop.f32.mrf.mxu0
        %v1079 = vpop.f32.mrf.mxu0
        %v1080 = vadd.f32 %v465, %v1079
        %v1081 = vpop.f32.mrf.mxu0
        %1082 = vmatprep.mubr.bf16.mxu0 0
        %1083 = vmatmul.mubr.bf16.gmra.mxu0 %v819
        %v1084 = vpop.f32.mrf.mxu0
        %v1085 = vadd.f32 %v465, %v1084
        %v1086 = vpop.f32.mrf.mxu0
        %v1087 = vpop.f32.mrf.mxu0
        %v1088 = vadd.f32 %v465, %v1087
        %v1089 = vpop.f32.mrf.mxu0
        %1090 = vmatprep.mubr.bf16.mxu0 0
        %1091 = vmatmul.mubr.bf16.gmra.mxu0 %v822
        %v1092 = vpop.f32.mrf.mxu0
        %v1093 = vadd.f32 %v465, %v1092
        %v1094 = vpop.f32.mrf.mxu0
        %v1095 = vpop.f32.mrf.mxu0
        %v1096 = vadd.f32 %v465, %v1095
        %v1097 = vpop.f32.mrf.mxu0
        %1098 = vmatprep.mubr.bf16.mxu0 0
        %1099 = vmatmul.mubr.bf16.gmra.mxu0 %v825
        %v1100 = vpop.f32.mrf.mxu0
        %v1101 = vadd.f32 %v465, %v1100
        %v1102 = vpop.f32.mrf.mxu0
        %v1103 = vpop.f32.mrf.mxu0
        %v1104 = vadd.f32 %v465, %v1103
        %v1105 = vpop.f32.mrf.mxu0
        %1106 = vmatprep.mubr.bf16.mxu0 0
        %1107 = vmatmul.mubr.bf16.gmra.mxu0 %v828
        %v1108 = vpop.f32.mrf.mxu0
        %v1109 = vadd.f32 %v465, %v1108
        %v1110 = vpop.f32.mrf.mxu0
        %v1111 = vpop.f32.mrf.mxu0
        %v1112 = vadd.f32 %v465, %v1111
        %v1113 = vpop.f32.mrf.mxu0
        %1114 = vmatprep.mubr.bf16.mxu0 0
        %1115 = vmatmul.mubr.bf16.gmra.mxu0 %v831
        %v1116 = vpop.f32.mrf.mxu0
        %v1117 = vadd.f32 %v465, %v1116
        %v1118 = vpop.f32.mrf.mxu0
        %v1119 = vpop.f32.mrf.mxu0
        %v1120 = vadd.f32 %v465, %v1119
        %v1121 = vpop.f32.mrf.mxu0
        %1122 = vmatprep.mubr.bf16.mxu0 0
        %1123 = vmatmul.mubr.bf16.gmra.mxu0 %v834
        %v1124 = vpop.f32.mrf.mxu0
        %v1125 = vadd.f32 %v465, %v1124
        %v1126 = vpop.f32.mrf.mxu0
        %v1127 = vpop.f32.mrf.mxu0
        %v1128 = vadd.f32 %v465, %v1127
        %v1129 = vpop.f32.mrf.mxu0
        %1130 = vmatprep.mubr.bf16.mxu0 0
        %1131 = vmatmul.mubr.bf16.gmra.mxu0 %v837
        %v1132 = vpop.f32.mrf.mxu0
        %v1133 = vadd.f32 %v465, %v1132
        %v1134 = vpop.f32.mrf.mxu0
        %v1135 = vpop.f32.mrf.mxu0
        %v1136 = vadd.f32 %v465, %v1135
        %v1137 = vpop.f32.mrf.mxu0
        %1138 = vmatprep.mubr.bf16.mxu0 0
        %1139 = vmatmul.mubr.bf16.gmra.mxu0 %v840
        %v1140 = vpop.f32.mrf.mxu0
        %v1141 = vadd.f32 %v465, %v1140
        %v1142 = vpop.f32.mrf.mxu0
        %v1143 = vpop.f32.mrf.mxu0
        %v1144 = vadd.f32 %v465, %v1143
        %v1145 = vpop.f32.mrf.mxu0
        %1146 = vmatprep.mubr.bf16.mxu0 0
        %1147 = vmatmul.mubr.bf16.gmra.mxu0 %v843
        %v1148 = vpop.f32.mrf.mxu0
        %v1149 = vadd.f32 %v465, %v1148
        %v1150 = vpop.f32.mrf.mxu0
        %v1151 = vpop.f32.mrf.mxu0
        %v1152 = vadd.f32 %v465, %v1151
        %v1153 = vpop.f32.mrf.mxu0
        %1154 = vmatprep.mubr.bf16.mxu0 0
        %1155 = vmatmul.mubr.bf16.gmra.mxu0 %v846
        %v1156 = vpop.f32.mrf.mxu0
        %v1157 = vadd.f32 %v465, %v1156
        %v1158 = vpop.f32.mrf.mxu0
        %v1159 = vpop.f32.mrf.mxu0
        %v1160 = vadd.f32 %v465, %v1159
        %v1161 = vpop.f32.mrf.mxu0
        %1162 = vmatprep.mubr.bf16.mxu0 0
        %1163 = vmatmul.mubr.bf16.gmra.mxu0 %v849
        %v1164 = vpop.f32.mrf.mxu0
        %v1165 = vadd.f32 %v465, %v1164
        %v1166 = vpop.f32.mrf.mxu0
        %v1167 = vpop.f32.mrf.mxu0
        %v1168 = vadd.f32 %v465, %v1167
        %v1169 = vpop.f32.mrf.mxu0
        %1170 = vmatprep.mubr.bf16.mxu0 0
        %1171 = vmatmul.mubr.bf16.gmra.mxu0 %v852
        %v1172 = vpop.f32.mrf.mxu0
        %v1173 = vadd.f32 %v465, %v1172
        %v1174 = vpop.f32.mrf.mxu0
        %v1175 = vpop.f32.mrf.mxu0
        %v1176 = vadd.f32 %v465, %v1175
        %v1177 = vpop.f32.mrf.mxu0
        %1178 = vmatprep.mubr.bf16.mxu0 0
        %1179 = vmatmul.mubr.bf16.gmra.mxu0 %v855
        %v1180 = vpop.f32.mrf.mxu0
        %v1181 = vadd.f32 %v465, %v1180
        %v1182 = vpop.f32.mrf.mxu0
        %v1183 = vpop.f32.mrf.mxu0
        %v1184 = vadd.f32 %v465, %v1183
        %v1185 = vpop.f32.mrf.mxu0
        %1186 = vmatprep.mubr.bf16.mxu0 0
        %1187 = vmatmul.mubr.bf16.gmra.mxu0 %v858
        %v1188 = vpop.f32.mrf.mxu0
        %v1189 = vadd.f32 %v465, %v1188
        %v1190 = vpop.f32.mrf.mxu0
        %v1191 = vpop.f32.mrf.mxu0
        %v1192 = vadd.f32 %v465, %v1191
        %v1193 = vpop.f32.mrf.mxu0
        %1194 = vmatprep.mubr.bf16.mxu0 0
        %1195 = vmatmul.mubr.bf16.gmra.mxu0 %v861
        %v1196 = vpop.f32.mrf.mxu0
        %v1197 = vadd.f32 %v465, %v1196
        %v1198 = vpop.f32.mrf.mxu0
        %v1199 = vpop.f32.mrf.mxu0
        %v1200 = vadd.f32 %v465, %v1199
        %v1201 = vpop.f32.mrf.mxu0
        %1202 = vmatprep.mubr.bf16.mxu0 0
        %1203 = vmatmul.mubr.bf16.gmra.mxu0 %v864
        %v1204 = vpop.f32.mrf.mxu0
        %v1205 = vadd.f32 %v465, %v1204
        %v1206 = vpop.f32.mrf.mxu0
        %v1207 = vpop.f32.mrf.mxu0
        %v1208 = vadd.f32 %v465, %v1207
        %v1209 = vpop.f32.mrf.mxu0
        %1210 = vmatprep.mubr.bf16.mxu0 0
        %1211 = vmatmul.mubr.bf16.gmra.mxu0 %v867
        %v1212 = vpop.f32.mrf.mxu0
        %v1213 = vadd.f32 %v465, %v1212
        %v1214 = vpop.f32.mrf.mxu0
        %v1215 = vpop.f32.mrf.mxu0
        %v1216 = vadd.f32 %v465, %v1215
        %v1217 = vpop.f32.mrf.mxu0
        %1218 = vmatprep.mubr.bf16.mxu0 0
        %1219 = vmatmul.mubr.bf16.gmra.mxu0 %v870
        %v1220 = vpop.f32.mrf.mxu0
        %v1221 = vadd.f32 %v465, %v1220
        %v1222 = vpop.f32.mrf.mxu0
        %v1223 = vpop.f32.mrf.mxu0
        %v1224 = vadd.f32 %v465, %v1223
        %v1225 = vpop.f32.mrf.mxu0
        %1226 = vmatprep.mubr.bf16.mxu0 0
        %1227 = vmatmul.mubr.bf16.gmra.mxu0 %v873
        %v1228 = vpop.f32.mrf.mxu0
        %v1229 = vadd.f32 %v465, %v1228
        %v1230 = vpop.f32.mrf.mxu0
        %v1231 = vpop.f32.mrf.mxu0
        %v1232 = vadd.f32 %v465, %v1231
        %v1233 = vpop.f32.mrf.mxu0
        %1234 = vmatprep.mubr.bf16.mxu0 0
        %1235 = vmatmul.mubr.bf16.gmra.mxu0 %v876
        %v1236 = vpop.f32.mrf.mxu0
        %v1237 = vadd.f32 %v465, %v1236
        %v1238 = vpop.f32.mrf.mxu0
        %v1239 = vpop.f32.mrf.mxu0
        %v1240 = vadd.f32 %v465, %v1239
        %v1241 = vpop.f32.mrf.mxu0
        %1242 = vmatprep.mubr.bf16.mxu0 0
        %1243 = vmatmul.mubr.bf16.gmra.mxu0 %v879
        %v1244 = vpop.f32.mrf.mxu0
        %v1245 = vadd.f32 %v465, %v1244
        %v1246 = vpop.f32.mrf.mxu0
        %v1247 = vpop.f32.mrf.mxu0
        %v1248 = vadd.f32 %v465, %v1247
        %v1249 = vpop.f32.mrf.mxu0
        %1250 = vmatprep.mubr.bf16.mxu0 0
        %1251 = vmatmul.mubr.bf16.gmra.mxu0 %v882
        %v1252 = vpop.f32.mrf.mxu0
        %v1253 = vadd.f32 %v465, %v1252
        %v1254 = vpop.f32.mrf.mxu0
        %v1255 = vpop.f32.mrf.mxu0
        %v1256 = vadd.f32 %v465, %v1255
        %v1257 = vpop.f32.mrf.mxu0
        %1258 = vmatprep.mubr.bf16.mxu0 0
        %1259 = vmatmul.mubr.bf16.gmra.mxu0 %v885
        %v1260 = vpop.f32.mrf.mxu0
        %v1261 = vadd.f32 %v465, %v1260
        %v1262 = vpop.f32.mrf.mxu0
        %v1263 = vpop.f32.mrf.mxu0
        %v1264 = vadd.f32 %v465, %v1263
        %v1265 = vpop.f32.mrf.mxu0
        %1266 = vmatprep.mubr.bf16.mxu0 0
        %1267 = vmatmul.mubr.bf16.gmra.mxu0 %v888
        %v1268 = vpop.f32.mrf.mxu0
        %v1269 = vadd.f32 %v465, %v1268
        %v1270 = vpop.f32.mrf.mxu0
        %v1271 = vpop.f32.mrf.mxu0
        %v1272 = vadd.f32 %v465, %v1271
        %v1273 = vpop.f32.mrf.mxu0
        %1274 = vmatprep.mubr.bf16.mxu0 0
        %1275 = vmatmul.mubr.bf16.gmra.mxu0 %v891
        %v1276 = vpop.f32.mrf.mxu0
        %v1277 = vadd.f32 %v465, %v1276
        %v1278 = vpop.f32.mrf.mxu0
        %v1279 = vpop.f32.mrf.mxu0
        %v1280 = vadd.f32 %v465, %v1279
        %v1281 = vpop.f32.mrf.mxu0
        %1282 = vmatprep.mubr.bf16.mxu0 0
        %1283 = vmatmul.mubr.bf16.gmra.mxu0 %v894
        %v1284 = vpop.f32.mrf.mxu0
        %v1285 = vadd.f32 %v465, %v1284
        %v1286 = vpop.f32.mrf.mxu0
        %v1287 = vpop.f32.mrf.mxu0
        %v1288 = vadd.f32 %v465, %v1287
        %v1289 = vpop.f32.mrf.mxu0
        %1290 = vmatprep.mubr.bf16.mxu0 0
        %1291 = vmatmul.mubr.bf16.gmra.mxu0 %v897
        %v1292 = vpop.f32.mrf.mxu0
        %v1293 = vadd.f32 %v465, %v1292
        %v1294 = vpop.f32.mrf.mxu0
        %v1295 = vpop.f32.mrf.mxu0
        %v1296 = vadd.f32 %v465, %v1295
        %v1297 = vpop.f32.mrf.mxu0
        %1298 = vmatprep.mubr.bf16.mxu0 0
        %1299 = vmatmul.mubr.bf16.gmra.mxu0 %v900
        %v1300 = vpop.f32.mrf.mxu0
        %v1301 = vadd.f32 %v465, %v1300
        %v1302 = vpop.f32.mrf.mxu0
        %v1303 = vpop.f32.mrf.mxu0
        %v1304 = vadd.f32 %v465, %v1303
        %v1305 = vpop.f32.mrf.mxu0
        %1306 = vmatprep.mubr.bf16.mxu0 0
        %1307 = vmatmul.mubr.bf16.gmra.mxu0 %v903
        %v1308 = vpop.f32.mrf.mxu0
        %v1309 = vadd.f32 %v465, %v1308
        %v1310 = vpop.f32.mrf.mxu0
        %v1311 = vpop.f32.mrf.mxu0
        %v1312 = vadd.f32 %v465, %v1311
        %v1313 = vpop.f32.mrf.mxu0
        %1314 = vmatprep.mubr.bf16.mxu0 0
        %1315 = vmatmul.mubr.bf16.gmra.mxu0 %v906
        %v1316 = vpop.f32.mrf.mxu0
        %v1317 = vadd.f32 %v465, %v1316
        %v1318 = vpop.f32.mrf.mxu0
        %v1319 = vpop.f32.mrf.mxu0
        %v1320 = vadd.f32 %v465, %v1319
        %v1321 = vpop.f32.mrf.mxu0
        %1322 = vmatprep.mubr.bf16.mxu0 0
        %1323 = vmatmul.mubr.bf16.gmra.mxu0 %v909
        %v1324 = vpop.f32.mrf.mxu0
        %v1325 = vadd.f32 %v465, %v1324
        %v1326 = vpop.f32.mrf.mxu0
        %v1327 = vpop.f32.mrf.mxu0
        %v1328 = vadd.f32 %v465, %v1327
        %v1329 = vpop.f32.mrf.mxu0
        %1330 = vmatprep.mubr.bf16.mxu0 0
        %1331 = vmatmul.mubr.bf16.gmra.mxu0 %v912
        %v1332 = vpop.f32.mrf.mxu0
        %v1333 = vadd.f32 %v465, %v1332
        %v1334 = vpop.f32.mrf.mxu0
        %v1335 = vpop.f32.mrf.mxu0
        %v1336 = vadd.f32 %v465, %v1335
        %v1337 = vpop.f32.mrf.mxu0
        %1338 = vmatprep.mubr.bf16.mxu0 0
        %1339 = vmatmul.mubr.bf16.gmra.mxu0 %v915
        %v1340 = vpop.f32.mrf.mxu0
        %v1341 = vadd.f32 %v465, %v1340
        %v1342 = vpop.f32.mrf.mxu0
        %v1343 = vpop.f32.mrf.mxu0
        %v1344 = vadd.f32 %v465, %v1343
        %v1345 = vpop.f32.mrf.mxu0
        %1346 = vmatprep.mubr.bf16.mxu0 0
        %1347 = vmatmul.mubr.bf16.gmra.mxu0 %v918
        %v1348 = vpop.f32.mrf.mxu0
        %v1349 = vadd.f32 %v465, %v1348
        %v1350 = vpop.f32.mrf.mxu0
        %v1351 = vpop.f32.mrf.mxu0
        %v1352 = vadd.f32 %v465, %v1351
        %v1353 = vpop.f32.mrf.mxu0
        %1354 = vmatprep.mubr.bf16.mxu0 0
        %1355 = vmatmul.mubr.bf16.gmra.mxu0 %v921
        %v1356 = vpop.f32.mrf.mxu0
        %v1357 = vadd.f32 %v465, %v1356
        %v1358 = vpop.f32.mrf.mxu0
        %v1359 = vpop.f32.mrf.mxu0
        %v1360 = vadd.f32 %v465, %v1359
        %v1361 = vpop.f32.mrf.mxu0
        %1362 = vmatprep.mubr.bf16.mxu0 0
        %1363 = vmatmul.mubr.bf16.gmra.mxu0 %v924
        %v1364 = vpop.f32.mrf.mxu0
        %v1365 = vadd.f32 %v465, %v1364
        %v1366 = vpop.f32.mrf.mxu0
        %v1367 = vpop.f32.mrf.mxu0
        %v1368 = vadd.f32 %v465, %v1367
        %v1369 = vpop.f32.mrf.mxu0
        %1370 = vmatprep.mubr.bf16.mxu0 0
        %1371 = vmatmul.mubr.bf16.gmra.mxu0 %v927
        %v1372 = vpop.f32.mrf.mxu0
        %v1373 = vadd.f32 %v465, %v1372
        %v1374 = vpop.f32.mrf.mxu0
        %v1375 = vpop.f32.mrf.mxu0
        %v1376 = vadd.f32 %v465, %v1375
        %v1377 = vpop.f32.mrf.mxu0
        %1378 = vmatprep.mubr.bf16.mxu0 0
        %1379 = vmatmul.mubr.bf16.gmra.mxu0 %v930
        %v1380 = vpop.f32.mrf.mxu0
        %v1381 = vadd.f32 %v465, %v1380
        %v1382 = vpop.f32.mrf.mxu0
        %v1383 = vpop.f32.mrf.mxu0
        %v1384 = vadd.f32 %v465, %v1383
        %v1385 = vpop.f32.mrf.mxu0
        %1386 = vmatprep.mubr.bf16.mxu0 0
        %1387 = vmatmul.mubr.bf16.gmra.mxu0 %v933
        %v1388 = vpop.f32.mrf.mxu0
        %v1389 = vadd.f32 %v465, %v1388
        %v1390 = vpop.f32.mrf.mxu0
        %v1391 = vpop.f32.mrf.mxu0
        %v1392 = vadd.f32 %v465, %v1391
        %v1393 = vpop.f32.mrf.mxu0
        %1394 = vmatprep.mubr.bf16.mxu0 0
        %1395 = vmatmul.mubr.bf16.gmra.mxu0 %v936
        %v1396 = vpop.f32.mrf.mxu0
        %v1397 = vadd.f32 %v465, %v1396
        %v1398 = vpop.f32.mrf.mxu0
        %v1399 = vpop.f32.mrf.mxu0
        %v1400 = vadd.f32 %v465, %v1399
        %v1401 = vpop.f32.mrf.mxu0
        %1402 = vmatprep.mubr.bf16.mxu0 0
        %1403 = vmatmul.mubr.bf16.gmra.mxu0 %v939
        %v1404 = vpop.f32.mrf.mxu0
        %v1405 = vadd.f32 %v465, %v1404
        %v1406 = vpop.f32.mrf.mxu0
        %v1407 = vpop.f32.mrf.mxu0
        %v1408 = vadd.f32 %v465, %v1407
        %v1409 = vpop.f32.mrf.mxu0
        %1410 = vmatprep.mubr.bf16.mxu0 0
        %1411 = vmatmul.mubr.bf16.gmra.mxu0 %v942
        %v1412 = vpop.f32.mrf.mxu0
        %v1413 = vadd.f32 %v465, %v1412
        %v1414 = vpop.f32.mrf.mxu0
        %v1415 = vpop.f32.mrf.mxu0
        %v1416 = vadd.f32 %v465, %v1415
        %v1417 = vpop.f32.mrf.mxu0
        %1418 = vmatprep.mubr.bf16.mxu0 0
        %1419 = vmatmul.mubr.bf16.gmra.mxu0 %v945
        %v1420 = vpop.f32.mrf.mxu0
        %v1421 = vadd.f32 %v465, %v1420
        %v1422 = vpop.f32.mrf.mxu0
        %v1423 = vpop.f32.mrf.mxu0
        %v1424 = vadd.f32 %v465, %v1423
        %v1425 = vpop.f32.mrf.mxu0
        %1426 = vmatprep.mubr.bf16.mxu0 0
        %1427 = vmatmul.mubr.bf16.gmra.mxu0 %v948
        %v1428 = vpop.f32.mrf.mxu0
        %v1429 = vadd.f32 %v465, %v1428
        %v1430 = vpop.f32.mrf.mxu0
        %v1431 = vpop.f32.mrf.mxu0
        %v1432 = vadd.f32 %v465, %v1431
        %v1433 = vpop.f32.mrf.mxu0
        %1434 = vmatprep.mubr.bf16.mxu0 0
        %1435 = vmatmul.mubr.bf16.gmra.mxu0 %v951
        %v1436 = vpop.f32.mrf.mxu0
        %v1437 = vadd.f32 %v465, %v1436
        %v1438 = vpop.f32.mrf.mxu0
        %v1439 = vpop.f32.mrf.mxu0
        %v1440 = vadd.f32 %v465, %v1439
        %v1441 = vpop.f32.mrf.mxu0
        %1442 = vmatprep.mubr.bf16.mxu0 0
        %1443 = vmatmul.mubr.bf16.gmra.mxu0 %v954
        %v1444 = vpop.f32.mrf.mxu0
        %v1445 = vadd.f32 %v465, %v1444
        %v1446 = vpop.f32.mrf.mxu0
        %v1447 = vpop.f32.mrf.mxu0
        %v1448 = vadd.f32 %v465, %v1447
        %v1449 = vpop.f32.mrf.mxu0
        %1450 = vmatprep.mubr.bf16.mxu0 0
        %1451 = vmatmul.mubr.bf16.gmra.mxu0 %v957
        %v1452 = vpop.f32.mrf.mxu0
        %v1453 = vadd.f32 %v465, %v1452
        %v1454 = vpop.f32.mrf.mxu0
        %v1455 = vpop.f32.mrf.mxu0
        %v1456 = vadd.f32 %v465, %v1455
        %v1457 = vpop.f32.mrf.mxu0
        %1458 = vmatprep.mubr.bf16.mxu0 0
        %1459 = vmatmul.mubr.bf16.gmra.mxu0 %v960
        %v1460 = vpop.f32.mrf.mxu0
        %v1461 = vadd.f32 %v465, %v1460
        %v1462 = vpop.f32.mrf.mxu0
        %v1463 = vpop.f32.mrf.mxu0
        %v1464 = vadd.f32 %v465, %v1463
        %v1465 = vpop.f32.mrf.mxu0
        %1466 = vmatprep.mubr.bf16.mxu0 0
        %1467 = vmatmul.mubr.bf16.gmra.mxu0 %v963
        %v1468 = vpop.f32.mrf.mxu0
        %v1469 = vadd.f32 %v465, %v1468
        %v1470 = vpop.f32.mrf.mxu0
        %v1471 = vpop.f32.mrf.mxu0
        %v1472 = vadd.f32 %v465, %v1471
        %v1473 = vpop.f32.mrf.mxu0
        %1474 = vmatprep.mubr.bf16.mxu0 0
        %1475 = vmatmul.mubr.bf16.gmra.mxu0 %v966
        %v1476 = vpop.f32.mrf.mxu0
        %v1477 = vadd.f32 %v465, %v1476
        %v1478 = vpop.f32.mrf.mxu0
        %v1479 = vpop.f32.mrf.mxu0
        %v1480 = vadd.f32 %v465, %v1479
        %v1481 = vpop.f32.mrf.mxu0
        %1482 = vmatprep.mubr.bf16.mxu0 0
        %1483 = vmatmul.mubr.bf16.gmra.mxu0 %v969
        %v1484 = vpop.f32.mrf.mxu0
        %v1485 = vadd.f32 %v465, %v1484
        %v1486 = vpop.f32.mrf.mxu0
        %v1487 = vpop.f32.mrf.mxu0
        %v1488 = vadd.f32 %v465, %v1487
        %v1489 = vpop.f32.mrf.mxu0
        %1490 = vmatprep.mubr.bf16.mxu0 0
        %1491 = vmatmul.mubr.bf16.gmra.mxu0 %v972
        %v1492 = vpop.f32.mrf.mxu0
        %v1493 = vadd.f32 %v465, %v1492
        %v1494 = vpop.f32.mrf.mxu0
        %v1495 = vpop.f32.mrf.mxu0
        %v1496 = vadd.f32 %v465, %v1495
        %v1497 = vpop.f32.mrf.mxu0
        %1498 = vmatprep.mubr.bf16.mxu0 0
        %1499 = vmatmul.mubr.bf16.gmra.mxu0 %v975
        %v1500 = vpop.f32.mrf.mxu0
        %v1501 = vadd.f32 %v465, %v1500
        %v1502 = vpop.f32.mrf.mxu0
        %v1503 = vpop.f32.mrf.mxu0
        %v1504 = vadd.f32 %v465, %v1503
        %v1505 = vpop.f32.mrf.mxu0
        %1506 = vmatprep.mubr.bf16.mxu0 0
        %1507 = vmatmul.mubr.bf16.gmra.mxu0 %v978
        %v1508 = vpop.f32.mrf.mxu0
        %v1509 = vadd.f32 %v465, %v1508
        %v1510 = vpop.f32.mrf.mxu0
        %v1511 = vpop.f32.mrf.mxu0
        %v1512 = vadd.f32 %v465, %v1511
        %v1513 = vpop.f32.mrf.mxu0
        %1514 = vmatprep.mubr.bf16.mxu0 0
        %1515 = vmatmul.mubr.bf16.gmra.mxu0 %v981
        %v1516 = vpop.f32.mrf.mxu0
        %v1517 = vadd.f32 %v465, %v1516
        %v1518 = vpop.f32.mrf.mxu0
        %v1519 = vpop.f32.mrf.mxu0
        %v1520 = vadd.f32 %v465, %v1519
        %v1521 = vpop.f32.mrf.mxu0
        %1522 = vmatprep.mubr.bf16.mxu0 0
        %1523 = vmatmul.mubr.bf16.gmra.mxu0 %v984
        %v1524 = vpop.f32.mrf.mxu0
        %v1525 = vadd.f32 %v465, %v1524
        %v1526 = vpop.f32.mrf.mxu0
        %v1527 = vpop.f32.mrf.mxu0
        %v1528 = vadd.f32 %v465, %v1527
        %v1529 = vpop.f32.mrf.mxu0
        %1530 = vdwg.mxu0
        %v1531 = vmax.f32 %v1021, 0.0
        %v1532 = vmax.f32 %v1024, 0.0
        %v1533 = vmax.f32 %v1029, 0.0
        %v1534 = vmax.f32 %v1032, 0.0
        %v1535 = vmax.f32 %v1037, 0.0
        %v1536 = vmax.f32 %v1040, 0.0
        %v1537 = vmax.f32 %v1045, 0.0
        %v1538 = vmax.f32 %v1048, 0.0
        %v1539 = vmax.f32 %v1053, 0.0
        %v1540 = vmax.f32 %v1056, 0.0
        %v1541 = vmax.f32 %v1061, 0.0
        %v1542 = vmax.f32 %v1064, 0.0
        %v1543 = vmax.f32 %v1069, 0.0
        %v1544 = vmax.f32 %v1072, 0.0
        %v1545 = vmax.f32 %v1077, 0.0
        %v1546 = vmax.f32 %v1080, 0.0
        %v1547 = vmax.f32 %v1085, 0.0
        %v1548 = vmax.f32 %v1088, 0.0
        %v1549 = vmax.f32 %v1093, 0.0
        %v1550 = vmax.f32 %v1096, 0.0
        %v1551 = vmax.f32 %v1101, 0.0
        %v1552 = vmax.f32 %v1104, 0.0
        %v1553 = vmax.f32 %v1109, 0.0
        %v1554 = vmax.f32 %v1112, 0.0
        %v1555 = vmax.f32 %v1117, 0.0
        %v1556 = vmax.f32 %v1120, 0.0
        %v1557 = vmax.f32 %v1125, 0.0
        %v1558 = vmax.f32 %v1128, 0.0
        %v1559 = vmax.f32 %v1133, 0.0
        %v1560 = vmax.f32 %v1136, 0.0
        %v1561 = vmax.f32 %v1141, 0.0
        %v1562 = vmax.f32 %v1144, 0.0
        %v1563 = vmax.f32 %v1149, 0.0
        %v1564 = vmax.f32 %v1152, 0.0
        %v1565 = vmax.f32 %v1157, 0.0
        %v1566 = vmax.f32 %v1160, 0.0
        %v1567 = vmax.f32 %v1165, 0.0
        %v1568 = vmax.f32 %v1168, 0.0
        %v1569 = vmax.f32 %v1173, 0.0
        %v1570 = vmax.f32 %v1176, 0.0
        %v1571 = vmax.f32 %v1181, 0.0
        %v1572 = vmax.f32 %v1184, 0.0
        %v1573 = vmax.f32 %v1189, 0.0
        %v1574 = vmax.f32 %v1192, 0.0
        %v1575 = vmax.f32 %v1197, 0.0
        %v1576 = vmax.f32 %v1200, 0.0
        %v1577 = vmax.f32 %v1205, 0.0
        %v1578 = vmax.f32 %v1208, 0.0
        %v1579 = vmax.f32 %v1213, 0.0
        %v1580 = vmax.f32 %v1216, 0.0
        %v1581 = vmax.f32 %v1221, 0.0
        %v1582 = vmax.f32 %v1224, 0.0
        %v1583 = vmax.f32 %v1229, 0.0
        %v1584 = vmax.f32 %v1232, 0.0
        %v1585 = vmax.f32 %v1237, 0.0
        %v1586 = vmax.f32 %v1240, 0.0
        %v1587 = vmax.f32 %v1245, 0.0
        %v1588 = vmax.f32 %v1248, 0.0
        %v1589 = vmax.f32 %v1253, 0.0
        %v1590 = vmax.f32 %v1256, 0.0
        %v1591 = vmax.f32 %v1261, 0.0
        %v1592 = vmax.f32 %v1264, 0.0
        %v1593 = vmax.f32 %v1269, 0.0
        %v1594 = vmax.f32 %v1272, 0.0
        %v1595 = vmax.f32 %v1277, 0.0
        %v1596 = vmax.f32 %v1280, 0.0
        %v1597 = vmax.f32 %v1285, 0.0
        %v1598 = vmax.f32 %v1288, 0.0
        %v1599 = vmax.f32 %v1293, 0.0
        %v1600 = vmax.f32 %v1296, 0.0
        %v1601 = vmax.f32 %v1301, 0.0
        %v1602 = vmax.f32 %v1304, 0.0
        %v1603 = vmax.f32 %v1309, 0.0
        %v1604 = vmax.f32 %v1312, 0.0
        %v1605 = vmax.f32 %v1317, 0.0
        %v1606 = vmax.f32 %v1320, 0.0
        %v1607 = vmax.f32 %v1325, 0.0
        %v1608 = vmax.f32 %v1328, 0.0
        %v1609 = vmax.f32 %v1333, 0.0
        %v1610 = vmax.f32 %v1336, 0.0
        %v1611 = vmax.f32 %v1341, 0.0
        %v1612 = vmax.f32 %v1344, 0.0
        %v1613 = vmax.f32 %v1349, 0.0
        %v1614 = vmax.f32 %v1352, 0.0
        %v1615 = vmax.f32 %v1357, 0.0
        %v1616 = vmax.f32 %v1360, 0.0
        %v1617 = vmax.f32 %v1365, 0.0
        %v1618 = vmax.f32 %v1368, 0.0
        %v1619 = vmax.f32 %v1373, 0.0
        %v1620 = vmax.f32 %v1376, 0.0
        %v1621 = vmax.f32 %v1381, 0.0
        %v1622 = vmax.f32 %v1384, 0.0
        %v1623 = vmax.f32 %v1389, 0.0
        %v1624 = vmax.f32 %v1392, 0.0
        %v1625 = vmax.f32 %v1397, 0.0
        %v1626 = vmax.f32 %v1400, 0.0
        %v1627 = vmax.f32 %v1405, 0.0
        %v1628 = vmax.f32 %v1408, 0.0
        %v1629 = vmax.f32 %v1413, 0.0
        %v1630 = vmax.f32 %v1416, 0.0
        %v1631 = vmax.f32 %v1421, 0.0
        %v1632 = vmax.f32 %v1424, 0.0
        %v1633 = vmax.f32 %v1429, 0.0
        %v1634 = vmax.f32 %v1432, 0.0
        %v1635 = vmax.f32 %v1437, 0.0
        %v1636 = vmax.f32 %v1440, 0.0
        %v1637 = vmax.f32 %v1445, 0.0
        %v1638 = vmax.f32 %v1448, 0.0
        %v1639 = vmax.f32 %v1453, 0.0
        %v1640 = vmax.f32 %v1456, 0.0
        %v1641 = vmax.f32 %v1461, 0.0
        %v1642 = vmax.f32 %v1464, 0.0
        %v1643 = vmax.f32 %v1469, 0.0
        %v1644 = vmax.f32 %v1472, 0.0
        %v1645 = vmax.f32 %v1477, 0.0
        %v1646 = vmax.f32 %v1480, 0.0
        %v1647 = vmax.f32 %v1485, 0.0
        %v1648 = vmax.f32 %v1488, 0.0
        %v1649 = vmax.f32 %v1493, 0.0
        %v1650 = vmax.f32 %v1496, 0.0
        %v1651 = vmax.f32 %v1501, 0.0
        %v1652 = vmax.f32 %v1504, 0.0
        %v1653 = vmax.f32 %v1509, 0.0
        %v1654 = vmax.f32 %v1512, 0.0
        %v1655 = vmax.f32 %v1517, 0.0
        %v1656 = vmax.f32 %v1520, 0.0
        %v1657 = vmax.f32 %v1525, 0.0
        %v1658 = vmax.f32 %v1528, 0.0
        %v1659 = vld [vmem:[%s4] sm:$0xf]
        %v1660 = vld [vmem:[%s4 + $0x4] sm:$0xf]
        %v1661 = vld [vmem:[%s4 + $0x8] sm:$0xf]
        %v1662 = vld [vmem:[%s4 + $0xc] sm:$0xf]
        %v1663 = vld [vmem:[%s5] sm:$0x1]
        %v1664 = vpack.c.bf16 %v1532, %v1531
        %v1665 = vpack.c.bf16 %v1534, %v1533
        %v1666 = vpack.c.bf16 %v1536, %v1535
        %v1667 = vpack.c.bf16 %v1538, %v1537
        %v1668 = vpack.c.bf16 %v1540, %v1539
        %v1669 = vpack.c.bf16 %v1542, %v1541
        %v1670 = vpack.c.bf16 %v1544, %v1543
        %v1671 = vpack.c.bf16 %v1546, %v1545
        %v1672 = vpack.c.bf16 %v1548, %v1547
        %v1673 = vpack.c.bf16 %v1550, %v1549
        %v1674 = vpack.c.bf16 %v1552, %v1551
        %v1675 = vpack.c.bf16 %v1554, %v1553
        %v1676 = vpack.c.bf16 %v1556, %v1555
        %v1677 = vpack.c.bf16 %v1558, %v1557
        %v1678 = vpack.c.bf16 %v1560, %v1559
        %v1679 = vpack.c.bf16 %v1562, %v1561
        %v1680 = vpack.c.bf16 %v1564, %v1563
        %v1681 = vpack.c.bf16 %v1566, %v1565
        %v1682 = vpack.c.bf16 %v1568, %v1567
        %v1683 = vpack.c.bf16 %v1570, %v1569
        %v1684 = vpack.c.bf16 %v1572, %v1571
        %v1685 = vpack.c.bf16 %v1574, %v1573
        %v1686 = vpack.c.bf16 %v1576, %v1575
        %v1687 = vpack.c.bf16 %v1578, %v1577
        %v1688 = vpack.c.bf16 %v1580, %v1579
        %v1689 = vpack.c.bf16 %v1582, %v1581
        %v1690 = vpack.c.bf16 %v1584, %v1583
        %v1691 = vpack.c.bf16 %v1586, %v1585
        %v1692 = vpack.c.bf16 %v1588, %v1587
        %v1693 = vpack.c.bf16 %v1590, %v1589
        %v1694 = vpack.c.bf16 %v1592, %v1591
        %v1695 = vpack.c.bf16 %v1594, %v1593
        %v1696 = vpack.c.bf16 %v1596, %v1595
        %v1697 = vpack.c.bf16 %v1598, %v1597
        %v1698 = vpack.c.bf16 %v1600, %v1599
        %v1699 = vpack.c.bf16 %v1602, %v1601
        %v1700 = vpack.c.bf16 %v1604, %v1603
        %v1701 = vpack.c.bf16 %v1606, %v1605
        %v1702 = vpack.c.bf16 %v1608, %v1607
        %v1703 = vpack.c.bf16 %v1610, %v1609
        %v1704 = vpack.c.bf16 %v1612, %v1611
        %v1705 = vpack.c.bf16 %v1614, %v1613
        %v1706 = vpack.c.bf16 %v1616, %v1615
        %v1707 = vpack.c.bf16 %v1618, %v1617
        %v1708 = vpack.c.bf16 %v1620, %v1619
        %v1709 = vpack.c.bf16 %v1622, %v1621
        %v1710 = vpack.c.bf16 %v1624, %v1623
        %v1711 = vpack.c.bf16 %v1626, %v1625
        %v1712 = vpack.c.bf16 %v1628, %v1627
        %v1713 = vpack.c.bf16 %v1630, %v1629
        %v1714 = vpack.c.bf16 %v1632, %v1631
        %v1715 = vpack.c.bf16 %v1634, %v1633
        %v1716 = vpack.c.bf16 %v1636, %v1635
        %v1717 = vpack.c.bf16 %v1638, %v1637
        %v1718 = vpack.c.bf16 %v1640, %v1639
        %v1719 = vpack.c.bf16 %v1642, %v1641
        %v1720 = vpack.c.bf16 %v1644, %v1643
        %v1721 = vpack.c.bf16 %v1646, %v1645
        %v1722 = vpack.c.bf16 %v1648, %v1647
        %v1723 = vpack.c.bf16 %v1650, %v1649
        %v1724 = vpack.c.bf16 %v1652, %v1651
        %v1725 = vpack.c.bf16 %v1654, %v1653
        %v1726 = vpack.c.bf16 %v1656, %v1655
        %v1727 = vpack.c.bf16 %v1658, %v1657
        %v1729 = vlaneseq
        %v1730 = vshrl.u32 %v1729, 7
        %v1731 = vsub.s32 0, %v1730
        %v1732 = vrot.slane %v1663, %v1731
        %v1738 = vunpack.c.l.b16 %v1659
        %v1739 = vunpack.c.l.b16 %v1660
        %v1740 = vunpack.c.l.b16 %v1661
        %v1741 = vunpack.c.l.b16 %v1662
        %v1742 = vpack.c.b16 %v1739, %v1738
        %v1743 = vpack.c.b16 %v1741, %v1740
        %vm1746 = vcmask 261120
        %v1748 = vsel %vm1746, %v1664, 0
        %v1751 = vsel %vm1746, %v1665, 0
        %v1754 = vsel %vm1746, %v1666, 0
        %v1757 = vsel %vm1746, %v1667, 0
        %v1760 = vsel %vm1746, %v1668, 0
        %v1763 = vsel %vm1746, %v1669, 0
        %v1766 = vsel %vm1746, %v1670, 0
        %v1769 = vsel %vm1746, %v1671, 0
        %v1772 = vsel %vm1746, %v1672, 0
        %v1775 = vsel %vm1746, %v1673, 0
        %v1778 = vsel %vm1746, %v1674, 0
        %v1781 = vsel %vm1746, %v1675, 0
        %v1784 = vsel %vm1746, %v1676, 0
        %v1787 = vsel %vm1746, %v1677, 0
        %v1790 = vsel %vm1746, %v1678, 0
        %v1793 = vsel %vm1746, %v1679, 0
        %v1796 = vsel %vm1746, %v1680, 0
        %v1799 = vsel %vm1746, %v1681, 0
        %v1802 = vsel %vm1746, %v1682, 0
        %v1805 = vsel %vm1746, %v1683, 0
        %v1808 = vsel %vm1746, %v1684, 0
        %v1811 = vsel %vm1746, %v1685, 0
        %v1814 = vsel %vm1746, %v1686, 0
        %v1817 = vsel %vm1746, %v1687, 0
        %v1820 = vsel %vm1746, %v1688, 0
        %v1823 = vsel %vm1746, %v1689, 0
        %v1826 = vsel %vm1746, %v1690, 0
        %v1829 = vsel %vm1746, %v1691, 0
        %v1832 = vsel %vm1746, %v1692, 0
        %v1835 = vsel %vm1746, %v1693, 0
        %v1838 = vsel %vm1746, %v1694, 0
        %v1841 = vsel %vm1746, %v1695, 0
        %v1844 = vsel %vm1746, %v1696, 0
        %v1847 = vsel %vm1746, %v1697, 0
        %v1850 = vsel %vm1746, %v1698, 0
        %v1853 = vsel %vm1746, %v1699, 0
        %v1856 = vsel %vm1746, %v1700, 0
        %v1859 = vsel %vm1746, %v1701, 0
        %v1862 = vsel %vm1746, %v1702, 0
        %v1865 = vsel %vm1746, %v1703, 0
        %v1868 = vsel %vm1746, %v1704, 0
        %v1871 = vsel %vm1746, %v1705, 0
        %v1874 = vsel %vm1746, %v1706, 0
        %v1877 = vsel %vm1746, %v1707, 0
        %v1880 = vsel %vm1746, %v1708, 0
        %v1883 = vsel %vm1746, %v1709, 0
        %v1886 = vsel %vm1746, %v1710, 0
        %v1889 = vsel %vm1746, %v1711, 0
        %v1892 = vsel %vm1746, %v1712, 0
        %v1895 = vsel %vm1746, %v1713, 0
        %v1898 = vsel %vm1746, %v1714, 0
        %v1901 = vsel %vm1746, %v1715, 0
        %v1904 = vsel %vm1746, %v1716, 0
        %v1907 = vsel %vm1746, %v1717, 0
        %v1910 = vsel %vm1746, %v1718, 0
        %v1913 = vsel %vm1746, %v1719, 0
        %v1916 = vsel %vm1746, %v1720, 0
        %v1919 = vsel %vm1746, %v1721, 0
        %v1922 = vsel %vm1746, %v1722, 0
        %v1925 = vsel %vm1746, %v1723, 0
        %v1928 = vsel %vm1746, %v1724, 0
        %v1931 = vsel %vm1746, %v1725, 0
        %v1934 = vsel %vm1746, %v1726, 0
        %v1937 = vsel %vm1746, %v1727, 0
        %1939 = vmatprep.subr.bf16.mxu0 0
        %1940 = vmatpush1.bf16.msra.mxu0 0
        %1941 = vmatprep.subr.bf16.mxu0 0
        %1942 = vmatpush1.bf16.msra.mxu0 0
        %1943 = vmatprep.subr.bf16.mxu0 0
        %1944 = vmatpush1.bf16.msra.mxu0 0
        %1945 = vmatprep.subr.bf16.mxu0 0
        %1946 = vmatpush1.bf16.msra.mxu0 0
        %1947 = vmatprep.subr.bf16.mxu0 0
        %1948 = vmatpush1.bf16.msra.mxu0 0
        %1949 = vmatprep.subr.bf16.mxu0 0
        %1950 = vmatpush1.bf16.msra.mxu0 0
        %1951 = vmatprep.subr.bf16.mxu0 0
        %1952 = vmatpush1.bf16.msra.mxu0 %v1743
        %1953 = vmatprep.subr.bf16.mxu0 0
        %1954 = vmatpush1.bf16.msra.mxu0 %v1742
        %1955 = vmatprep.subr.bf16.mxu0 0
        %1956 = vmatpush2.bf16.msra.mxu0 0
        %1957 = vmatprep.subr.bf16.mxu0 0
        %1958 = vmatpush2.bf16.msra.mxu0 0
        %1959 = vmatprep.subr.bf16.mxu0 0
        %1960 = vmatpush2.bf16.msra.mxu0 0
        %1961 = vmatprep.subr.bf16.mxu0 0
        %1962 = vmatpush2.bf16.msra.mxu0 0
        %1963 = vmatprep.subr.bf16.mxu0 0
        %1964 = vmatpush2.bf16.msra.mxu0 0
        %1965 = vmatprep.subr.bf16.mxu0 0
        %1966 = vmatpush2.bf16.msra.mxu0 0
        %1967 = vmatprep.subr.bf16.mxu0 0
        %1968 = vmatpush2.bf16.msra.mxu0 0
        %1969 = vmatprep.subr.bf16.mxu0 0
        %1970 = vmatpush2.bf16.msra.mxu0 0
        %1971 = vmatprep.mubr.bf16.mxu0 0
        %1972 = vmatmul.mubr.bf16.gmra.mxu0 %v1748
        %v1973 = vpop.f32.mrf.mxu0
        %v1974 = vadd.f32 %v1732, %v1973
        %v1975 = vpop.f32.mrf.mxu0
        %v1976 = vpop.f32.mrf.mxu0
        %v1977 = vadd.f32 %v1732, %v1976
        %v1978 = vpop.f32.mrf.mxu0
        %1979 = vmatprep.mubr.bf16.mxu0 0
        %1980 = vmatmul.mubr.bf16.gmra.mxu0 %v1751
        %v1981 = vpop.f32.mrf.mxu0
        %v1982 = vadd.f32 %v1732, %v1981
        %v1983 = vpop.f32.mrf.mxu0
        %v1984 = vpop.f32.mrf.mxu0
        %v1985 = vadd.f32 %v1732, %v1984
        %v1986 = vpop.f32.mrf.mxu0
        %1987 = vmatprep.mubr.bf16.mxu0 0
        %1988 = vmatmul.mubr.bf16.gmra.mxu0 %v1754
        %v1989 = vpop.f32.mrf.mxu0
        %v1990 = vadd.f32 %v1732, %v1989
        %v1991 = vpop.f32.mrf.mxu0
        %v1992 = vpop.f32.mrf.mxu0
        %v1993 = vadd.f32 %v1732, %v1992
        %v1994 = vpop.f32.mrf.mxu0
        %1995 = vmatprep.mubr.bf16.mxu0 0
        %1996 = vmatmul.mubr.bf16.gmra.mxu0 %v1757
        %v1997 = vpop.f32.mrf.mxu0
        %v1998 = vadd.f32 %v1732, %v1997
        %v1999 = vpop.f32.mrf.mxu0
        %v2000 = vpop.f32.mrf.mxu0
        %v2001 = vadd.f32 %v1732, %v2000
        %v2002 = vpop.f32.mrf.mxu0
        %2003 = vmatprep.mubr.bf16.mxu0 0
        %2004 = vmatmul.mubr.bf16.gmra.mxu0 %v1760
        %v2005 = vpop.f32.mrf.mxu0
        %v2006 = vadd.f32 %v1732, %v2005
        %v2007 = vpop.f32.mrf.mxu0
        %v2008 = vpop.f32.mrf.mxu0
        %v2009 = vadd.f32 %v1732, %v2008
        %v2010 = vpop.f32.mrf.mxu0
        %2011 = vmatprep.mubr.bf16.mxu0 0
        %2012 = vmatmul.mubr.bf16.gmra.mxu0 %v1763
        %v2013 = vpop.f32.mrf.mxu0
        %v2014 = vadd.f32 %v1732, %v2013
        %v2015 = vpop.f32.mrf.mxu0
        %v2016 = vpop.f32.mrf.mxu0
        %v2017 = vadd.f32 %v1732, %v2016
        %v2018 = vpop.f32.mrf.mxu0
        %2019 = vmatprep.mubr.bf16.mxu0 0
        %2020 = vmatmul.mubr.bf16.gmra.mxu0 %v1766
        %v2021 = vpop.f32.mrf.mxu0
        %v2022 = vadd.f32 %v1732, %v2021
        %v2023 = vpop.f32.mrf.mxu0
        %v2024 = vpop.f32.mrf.mxu0
        %v2025 = vadd.f32 %v1732, %v2024
        %v2026 = vpop.f32.mrf.mxu0
        %2027 = vmatprep.mubr.bf16.mxu0 0
        %2028 = vmatmul.mubr.bf16.gmra.mxu0 %v1769
        %v2029 = vpop.f32.mrf.mxu0
        %v2030 = vadd.f32 %v1732, %v2029
        %v2031 = vpop.f32.mrf.mxu0
        %v2032 = vpop.f32.mrf.mxu0
        %v2033 = vadd.f32 %v1732, %v2032
        %v2034 = vpop.f32.mrf.mxu0
        %2035 = vmatprep.mubr.bf16.mxu0 0
        %2036 = vmatmul.mubr.bf16.gmra.mxu0 %v1772
        %v2037 = vpop.f32.mrf.mxu0
        %v2038 = vadd.f32 %v1732, %v2037
        %v2039 = vpop.f32.mrf.mxu0
        %v2040 = vpop.f32.mrf.mxu0
        %v2041 = vadd.f32 %v1732, %v2040
        %v2042 = vpop.f32.mrf.mxu0
        %2043 = vmatprep.mubr.bf16.mxu0 0
        %2044 = vmatmul.mubr.bf16.gmra.mxu0 %v1775
        %v2045 = vpop.f32.mrf.mxu0
        %v2046 = vadd.f32 %v1732, %v2045
        %v2047 = vpop.f32.mrf.mxu0
        %v2048 = vpop.f32.mrf.mxu0
        %v2049 = vadd.f32 %v1732, %v2048
        %v2050 = vpop.f32.mrf.mxu0
        %2051 = vmatprep.mubr.bf16.mxu0 0
        %2052 = vmatmul.mubr.bf16.gmra.mxu0 %v1778
        %v2053 = vpop.f32.mrf.mxu0
        %v2054 = vadd.f32 %v1732, %v2053
        %v2055 = vpop.f32.mrf.mxu0
        %v2056 = vpop.f32.mrf.mxu0
        %v2057 = vadd.f32 %v1732, %v2056
        %v2058 = vpop.f32.mrf.mxu0
        %2059 = vmatprep.mubr.bf16.mxu0 0
        %2060 = vmatmul.mubr.bf16.gmra.mxu0 %v1781
        %v2061 = vpop.f32.mrf.mxu0
        %v2062 = vadd.f32 %v1732, %v2061
        %v2063 = vpop.f32.mrf.mxu0
        %v2064 = vpop.f32.mrf.mxu0
        %v2065 = vadd.f32 %v1732, %v2064
        %v2066 = vpop.f32.mrf.mxu0
        %2067 = vmatprep.mubr.bf16.mxu0 0
        %2068 = vmatmul.mubr.bf16.gmra.mxu0 %v1784
        %v2069 = vpop.f32.mrf.mxu0
        %v2070 = vadd.f32 %v1732, %v2069
        %v2071 = vpop.f32.mrf.mxu0
        %v2072 = vpop.f32.mrf.mxu0
        %v2073 = vadd.f32 %v1732, %v2072
        %v2074 = vpop.f32.mrf.mxu0
        %2075 = vmatprep.mubr.bf16.mxu0 0
        %2076 = vmatmul.mubr.bf16.gmra.mxu0 %v1787
        %v2077 = vpop.f32.mrf.mxu0
        %v2078 = vadd.f32 %v1732, %v2077
        %v2079 = vpop.f32.mrf.mxu0
        %v2080 = vpop.f32.mrf.mxu0
        %v2081 = vadd.f32 %v1732, %v2080
        %v2082 = vpop.f32.mrf.mxu0
        %2083 = vmatprep.mubr.bf16.mxu0 0
        %2084 = vmatmul.mubr.bf16.gmra.mxu0 %v1790
        %v2085 = vpop.f32.mrf.mxu0
        %v2086 = vadd.f32 %v1732, %v2085
        %v2087 = vpop.f32.mrf.mxu0
        %v2088 = vpop.f32.mrf.mxu0
        %v2089 = vadd.f32 %v1732, %v2088
        %v2090 = vpop.f32.mrf.mxu0
        %2091 = vmatprep.mubr.bf16.mxu0 0
        %2092 = vmatmul.mubr.bf16.gmra.mxu0 %v1793
        %v2093 = vpop.f32.mrf.mxu0
        %v2094 = vadd.f32 %v1732, %v2093
        %v2095 = vpop.f32.mrf.mxu0
        %v2096 = vpop.f32.mrf.mxu0
        %v2097 = vadd.f32 %v1732, %v2096
        %v2098 = vpop.f32.mrf.mxu0
        %2099 = vmatprep.mubr.bf16.mxu0 0
        %2100 = vmatmul.mubr.bf16.gmra.mxu0 %v1796
        %v2101 = vpop.f32.mrf.mxu0
        %v2102 = vadd.f32 %v1732, %v2101
        %v2103 = vpop.f32.mrf.mxu0
        %v2104 = vpop.f32.mrf.mxu0
        %v2105 = vadd.f32 %v1732, %v2104
        %v2106 = vpop.f32.mrf.mxu0
        %2107 = vmatprep.mubr.bf16.mxu0 0
        %2108 = vmatmul.mubr.bf16.gmra.mxu0 %v1799
        %v2109 = vpop.f32.mrf.mxu0
        %v2110 = vadd.f32 %v1732, %v2109
        %v2111 = vpop.f32.mrf.mxu0
        %v2112 = vpop.f32.mrf.mxu0
        %v2113 = vadd.f32 %v1732, %v2112
        %v2114 = vpop.f32.mrf.mxu0
        %2115 = vmatprep.mubr.bf16.mxu0 0
        %2116 = vmatmul.mubr.bf16.gmra.mxu0 %v1802
        %v2117 = vpop.f32.mrf.mxu0
        %v2118 = vadd.f32 %v1732, %v2117
        %v2119 = vpop.f32.mrf.mxu0
        %v2120 = vpop.f32.mrf.mxu0
        %v2121 = vadd.f32 %v1732, %v2120
        %v2122 = vpop.f32.mrf.mxu0
        %2123 = vmatprep.mubr.bf16.mxu0 0
        %2124 = vmatmul.mubr.bf16.gmra.mxu0 %v1805
        %v2125 = vpop.f32.mrf.mxu0
        %v2126 = vadd.f32 %v1732, %v2125
        %v2127 = vpop.f32.mrf.mxu0
        %v2128 = vpop.f32.mrf.mxu0
        %v2129 = vadd.f32 %v1732, %v2128
        %v2130 = vpop.f32.mrf.mxu0
        %2131 = vmatprep.mubr.bf16.mxu0 0
        %2132 = vmatmul.mubr.bf16.gmra.mxu0 %v1808
        %v2133 = vpop.f32.mrf.mxu0
        %v2134 = vadd.f32 %v1732, %v2133
        %v2135 = vpop.f32.mrf.mxu0
        %v2136 = vpop.f32.mrf.mxu0
        %v2137 = vadd.f32 %v1732, %v2136
        %v2138 = vpop.f32.mrf.mxu0
        %2139 = vmatprep.mubr.bf16.mxu0 0
        %2140 = vmatmul.mubr.bf16.gmra.mxu0 %v1811
        %v2141 = vpop.f32.mrf.mxu0
        %v2142 = vadd.f32 %v1732, %v2141
        %v2143 = vpop.f32.mrf.mxu0
        %v2144 = vpop.f32.mrf.mxu0
        %v2145 = vadd.f32 %v1732, %v2144
        %v2146 = vpop.f32.mrf.mxu0
        %2147 = vmatprep.mubr.bf16.mxu0 0
        %2148 = vmatmul.mubr.bf16.gmra.mxu0 %v1814
        %v2149 = vpop.f32.mrf.mxu0
        %v2150 = vadd.f32 %v1732, %v2149
        %v2151 = vpop.f32.mrf.mxu0
        %v2152 = vpop.f32.mrf.mxu0
        %v2153 = vadd.f32 %v1732, %v2152
        %v2154 = vpop.f32.mrf.mxu0
        %2155 = vmatprep.mubr.bf16.mxu0 0
        %2156 = vmatmul.mubr.bf16.gmra.mxu0 %v1817
        %v2157 = vpop.f32.mrf.mxu0
        %v2158 = vadd.f32 %v1732, %v2157
        %v2159 = vpop.f32.mrf.mxu0
        %v2160 = vpop.f32.mrf.mxu0
        %v2161 = vadd.f32 %v1732, %v2160
        %v2162 = vpop.f32.mrf.mxu0
        %2163 = vmatprep.mubr.bf16.mxu0 0
        %2164 = vmatmul.mubr.bf16.gmra.mxu0 %v1820
        %v2165 = vpop.f32.mrf.mxu0
        %v2166 = vadd.f32 %v1732, %v2165
        %v2167 = vpop.f32.mrf.mxu0
        %v2168 = vpop.f32.mrf.mxu0
        %v2169 = vadd.f32 %v1732, %v2168
        %v2170 = vpop.f32.mrf.mxu0
        %2171 = vmatprep.mubr.bf16.mxu0 0
        %2172 = vmatmul.mubr.bf16.gmra.mxu0 %v1823
        %v2173 = vpop.f32.mrf.mxu0
        %v2174 = vadd.f32 %v1732, %v2173
        %v2175 = vpop.f32.mrf.mxu0
        %v2176 = vpop.f32.mrf.mxu0
        %v2177 = vadd.f32 %v1732, %v2176
        %v2178 = vpop.f32.mrf.mxu0
        %2179 = vmatprep.mubr.bf16.mxu0 0
        %2180 = vmatmul.mubr.bf16.gmra.mxu0 %v1826
        %v2181 = vpop.f32.mrf.mxu0
        %v2182 = vadd.f32 %v1732, %v2181
        %v2183 = vpop.f32.mrf.mxu0
        %v2184 = vpop.f32.mrf.mxu0
        %v2185 = vadd.f32 %v1732, %v2184
        %v2186 = vpop.f32.mrf.mxu0
        %2187 = vmatprep.mubr.bf16.mxu0 0
        %2188 = vmatmul.mubr.bf16.gmra.mxu0 %v1829
        %v2189 = vpop.f32.mrf.mxu0
        %v2190 = vadd.f32 %v1732, %v2189
        %v2191 = vpop.f32.mrf.mxu0
        %v2192 = vpop.f32.mrf.mxu0
        %v2193 = vadd.f32 %v1732, %v2192
        %v2194 = vpop.f32.mrf.mxu0
        %2195 = vmatprep.mubr.bf16.mxu0 0
        %2196 = vmatmul.mubr.bf16.gmra.mxu0 %v1832
        %v2197 = vpop.f32.mrf.mxu0
        %v2198 = vadd.f32 %v1732, %v2197
        %v2199 = vpop.f32.mrf.mxu0
        %v2200 = vpop.f32.mrf.mxu0
        %v2201 = vadd.f32 %v1732, %v2200
        %v2202 = vpop.f32.mrf.mxu0
        %2203 = vmatprep.mubr.bf16.mxu0 0
        %2204 = vmatmul.mubr.bf16.gmra.mxu0 %v1835
        %v2205 = vpop.f32.mrf.mxu0
        %v2206 = vadd.f32 %v1732, %v2205
        %v2207 = vpop.f32.mrf.mxu0
        %v2208 = vpop.f32.mrf.mxu0
        %v2209 = vadd.f32 %v1732, %v2208
        %v2210 = vpop.f32.mrf.mxu0
        %2211 = vmatprep.mubr.bf16.mxu0 0
        %2212 = vmatmul.mubr.bf16.gmra.mxu0 %v1838
        %v2213 = vpop.f32.mrf.mxu0
        %v2214 = vadd.f32 %v1732, %v2213
        %v2215 = vpop.f32.mrf.mxu0
        %v2216 = vpop.f32.mrf.mxu0
        %v2217 = vadd.f32 %v1732, %v2216
        %v2218 = vpop.f32.mrf.mxu0
        %2219 = vmatprep.mubr.bf16.mxu0 0
        %2220 = vmatmul.mubr.bf16.gmra.mxu0 %v1841
        %v2221 = vpop.f32.mrf.mxu0
        %v2222 = vadd.f32 %v1732, %v2221
        %v2223 = vpop.f32.mrf.mxu0
        %v2224 = vpop.f32.mrf.mxu0
        %v2225 = vadd.f32 %v1732, %v2224
        %v2226 = vpop.f32.mrf.mxu0
        %2227 = vmatprep.mubr.bf16.mxu0 0
        %2228 = vmatmul.mubr.bf16.gmra.mxu0 %v1844
        %v2229 = vpop.f32.mrf.mxu0
        %v2230 = vadd.f32 %v1732, %v2229
        %v2231 = vpop.f32.mrf.mxu0
        %v2232 = vpop.f32.mrf.mxu0
        %v2233 = vadd.f32 %v1732, %v2232
        %v2234 = vpop.f32.mrf.mxu0
        %2235 = vmatprep.mubr.bf16.mxu0 0
        %2236 = vmatmul.mubr.bf16.gmra.mxu0 %v1847
        %v2237 = vpop.f32.mrf.mxu0
        %v2238 = vadd.f32 %v1732, %v2237
        %v2239 = vpop.f32.mrf.mxu0
        %v2240 = vpop.f32.mrf.mxu0
        %v2241 = vadd.f32 %v1732, %v2240
        %v2242 = vpop.f32.mrf.mxu0
        %2243 = vmatprep.mubr.bf16.mxu0 0
        %2244 = vmatmul.mubr.bf16.gmra.mxu0 %v1850
        %v2245 = vpop.f32.mrf.mxu0
        %v2246 = vadd.f32 %v1732, %v2245
        %v2247 = vpop.f32.mrf.mxu0
        %v2248 = vpop.f32.mrf.mxu0
        %v2249 = vadd.f32 %v1732, %v2248
        %v2250 = vpop.f32.mrf.mxu0
        %2251 = vmatprep.mubr.bf16.mxu0 0
        %2252 = vmatmul.mubr.bf16.gmra.mxu0 %v1853
        %v2253 = vpop.f32.mrf.mxu0
        %v2254 = vadd.f32 %v1732, %v2253
        %v2255 = vpop.f32.mrf.mxu0
        %v2256 = vpop.f32.mrf.mxu0
        %v2257 = vadd.f32 %v1732, %v2256
        %v2258 = vpop.f32.mrf.mxu0
        %2259 = vmatprep.mubr.bf16.mxu0 0
        %2260 = vmatmul.mubr.bf16.gmra.mxu0 %v1856
        %v2261 = vpop.f32.mrf.mxu0
        %v2262 = vadd.f32 %v1732, %v2261
        %v2263 = vpop.f32.mrf.mxu0
        %v2264 = vpop.f32.mrf.mxu0
        %v2265 = vadd.f32 %v1732, %v2264
        %v2266 = vpop.f32.mrf.mxu0
        %2267 = vmatprep.mubr.bf16.mxu0 0
        %2268 = vmatmul.mubr.bf16.gmra.mxu0 %v1859
        %v2269 = vpop.f32.mrf.mxu0
        %v2270 = vadd.f32 %v1732, %v2269
        %v2271 = vpop.f32.mrf.mxu0
        %v2272 = vpop.f32.mrf.mxu0
        %v2273 = vadd.f32 %v1732, %v2272
        %v2274 = vpop.f32.mrf.mxu0
        %2275 = vmatprep.mubr.bf16.mxu0 0
        %2276 = vmatmul.mubr.bf16.gmra.mxu0 %v1862
        %v2277 = vpop.f32.mrf.mxu0
        %v2278 = vadd.f32 %v1732, %v2277
        %v2279 = vpop.f32.mrf.mxu0
        %v2280 = vpop.f32.mrf.mxu0
        %v2281 = vadd.f32 %v1732, %v2280
        %v2282 = vpop.f32.mrf.mxu0
        %2283 = vmatprep.mubr.bf16.mxu0 0
        %2284 = vmatmul.mubr.bf16.gmra.mxu0 %v1865
        %v2285 = vpop.f32.mrf.mxu0
        %v2286 = vadd.f32 %v1732, %v2285
        %v2287 = vpop.f32.mrf.mxu0
        %v2288 = vpop.f32.mrf.mxu0
        %v2289 = vadd.f32 %v1732, %v2288
        %v2290 = vpop.f32.mrf.mxu0
        %2291 = vmatprep.mubr.bf16.mxu0 0
        %2292 = vmatmul.mubr.bf16.gmra.mxu0 %v1868
        %v2293 = vpop.f32.mrf.mxu0
        %v2294 = vadd.f32 %v1732, %v2293
        %v2295 = vpop.f32.mrf.mxu0
        %v2296 = vpop.f32.mrf.mxu0
        %v2297 = vadd.f32 %v1732, %v2296
        %v2298 = vpop.f32.mrf.mxu0
        %2299 = vmatprep.mubr.bf16.mxu0 0
        %2300 = vmatmul.mubr.bf16.gmra.mxu0 %v1871
        %v2301 = vpop.f32.mrf.mxu0
        %v2302 = vadd.f32 %v1732, %v2301
        %v2303 = vpop.f32.mrf.mxu0
        %v2304 = vpop.f32.mrf.mxu0
        %v2305 = vadd.f32 %v1732, %v2304
        %v2306 = vpop.f32.mrf.mxu0
        %2307 = vmatprep.mubr.bf16.mxu0 0
        %2308 = vmatmul.mubr.bf16.gmra.mxu0 %v1874
        %v2309 = vpop.f32.mrf.mxu0
        %v2310 = vadd.f32 %v1732, %v2309
        %v2311 = vpop.f32.mrf.mxu0
        %v2312 = vpop.f32.mrf.mxu0
        %v2313 = vadd.f32 %v1732, %v2312
        %v2314 = vpop.f32.mrf.mxu0
        %2315 = vmatprep.mubr.bf16.mxu0 0
        %2316 = vmatmul.mubr.bf16.gmra.mxu0 %v1877
        %v2317 = vpop.f32.mrf.mxu0
        %v2318 = vadd.f32 %v1732, %v2317
        %v2319 = vpop.f32.mrf.mxu0
        %v2320 = vpop.f32.mrf.mxu0
        %v2321 = vadd.f32 %v1732, %v2320
        %v2322 = vpop.f32.mrf.mxu0
        %2323 = vmatprep.mubr.bf16.mxu0 0
        %2324 = vmatmul.mubr.bf16.gmra.mxu0 %v1880
        %v2325 = vpop.f32.mrf.mxu0
        %v2326 = vadd.f32 %v1732, %v2325
        %v2327 = vpop.f32.mrf.mxu0
        %v2328 = vpop.f32.mrf.mxu0
        %v2329 = vadd.f32 %v1732, %v2328
        %v2330 = vpop.f32.mrf.mxu0
        %2331 = vmatprep.mubr.bf16.mxu0 0
        %2332 = vmatmul.mubr.bf16.gmra.mxu0 %v1883
        %v2333 = vpop.f32.mrf.mxu0
        %v2334 = vadd.f32 %v1732, %v2333
        %v2335 = vpop.f32.mrf.mxu0
        %v2336 = vpop.f32.mrf.mxu0
        %v2337 = vadd.f32 %v1732, %v2336
        %v2338 = vpop.f32.mrf.mxu0
        %2339 = vmatprep.mubr.bf16.mxu0 0
        %2340 = vmatmul.mubr.bf16.gmra.mxu0 %v1886
        %v2341 = vpop.f32.mrf.mxu0
        %v2342 = vadd.f32 %v1732, %v2341
        %v2343 = vpop.f32.mrf.mxu0
        %v2344 = vpop.f32.mrf.mxu0
        %v2345 = vadd.f32 %v1732, %v2344
        %v2346 = vpop.f32.mrf.mxu0
        %2347 = vmatprep.mubr.bf16.mxu0 0
        %2348 = vmatmul.mubr.bf16.gmra.mxu0 %v1889
        %v2349 = vpop.f32.mrf.mxu0
        %v2350 = vadd.f32 %v1732, %v2349
        %v2351 = vpop.f32.mrf.mxu0
        %v2352 = vpop.f32.mrf.mxu0
        %v2353 = vadd.f32 %v1732, %v2352
        %v2354 = vpop.f32.mrf.mxu0
        %2355 = vmatprep.mubr.bf16.mxu0 0
        %2356 = vmatmul.mubr.bf16.gmra.mxu0 %v1892
        %v2357 = vpop.f32.mrf.mxu0
        %v2358 = vadd.f32 %v1732, %v2357
        %v2359 = vpop.f32.mrf.mxu0
        %v2360 = vpop.f32.mrf.mxu0
        %v2361 = vadd.f32 %v1732, %v2360
        %v2362 = vpop.f32.mrf.mxu0
        %2363 = vmatprep.mubr.bf16.mxu0 0
        %2364 = vmatmul.mubr.bf16.gmra.mxu0 %v1895
        %v2365 = vpop.f32.mrf.mxu0
        %v2366 = vadd.f32 %v1732, %v2365
        %v2367 = vpop.f32.mrf.mxu0
        %v2368 = vpop.f32.mrf.mxu0
        %v2369 = vadd.f32 %v1732, %v2368
        %v2370 = vpop.f32.mrf.mxu0
        %2371 = vmatprep.mubr.bf16.mxu0 0
        %2372 = vmatmul.mubr.bf16.gmra.mxu0 %v1898
        %v2373 = vpop.f32.mrf.mxu0
        %v2374 = vadd.f32 %v1732, %v2373
        %v2375 = vpop.f32.mrf.mxu0
        %v2376 = vpop.f32.mrf.mxu0
        %v2377 = vadd.f32 %v1732, %v2376
        %v2378 = vpop.f32.mrf.mxu0
        %2379 = vmatprep.mubr.bf16.mxu0 0
        %2380 = vmatmul.mubr.bf16.gmra.mxu0 %v1901
        %v2381 = vpop.f32.mrf.mxu0
        %v2382 = vadd.f32 %v1732, %v2381
        %v2383 = vpop.f32.mrf.mxu0
        %v2384 = vpop.f32.mrf.mxu0
        %v2385 = vadd.f32 %v1732, %v2384
        %v2386 = vpop.f32.mrf.mxu0
        %2387 = vmatprep.mubr.bf16.mxu0 0
        %2388 = vmatmul.mubr.bf16.gmra.mxu0 %v1904
        %v2389 = vpop.f32.mrf.mxu0
        %v2390 = vadd.f32 %v1732, %v2389
        %v2391 = vpop.f32.mrf.mxu0
        %v2392 = vpop.f32.mrf.mxu0
        %v2393 = vadd.f32 %v1732, %v2392
        %v2394 = vpop.f32.mrf.mxu0
        %2395 = vmatprep.mubr.bf16.mxu0 0
        %2396 = vmatmul.mubr.bf16.gmra.mxu0 %v1907
        %v2397 = vpop.f32.mrf.mxu0
        %v2398 = vadd.f32 %v1732, %v2397
        %v2399 = vpop.f32.mrf.mxu0
        %v2400 = vpop.f32.mrf.mxu0
        %v2401 = vadd.f32 %v1732, %v2400
        %v2402 = vpop.f32.mrf.mxu0
        %2403 = vmatprep.mubr.bf16.mxu0 0
        %2404 = vmatmul.mubr.bf16.gmra.mxu0 %v1910
        %v2405 = vpop.f32.mrf.mxu0
        %v2406 = vadd.f32 %v1732, %v2405
        %v2407 = vpop.f32.mrf.mxu0
        %v2408 = vpop.f32.mrf.mxu0
        %v2409 = vadd.f32 %v1732, %v2408
        %v2410 = vpop.f32.mrf.mxu0
        %2411 = vmatprep.mubr.bf16.mxu0 0
        %2412 = vmatmul.mubr.bf16.gmra.mxu0 %v1913
        %v2413 = vpop.f32.mrf.mxu0
        %v2414 = vadd.f32 %v1732, %v2413
        %v2415 = vpop.f32.mrf.mxu0
        %v2416 = vpop.f32.mrf.mxu0
        %v2417 = vadd.f32 %v1732, %v2416
        %v2418 = vpop.f32.mrf.mxu0
        %2419 = vmatprep.mubr.bf16.mxu0 0
        %2420 = vmatmul.mubr.bf16.gmra.mxu0 %v1916
        %v2421 = vpop.f32.mrf.mxu0
        %v2422 = vadd.f32 %v1732, %v2421
        %v2423 = vpop.f32.mrf.mxu0
        %v2424 = vpop.f32.mrf.mxu0
        %v2425 = vadd.f32 %v1732, %v2424
        %v2426 = vpop.f32.mrf.mxu0
        %2427 = vmatprep.mubr.bf16.mxu0 0
        %2428 = vmatmul.mubr.bf16.gmra.mxu0 %v1919
        %v2429 = vpop.f32.mrf.mxu0
        %v2430 = vadd.f32 %v1732, %v2429
        %v2431 = vpop.f32.mrf.mxu0
        %v2432 = vpop.f32.mrf.mxu0
        %v2433 = vadd.f32 %v1732, %v2432
        %v2434 = vpop.f32.mrf.mxu0
        %2435 = vmatprep.mubr.bf16.mxu0 0
        %2436 = vmatmul.mubr.bf16.gmra.mxu0 %v1922
        %v2437 = vpop.f32.mrf.mxu0
        %v2438 = vadd.f32 %v1732, %v2437
        %v2439 = vpop.f32.mrf.mxu0
        %v2440 = vpop.f32.mrf.mxu0
        %v2441 = vadd.f32 %v1732, %v2440
        %v2442 = vpop.f32.mrf.mxu0
        %2443 = vmatprep.mubr.bf16.mxu0 0
        %2444 = vmatmul.mubr.bf16.gmra.mxu0 %v1925
        %v2445 = vpop.f32.mrf.mxu0
        %v2446 = vadd.f32 %v1732, %v2445
        %v2447 = vpop.f32.mrf.mxu0
        %v2448 = vpop.f32.mrf.mxu0
        %v2449 = vadd.f32 %v1732, %v2448
        %v2450 = vpop.f32.mrf.mxu0
        %2451 = vmatprep.mubr.bf16.mxu0 0
        %2452 = vmatmul.mubr.bf16.gmra.mxu0 %v1928
        %v2453 = vpop.f32.mrf.mxu0
        %v2454 = vadd.f32 %v1732, %v2453
        %v2455 = vpop.f32.mrf.mxu0
        %v2456 = vpop.f32.mrf.mxu0
        %v2457 = vadd.f32 %v1732, %v2456
        %v2458 = vpop.f32.mrf.mxu0
        %2459 = vmatprep.mubr.bf16.mxu0 0
        %2460 = vmatmul.mubr.bf16.gmra.mxu0 %v1931
        %v2461 = vpop.f32.mrf.mxu0
        %v2462 = vadd.f32 %v1732, %v2461
        %v2463 = vpop.f32.mrf.mxu0
        %v2464 = vpop.f32.mrf.mxu0
        %v2465 = vadd.f32 %v1732, %v2464
        %v2466 = vpop.f32.mrf.mxu0
        %2467 = vmatprep.mubr.bf16.mxu0 0
        %2468 = vmatmul.mubr.bf16.gmra.mxu0 %v1934
        %v2469 = vpop.f32.mrf.mxu0
        %v2470 = vadd.f32 %v1732, %v2469
        %v2471 = vpop.f32.mrf.mxu0
        %v2472 = vpop.f32.mrf.mxu0
        %v2473 = vadd.f32 %v1732, %v2472
        %v2474 = vpop.f32.mrf.mxu0
        %2475 = vmatprep.mubr.bf16.mxu0 0
        %2476 = vmatmul.mubr.bf16.gmra.mxu0 %v1937
        %v2477 = vpop.f32.mrf.mxu0
        %v2478 = vadd.f32 %v1732, %v2477
        %v2479 = vpop.f32.mrf.mxu0
        %v2480 = vpop.f32.mrf.mxu0
        %v2481 = vadd.f32 %v1732, %v2480
        %v2482 = vpop.f32.mrf.mxu0
        %2483 = vdwg.mxu0
        %v2484 = vmax.f32 %v1974, 0.0
        %v2485 = vmax.f32 %v1977, 0.0
        %v2486 = vmax.f32 %v1982, 0.0
        %v2487 = vmax.f32 %v1985, 0.0
        %v2488 = vmax.f32 %v1990, 0.0
        %v2489 = vmax.f32 %v1993, 0.0
        %v2490 = vmax.f32 %v1998, 0.0
        %v2491 = vmax.f32 %v2001, 0.0
        %v2492 = vmax.f32 %v2006, 0.0
        %v2493 = vmax.f32 %v2009, 0.0
        %v2494 = vmax.f32 %v2014, 0.0
        %v2495 = vmax.f32 %v2017, 0.0
        %v2496 = vmax.f32 %v2022, 0.0
        %v2497 = vmax.f32 %v2025, 0.0
        %v2498 = vmax.f32 %v2030, 0.0
        %v2499 = vmax.f32 %v2033, 0.0
        %v2500 = vmax.f32 %v2038, 0.0
        %v2501 = vmax.f32 %v2041, 0.0
        %v2502 = vmax.f32 %v2046, 0.0
        %v2503 = vmax.f32 %v2049, 0.0
        %v2504 = vmax.f32 %v2054, 0.0
        %v2505 = vmax.f32 %v2057, 0.0
        %v2506 = vmax.f32 %v2062, 0.0
        %v2507 = vmax.f32 %v2065, 0.0
        %v2508 = vmax.f32 %v2070, 0.0
        %v2509 = vmax.f32 %v2073, 0.0
        %v2510 = vmax.f32 %v2078, 0.0
        %v2511 = vmax.f32 %v2081, 0.0
        %v2512 = vmax.f32 %v2086, 0.0
        %v2513 = vmax.f32 %v2089, 0.0
        %v2514 = vmax.f32 %v2094, 0.0
        %v2515 = vmax.f32 %v2097, 0.0
        %v2516 = vmax.f32 %v2102, 0.0
        %v2517 = vmax.f32 %v2105, 0.0
        %v2518 = vmax.f32 %v2110, 0.0
        %v2519 = vmax.f32 %v2113, 0.0
        %v2520 = vmax.f32 %v2118, 0.0
        %v2521 = vmax.f32 %v2121, 0.0
        %v2522 = vmax.f32 %v2126, 0.0
        %v2523 = vmax.f32 %v2129, 0.0
        %v2524 = vmax.f32 %v2134, 0.0
        %v2525 = vmax.f32 %v2137, 0.0
        %v2526 = vmax.f32 %v2142, 0.0
        %v2527 = vmax.f32 %v2145, 0.0
        %v2528 = vmax.f32 %v2150, 0.0
        %v2529 = vmax.f32 %v2153, 0.0
        %v2530 = vmax.f32 %v2158, 0.0
        %v2531 = vmax.f32 %v2161, 0.0
        %v2532 = vmax.f32 %v2166, 0.0
        %v2533 = vmax.f32 %v2169, 0.0
        %v2534 = vmax.f32 %v2174, 0.0
        %v2535 = vmax.f32 %v2177, 0.0
        %v2536 = vmax.f32 %v2182, 0.0
        %v2537 = vmax.f32 %v2185, 0.0
        %v2538 = vmax.f32 %v2190, 0.0
        %v2539 = vmax.f32 %v2193, 0.0
        %v2540 = vmax.f32 %v2198, 0.0
        %v2541 = vmax.f32 %v2201, 0.0
        %v2542 = vmax.f32 %v2206, 0.0
        %v2543 = vmax.f32 %v2209, 0.0
        %v2544 = vmax.f32 %v2214, 0.0
        %v2545 = vmax.f32 %v2217, 0.0
        %v2546 = vmax.f32 %v2222, 0.0
        %v2547 = vmax.f32 %v2225, 0.0
        %v2548 = vmax.f32 %v2230, 0.0
        %v2549 = vmax.f32 %v2233, 0.0
        %v2550 = vmax.f32 %v2238, 0.0
        %v2551 = vmax.f32 %v2241, 0.0
        %v2552 = vmax.f32 %v2246, 0.0
        %v2553 = vmax.f32 %v2249, 0.0
        %v2554 = vmax.f32 %v2254, 0.0
        %v2555 = vmax.f32 %v2257, 0.0
        %v2556 = vmax.f32 %v2262, 0.0
        %v2557 = vmax.f32 %v2265, 0.0
        %v2558 = vmax.f32 %v2270, 0.0
        %v2559 = vmax.f32 %v2273, 0.0
        %v2560 = vmax.f32 %v2278, 0.0
        %v2561 = vmax.f32 %v2281, 0.0
        %v2562 = vmax.f32 %v2286, 0.0
        %v2563 = vmax.f32 %v2289, 0.0
        %v2564 = vmax.f32 %v2294, 0.0
        %v2565 = vmax.f32 %v2297, 0.0
        %v2566 = vmax.f32 %v2302, 0.0
        %v2567 = vmax.f32 %v2305, 0.0
        %v2568 = vmax.f32 %v2310, 0.0
        %v2569 = vmax.f32 %v2313, 0.0
        %v2570 = vmax.f32 %v2318, 0.0
        %v2571 = vmax.f32 %v2321, 0.0
        %v2572 = vmax.f32 %v2326, 0.0
        %v2573 = vmax.f32 %v2329, 0.0
        %v2574 = vmax.f32 %v2334, 0.0
        %v2575 = vmax.f32 %v2337, 0.0
        %v2576 = vmax.f32 %v2342, 0.0
        %v2577 = vmax.f32 %v2345, 0.0
        %v2578 = vmax.f32 %v2350, 0.0
        %v2579 = vmax.f32 %v2353, 0.0
        %v2580 = vmax.f32 %v2358, 0.0
        %v2581 = vmax.f32 %v2361, 0.0
        %v2582 = vmax.f32 %v2366, 0.0
        %v2583 = vmax.f32 %v2369, 0.0
        %v2584 = vmax.f32 %v2374, 0.0
        %v2585 = vmax.f32 %v2377, 0.0
        %v2586 = vmax.f32 %v2382, 0.0
        %v2587 = vmax.f32 %v2385, 0.0
        %v2588 = vmax.f32 %v2390, 0.0
        %v2589 = vmax.f32 %v2393, 0.0
        %v2590 = vmax.f32 %v2398, 0.0
        %v2591 = vmax.f32 %v2401, 0.0
        %v2592 = vmax.f32 %v2406, 0.0
        %v2593 = vmax.f32 %v2409, 0.0
        %v2594 = vmax.f32 %v2414, 0.0
        %v2595 = vmax.f32 %v2417, 0.0
        %v2596 = vmax.f32 %v2422, 0.0
        %v2597 = vmax.f32 %v2425, 0.0
        %v2598 = vmax.f32 %v2430, 0.0
        %v2599 = vmax.f32 %v2433, 0.0
        %v2600 = vmax.f32 %v2438, 0.0
        %v2601 = vmax.f32 %v2441, 0.0
        %v2602 = vmax.f32 %v2446, 0.0
        %v2603 = vmax.f32 %v2449, 0.0
        %v2604 = vmax.f32 %v2454, 0.0
        %v2605 = vmax.f32 %v2457, 0.0
        %v2606 = vmax.f32 %v2462, 0.0
        %v2607 = vmax.f32 %v2465, 0.0
        %v2608 = vmax.f32 %v2470, 0.0
        %v2609 = vmax.f32 %v2473, 0.0
        %v2610 = vmax.f32 %v2478, 0.0
        %v2611 = vmax.f32 %v2481, 0.0
        %v2612 = vld [vmem:[%s6] sm:$0xf]
        %v2613 = vld [vmem:[%s6 + $0x4] sm:$0xf]
        %v2614 = vld [vmem:[%s6 + $0x8] sm:$0xf]
        %v2615 = vld [vmem:[%s6 + $0xc] sm:$0xf]
        %v2616 = vld [vmem:[%s7] sm:$0x1]
        %v2617 = vpack.c.bf16 %v2485, %v2484
        %v2618 = vpack.c.bf16 %v2487, %v2486
        %v2619 = vpack.c.bf16 %v2489, %v2488
        %v2620 = vpack.c.bf16 %v2491, %v2490
        %v2621 = vpack.c.bf16 %v2493, %v2492
        %v2622 = vpack.c.bf16 %v2495, %v2494
        %v2623 = vpack.c.bf16 %v2497, %v2496
        %v2624 = vpack.c.bf16 %v2499, %v2498
        %v2625 = vpack.c.bf16 %v2501, %v2500
        %v2626 = vpack.c.bf16 %v2503, %v2502
        %v2627 = vpack.c.bf16 %v2505, %v2504
        %v2628 = vpack.c.bf16 %v2507, %v2506
        %v2629 = vpack.c.bf16 %v2509, %v2508
        %v2630 = vpack.c.bf16 %v2511, %v2510
        %v2631 = vpack.c.bf16 %v2513, %v2512
        %v2632 = vpack.c.bf16 %v2515, %v2514
        %v2633 = vpack.c.bf16 %v2517, %v2516
        %v2634 = vpack.c.bf16 %v2519, %v2518
        %v2635 = vpack.c.bf16 %v2521, %v2520
        %v2636 = vpack.c.bf16 %v2523, %v2522
        %v2637 = vpack.c.bf16 %v2525, %v2524
        %v2638 = vpack.c.bf16 %v2527, %v2526
        %v2639 = vpack.c.bf16 %v2529, %v2528
        %v2640 = vpack.c.bf16 %v2531, %v2530
        %v2641 = vpack.c.bf16 %v2533, %v2532
        %v2642 = vpack.c.bf16 %v2535, %v2534
        %v2643 = vpack.c.bf16 %v2537, %v2536
        %v2644 = vpack.c.bf16 %v2539, %v2538
        %v2645 = vpack.c.bf16 %v2541, %v2540
        %v2646 = vpack.c.bf16 %v2543, %v2542
        %v2647 = vpack.c.bf16 %v2545, %v2544
        %v2648 = vpack.c.bf16 %v2547, %v2546
        %v2649 = vpack.c.bf16 %v2549, %v2548
        %v2650 = vpack.c.bf16 %v2551, %v2550
        %v2651 = vpack.c.bf16 %v2553, %v2552
        %v2652 = vpack.c.bf16 %v2555, %v2554
        %v2653 = vpack.c.bf16 %v2557, %v2556
        %v2654 = vpack.c.bf16 %v2559, %v2558
        %v2655 = vpack.c.bf16 %v2561, %v2560
        %v2656 = vpack.c.bf16 %v2563, %v2562
        %v2657 = vpack.c.bf16 %v2565, %v2564
        %v2658 = vpack.c.bf16 %v2567, %v2566
        %v2659 = vpack.c.bf16 %v2569, %v2568
        %v2660 = vpack.c.bf16 %v2571, %v2570
        %v2661 = vpack.c.bf16 %v2573, %v2572
        %v2662 = vpack.c.bf16 %v2575, %v2574
        %v2663 = vpack.c.bf16 %v2577, %v2576
        %v2664 = vpack.c.bf16 %v2579, %v2578
        %v2665 = vpack.c.bf16 %v2581, %v2580
        %v2666 = vpack.c.bf16 %v2583, %v2582
        %v2667 = vpack.c.bf16 %v2585, %v2584
        %v2668 = vpack.c.bf16 %v2587, %v2586
        %v2669 = vpack.c.bf16 %v2589, %v2588
        %v2670 = vpack.c.bf16 %v2591, %v2590
        %v2671 = vpack.c.bf16 %v2593, %v2592
        %v2672 = vpack.c.bf16 %v2595, %v2594
        %v2673 = vpack.c.bf16 %v2597, %v2596
        %v2674 = vpack.c.bf16 %v2599, %v2598
        %v2675 = vpack.c.bf16 %v2601, %v2600
        %v2676 = vpack.c.bf16 %v2603, %v2602
        %v2677 = vpack.c.bf16 %v2605, %v2604
        %v2678 = vpack.c.bf16 %v2607, %v2606
        %v2679 = vpack.c.bf16 %v2609, %v2608
        %v2680 = vpack.c.bf16 %v2611, %v2610
        %v2682 = vlaneseq
        %v2683 = vshrl.u32 %v2682, 7
        %v2684 = vsub.s32 0, %v2683
        %v2685 = vrot.slane %v2616, %v2684
        %v2691 = vunpack.c.l.b16 %v2612
        %v2692 = vunpack.c.l.b16 %v2613
        %v2693 = vunpack.c.l.b16 %v2614
        %v2694 = vunpack.c.l.b16 %v2615
        %v2695 = vpack.c.b16 %v2692, %v2691
        %v2696 = vpack.c.b16 %v2694, %v2693
        %v2700 = vsel %vm1746, %v2617, 0
        %v2703 = vsel %vm1746, %v2618, 0
        %v2706 = vsel %vm1746, %v2619, 0
        %v2709 = vsel %vm1746, %v2620, 0
        %v2712 = vsel %vm1746, %v2621, 0
        %v2715 = vsel %vm1746, %v2622, 0
        %v2718 = vsel %vm1746, %v2623, 0
        %v2721 = vsel %vm1746, %v2624, 0
        %v2724 = vsel %vm1746, %v2625, 0
        %v2727 = vsel %vm1746, %v2626, 0
        %v2730 = vsel %vm1746, %v2627, 0
        %v2733 = vsel %vm1746, %v2628, 0
        %v2736 = vsel %vm1746, %v2629, 0
        %v2739 = vsel %vm1746, %v2630, 0
        %v2742 = vsel %vm1746, %v2631, 0
        %v2745 = vsel %vm1746, %v2632, 0
        %v2748 = vsel %vm1746, %v2633, 0
        %v2751 = vsel %vm1746, %v2634, 0
        %v2754 = vsel %vm1746, %v2635, 0
        %v2757 = vsel %vm1746, %v2636, 0
        %v2760 = vsel %vm1746, %v2637, 0
        %v2763 = vsel %vm1746, %v2638, 0
        %v2766 = vsel %vm1746, %v2639, 0
        %v2769 = vsel %vm1746, %v2640, 0
        %v2772 = vsel %vm1746, %v2641, 0
        %v2775 = vsel %vm1746, %v2642, 0
        %v2778 = vsel %vm1746, %v2643, 0
        %v2781 = vsel %vm1746, %v2644, 0
        %v2784 = vsel %vm1746, %v2645, 0
        %v2787 = vsel %vm1746, %v2646, 0
        %v2790 = vsel %vm1746, %v2647, 0
        %v2793 = vsel %vm1746, %v2648, 0
        %v2796 = vsel %vm1746, %v2649, 0
        %v2799 = vsel %vm1746, %v2650, 0
        %v2802 = vsel %vm1746, %v2651, 0
        %v2805 = vsel %vm1746, %v2652, 0
        %v2808 = vsel %vm1746, %v2653, 0
        %v2811 = vsel %vm1746, %v2654, 0
        %v2814 = vsel %vm1746, %v2655, 0
        %v2817 = vsel %vm1746, %v2656, 0
        %v2820 = vsel %vm1746, %v2657, 0
        %v2823 = vsel %vm1746, %v2658, 0
        %v2826 = vsel %vm1746, %v2659, 0
        %v2829 = vsel %vm1746, %v2660, 0
        %v2832 = vsel %vm1746, %v2661, 0
        %v2835 = vsel %vm1746, %v2662, 0
        %v2838 = vsel %vm1746, %v2663, 0
        %v2841 = vsel %vm1746, %v2664, 0
        %v2844 = vsel %vm1746, %v2665, 0
        %v2847 = vsel %vm1746, %v2666, 0
        %v2850 = vsel %vm1746, %v2667, 0
        %v2853 = vsel %vm1746, %v2668, 0
        %v2856 = vsel %vm1746, %v2669, 0
        %v2859 = vsel %vm1746, %v2670, 0
        %v2862 = vsel %vm1746, %v2671, 0
        %v2865 = vsel %vm1746, %v2672, 0
        %v2868 = vsel %vm1746, %v2673, 0
        %v2871 = vsel %vm1746, %v2674, 0
        %v2874 = vsel %vm1746, %v2675, 0
        %v2877 = vsel %vm1746, %v2676, 0
        %v2880 = vsel %vm1746, %v2677, 0
        %v2883 = vsel %vm1746, %v2678, 0
        %v2886 = vsel %vm1746, %v2679, 0
        %v2889 = vsel %vm1746, %v2680, 0
        %2891 = vmatprep.subr.bf16.mxu0 0
        %2892 = vmatpush1.bf16.msra.mxu0 0
        %2893 = vmatprep.subr.bf16.mxu0 0
        %2894 = vmatpush1.bf16.msra.mxu0 0
        %2895 = vmatprep.subr.bf16.mxu0 0
        %2896 = vmatpush1.bf16.msra.mxu0 0
        %2897 = vmatprep.subr.bf16.mxu0 0
        %2898 = vmatpush1.bf16.msra.mxu0 0
        %2899 = vmatprep.subr.bf16.mxu0 0
        %2900 = vmatpush1.bf16.msra.mxu0 0
        %2901 = vmatprep.subr.bf16.mxu0 0
        %2902 = vmatpush1.bf16.msra.mxu0 0
        %2903 = vmatprep.subr.bf16.mxu0 0
        %2904 = vmatpush1.bf16.msra.mxu0 %v2696
        %2905 = vmatprep.subr.bf16.mxu0 0
        %2906 = vmatpush1.bf16.msra.mxu0 %v2695
        %2907 = vmatprep.subr.bf16.mxu0 0
        %2908 = vmatpush2.bf16.msra.mxu0 0
        %2909 = vmatprep.subr.bf16.mxu0 0
        %2910 = vmatpush2.bf16.msra.mxu0 0
        %2911 = vmatprep.subr.bf16.mxu0 0
        %2912 = vmatpush2.bf16.msra.mxu0 0
        %2913 = vmatprep.subr.bf16.mxu0 0
        %2914 = vmatpush2.bf16.msra.mxu0 0
        %2915 = vmatprep.subr.bf16.mxu0 0
        %2916 = vmatpush2.bf16.msra.mxu0 0
        %2917 = vmatprep.subr.bf16.mxu0 0
        %2918 = vmatpush2.bf16.msra.mxu0 0
        %2919 = vmatprep.subr.bf16.mxu0 0
        %2920 = vmatpush2.bf16.msra.mxu0 0
        %2921 = vmatprep.subr.bf16.mxu0 0
        %2922 = vmatpush2.bf16.msra.mxu0 0
        %2923 = vmatprep.mubr.bf16.mxu0 0
        %2924 = vmatmul.mubr.bf16.gmra.mxu0 %v2700
        %v2925 = vpop.f32.mrf.mxu0
        %v2926 = vadd.f32 %v2685, %v2925
        %v2927 = vpop.f32.mrf.mxu0
        %v2928 = vpop.f32.mrf.mxu0
        %v2929 = vadd.f32 %v2685, %v2928
        %v2930 = vpop.f32.mrf.mxu0
        %2931 = vmatprep.mubr.bf16.mxu0 0
        %2932 = vmatmul.mubr.bf16.gmra.mxu0 %v2703
        %v2933 = vpop.f32.mrf.mxu0
        %v2934 = vadd.f32 %v2685, %v2933
        %v2935 = vpop.f32.mrf.mxu0
        %v2936 = vpop.f32.mrf.mxu0
        %v2937 = vadd.f32 %v2685, %v2936
        %v2938 = vpop.f32.mrf.mxu0
        %2939 = vmatprep.mubr.bf16.mxu0 0
        %2940 = vmatmul.mubr.bf16.gmra.mxu0 %v2706
        %v2941 = vpop.f32.mrf.mxu0
        %v2942 = vadd.f32 %v2685, %v2941
        %v2943 = vpop.f32.mrf.mxu0
        %v2944 = vpop.f32.mrf.mxu0
        %v2945 = vadd.f32 %v2685, %v2944
        %v2946 = vpop.f32.mrf.mxu0
        %2947 = vmatprep.mubr.bf16.mxu0 0
        %2948 = vmatmul.mubr.bf16.gmra.mxu0 %v2709
        %v2949 = vpop.f32.mrf.mxu0
        %v2950 = vadd.f32 %v2685, %v2949
        %v2951 = vpop.f32.mrf.mxu0
        %v2952 = vpop.f32.mrf.mxu0
        %v2953 = vadd.f32 %v2685, %v2952
        %v2954 = vpop.f32.mrf.mxu0
        %2955 = vmatprep.mubr.bf16.mxu0 0
        %2956 = vmatmul.mubr.bf16.gmra.mxu0 %v2712
        %v2957 = vpop.f32.mrf.mxu0
        %v2958 = vadd.f32 %v2685, %v2957
        %v2959 = vpop.f32.mrf.mxu0
        %v2960 = vpop.f32.mrf.mxu0
        %v2961 = vadd.f32 %v2685, %v2960
        %v2962 = vpop.f32.mrf.mxu0
        %2963 = vmatprep.mubr.bf16.mxu0 0
        %2964 = vmatmul.mubr.bf16.gmra.mxu0 %v2715
        %v2965 = vpop.f32.mrf.mxu0
        %v2966 = vadd.f32 %v2685, %v2965
        %v2967 = vpop.f32.mrf.mxu0
        %v2968 = vpop.f32.mrf.mxu0
        %v2969 = vadd.f32 %v2685, %v2968
        %v2970 = vpop.f32.mrf.mxu0
        %2971 = vmatprep.mubr.bf16.mxu0 0
        %2972 = vmatmul.mubr.bf16.gmra.mxu0 %v2718
        %v2973 = vpop.f32.mrf.mxu0
        %v2974 = vadd.f32 %v2685, %v2973
        %v2975 = vpop.f32.mrf.mxu0
        %v2976 = vpop.f32.mrf.mxu0
        %v2977 = vadd.f32 %v2685, %v2976
        %v2978 = vpop.f32.mrf.mxu0
        %2979 = vmatprep.mubr.bf16.mxu0 0
        %2980 = vmatmul.mubr.bf16.gmra.mxu0 %v2721
        %v2981 = vpop.f32.mrf.mxu0
        %v2982 = vadd.f32 %v2685, %v2981
        %v2983 = vpop.f32.mrf.mxu0
        %v2984 = vpop.f32.mrf.mxu0
        %v2985 = vadd.f32 %v2685, %v2984
        %v2986 = vpop.f32.mrf.mxu0
        %2987 = vmatprep.mubr.bf16.mxu0 0
        %2988 = vmatmul.mubr.bf16.gmra.mxu0 %v2724
        %v2989 = vpop.f32.mrf.mxu0
        %v2990 = vadd.f32 %v2685, %v2989
        %v2991 = vpop.f32.mrf.mxu0
        %v2992 = vpop.f32.mrf.mxu0
        %v2993 = vadd.f32 %v2685, %v2992
        %v2994 = vpop.f32.mrf.mxu0
        %2995 = vmatprep.mubr.bf16.mxu0 0
        %2996 = vmatmul.mubr.bf16.gmra.mxu0 %v2727
        %v2997 = vpop.f32.mrf.mxu0
        %v2998 = vadd.f32 %v2685, %v2997
        %v2999 = vpop.f32.mrf.mxu0
        %v3000 = vpop.f32.mrf.mxu0
        %v3001 = vadd.f32 %v2685, %v3000
        %v3002 = vpop.f32.mrf.mxu0
        %3003 = vmatprep.mubr.bf16.mxu0 0
        %3004 = vmatmul.mubr.bf16.gmra.mxu0 %v2730
        %v3005 = vpop.f32.mrf.mxu0
        %v3006 = vadd.f32 %v2685, %v3005
        %v3007 = vpop.f32.mrf.mxu0
        %v3008 = vpop.f32.mrf.mxu0
        %v3009 = vadd.f32 %v2685, %v3008
        %v3010 = vpop.f32.mrf.mxu0
        %3011 = vmatprep.mubr.bf16.mxu0 0
        %3012 = vmatmul.mubr.bf16.gmra.mxu0 %v2733
        %v3013 = vpop.f32.mrf.mxu0
        %v3014 = vadd.f32 %v2685, %v3013
        %v3015 = vpop.f32.mrf.mxu0
        %v3016 = vpop.f32.mrf.mxu0
        %v3017 = vadd.f32 %v2685, %v3016
        %v3018 = vpop.f32.mrf.mxu0
        %3019 = vmatprep.mubr.bf16.mxu0 0
        %3020 = vmatmul.mubr.bf16.gmra.mxu0 %v2736
        %v3021 = vpop.f32.mrf.mxu0
        %v3022 = vadd.f32 %v2685, %v3021
        %v3023 = vpop.f32.mrf.mxu0
        %v3024 = vpop.f32.mrf.mxu0
        %v3025 = vadd.f32 %v2685, %v3024
        %v3026 = vpop.f32.mrf.mxu0
        %3027 = vmatprep.mubr.bf16.mxu0 0
        %3028 = vmatmul.mubr.bf16.gmra.mxu0 %v2739
        %v3029 = vpop.f32.mrf.mxu0
        %v3030 = vadd.f32 %v2685, %v3029
        %v3031 = vpop.f32.mrf.mxu0
        %v3032 = vpop.f32.mrf.mxu0
        %v3033 = vadd.f32 %v2685, %v3032
        %v3034 = vpop.f32.mrf.mxu0
        %3035 = vmatprep.mubr.bf16.mxu0 0
        %3036 = vmatmul.mubr.bf16.gmra.mxu0 %v2742
        %v3037 = vpop.f32.mrf.mxu0
        %v3038 = vadd.f32 %v2685, %v3037
        %v3039 = vpop.f32.mrf.mxu0
        %v3040 = vpop.f32.mrf.mxu0
        %v3041 = vadd.f32 %v2685, %v3040
        %v3042 = vpop.f32.mrf.mxu0
        %3043 = vmatprep.mubr.bf16.mxu0 0
        %3044 = vmatmul.mubr.bf16.gmra.mxu0 %v2745
        %v3045 = vpop.f32.mrf.mxu0
        %v3046 = vadd.f32 %v2685, %v3045
        %v3047 = vpop.f32.mrf.mxu0
        %v3048 = vpop.f32.mrf.mxu0
        %v3049 = vadd.f32 %v2685, %v3048
        %v3050 = vpop.f32.mrf.mxu0
        %3051 = vmatprep.mubr.bf16.mxu0 0
        %3052 = vmatmul.mubr.bf16.gmra.mxu0 %v2748
        %v3053 = vpop.f32.mrf.mxu0
        %v3054 = vadd.f32 %v2685, %v3053
        %v3055 = vpop.f32.mrf.mxu0
        %v3056 = vpop.f32.mrf.mxu0
        %v3057 = vadd.f32 %v2685, %v3056
        %v3058 = vpop.f32.mrf.mxu0
        %3059 = vmatprep.mubr.bf16.mxu0 0
        %3060 = vmatmul.mubr.bf16.gmra.mxu0 %v2751
        %v3061 = vpop.f32.mrf.mxu0
        %v3062 = vadd.f32 %v2685, %v3061
        %v3063 = vpop.f32.mrf.mxu0
        %v3064 = vpop.f32.mrf.mxu0
        %v3065 = vadd.f32 %v2685, %v3064
        %v3066 = vpop.f32.mrf.mxu0
        %3067 = vmatprep.mubr.bf16.mxu0 0
        %3068 = vmatmul.mubr.bf16.gmra.mxu0 %v2754
        %v3069 = vpop.f32.mrf.mxu0
        %v3070 = vadd.f32 %v2685, %v3069
        %v3071 = vpop.f32.mrf.mxu0
        %v3072 = vpop.f32.mrf.mxu0
        %v3073 = vadd.f32 %v2685, %v3072
        %v3074 = vpop.f32.mrf.mxu0
        %3075 = vmatprep.mubr.bf16.mxu0 0
        %3076 = vmatmul.mubr.bf16.gmra.mxu0 %v2757
        %v3077 = vpop.f32.mrf.mxu0
        %v3078 = vadd.f32 %v2685, %v3077
        %v3079 = vpop.f32.mrf.mxu0
        %v3080 = vpop.f32.mrf.mxu0
        %v3081 = vadd.f32 %v2685, %v3080
        %v3082 = vpop.f32.mrf.mxu0
        %3083 = vmatprep.mubr.bf16.mxu0 0
        %3084 = vmatmul.mubr.bf16.gmra.mxu0 %v2760
        %v3085 = vpop.f32.mrf.mxu0
        %v3086 = vadd.f32 %v2685, %v3085
        %v3087 = vpop.f32.mrf.mxu0
        %v3088 = vpop.f32.mrf.mxu0
        %v3089 = vadd.f32 %v2685, %v3088
        %v3090 = vpop.f32.mrf.mxu0
        %3091 = vmatprep.mubr.bf16.mxu0 0
        %3092 = vmatmul.mubr.bf16.gmra.mxu0 %v2763
        %v3093 = vpop.f32.mrf.mxu0
        %v3094 = vadd.f32 %v2685, %v3093
        %v3095 = vpop.f32.mrf.mxu0
        %v3096 = vpop.f32.mrf.mxu0
        %v3097 = vadd.f32 %v2685, %v3096
        %v3098 = vpop.f32.mrf.mxu0
        %3099 = vmatprep.mubr.bf16.mxu0 0
        %3100 = vmatmul.mubr.bf16.gmra.mxu0 %v2766
        %v3101 = vpop.f32.mrf.mxu0
        %v3102 = vadd.f32 %v2685, %v3101
        %v3103 = vpop.f32.mrf.mxu0
        %v3104 = vpop.f32.mrf.mxu0
        %v3105 = vadd.f32 %v2685, %v3104
        %v3106 = vpop.f32.mrf.mxu0
        %3107 = vmatprep.mubr.bf16.mxu0 0
        %3108 = vmatmul.mubr.bf16.gmra.mxu0 %v2769
        %v3109 = vpop.f32.mrf.mxu0
        %v3110 = vadd.f32 %v2685, %v3109
        %v3111 = vpop.f32.mrf.mxu0
        %v3112 = vpop.f32.mrf.mxu0
        %v3113 = vadd.f32 %v2685, %v3112
        %v3114 = vpop.f32.mrf.mxu0
        %3115 = vmatprep.mubr.bf16.mxu0 0
        %3116 = vmatmul.mubr.bf16.gmra.mxu0 %v2772
        %v3117 = vpop.f32.mrf.mxu0
        %v3118 = vadd.f32 %v2685, %v3117
        %v3119 = vpop.f32.mrf.mxu0
        %v3120 = vpop.f32.mrf.mxu0
        %v3121 = vadd.f32 %v2685, %v3120
        %v3122 = vpop.f32.mrf.mxu0
        %3123 = vmatprep.mubr.bf16.mxu0 0
        %3124 = vmatmul.mubr.bf16.gmra.mxu0 %v2775
        %v3125 = vpop.f32.mrf.mxu0
        %v3126 = vadd.f32 %v2685, %v3125
        %v3127 = vpop.f32.mrf.mxu0
        %v3128 = vpop.f32.mrf.mxu0
        %v3129 = vadd.f32 %v2685, %v3128
        %v3130 = vpop.f32.mrf.mxu0
        %3131 = vmatprep.mubr.bf16.mxu0 0
        %3132 = vmatmul.mubr.bf16.gmra.mxu0 %v2778
        %v3133 = vpop.f32.mrf.mxu0
        %v3134 = vadd.f32 %v2685, %v3133
        %v3135 = vpop.f32.mrf.mxu0
        %v3136 = vpop.f32.mrf.mxu0
        %v3137 = vadd.f32 %v2685, %v3136
        %v3138 = vpop.f32.mrf.mxu0
        %3139 = vmatprep.mubr.bf16.mxu0 0
        %3140 = vmatmul.mubr.bf16.gmra.mxu0 %v2781
        %v3141 = vpop.f32.mrf.mxu0
        %v3142 = vadd.f32 %v2685, %v3141
        %v3143 = vpop.f32.mrf.mxu0
        %v3144 = vpop.f32.mrf.mxu0
        %v3145 = vadd.f32 %v2685, %v3144
        %v3146 = vpop.f32.mrf.mxu0
        %3147 = vmatprep.mubr.bf16.mxu0 0
        %3148 = vmatmul.mubr.bf16.gmra.mxu0 %v2784
        %v3149 = vpop.f32.mrf.mxu0
        %v3150 = vadd.f32 %v2685, %v3149
        %v3151 = vpop.f32.mrf.mxu0
        %v3152 = vpop.f32.mrf.mxu0
        %v3153 = vadd.f32 %v2685, %v3152
        %v3154 = vpop.f32.mrf.mxu0
        %3155 = vmatprep.mubr.bf16.mxu0 0
        %3156 = vmatmul.mubr.bf16.gmra.mxu0 %v2787
        %v3157 = vpop.f32.mrf.mxu0
        %v3158 = vadd.f32 %v2685, %v3157
        %v3159 = vpop.f32.mrf.mxu0
        %v3160 = vpop.f32.mrf.mxu0
        %v3161 = vadd.f32 %v2685, %v3160
        %v3162 = vpop.f32.mrf.mxu0
        %3163 = vmatprep.mubr.bf16.mxu0 0
        %3164 = vmatmul.mubr.bf16.gmra.mxu0 %v2790
        %v3165 = vpop.f32.mrf.mxu0
        %v3166 = vadd.f32 %v2685, %v3165
        %v3167 = vpop.f32.mrf.mxu0
        %v3168 = vpop.f32.mrf.mxu0
        %v3169 = vadd.f32 %v2685, %v3168
        %v3170 = vpop.f32.mrf.mxu0
        %3171 = vmatprep.mubr.bf16.mxu0 0
        %3172 = vmatmul.mubr.bf16.gmra.mxu0 %v2793
        %v3173 = vpop.f32.mrf.mxu0
        %v3174 = vadd.f32 %v2685, %v3173
        %v3175 = vpop.f32.mrf.mxu0
        %v3176 = vpop.f32.mrf.mxu0
        %v3177 = vadd.f32 %v2685, %v3176
        %v3178 = vpop.f32.mrf.mxu0
        %3179 = vmatprep.mubr.bf16.mxu0 0
        %3180 = vmatmul.mubr.bf16.gmra.mxu0 %v2796
        %v3181 = vpop.f32.mrf.mxu0
        %v3182 = vadd.f32 %v2685, %v3181
        %v3183 = vpop.f32.mrf.mxu0
        %v3184 = vpop.f32.mrf.mxu0
        %v3185 = vadd.f32 %v2685, %v3184
        %v3186 = vpop.f32.mrf.mxu0
        %3187 = vmatprep.mubr.bf16.mxu0 0
        %3188 = vmatmul.mubr.bf16.gmra.mxu0 %v2799
        %v3189 = vpop.f32.mrf.mxu0
        %v3190 = vadd.f32 %v2685, %v3189
        %v3191 = vpop.f32.mrf.mxu0
        %v3192 = vpop.f32.mrf.mxu0
        %v3193 = vadd.f32 %v2685, %v3192
        %v3194 = vpop.f32.mrf.mxu0
        %3195 = vmatprep.mubr.bf16.mxu0 0
        %3196 = vmatmul.mubr.bf16.gmra.mxu0 %v2802
        %v3197 = vpop.f32.mrf.mxu0
        %v3198 = vadd.f32 %v2685, %v3197
        %v3199 = vpop.f32.mrf.mxu0
        %v3200 = vpop.f32.mrf.mxu0
        %v3201 = vadd.f32 %v2685, %v3200
        %v3202 = vpop.f32.mrf.mxu0
        %3203 = vmatprep.mubr.bf16.mxu0 0
        %3204 = vmatmul.mubr.bf16.gmra.mxu0 %v2805
        %v3205 = vpop.f32.mrf.mxu0
        %v3206 = vadd.f32 %v2685, %v3205
        %v3207 = vpop.f32.mrf.mxu0
        %v3208 = vpop.f32.mrf.mxu0
        %v3209 = vadd.f32 %v2685, %v3208
        %v3210 = vpop.f32.mrf.mxu0
        %3211 = vmatprep.mubr.bf16.mxu0 0
        %3212 = vmatmul.mubr.bf16.gmra.mxu0 %v2808
        %v3213 = vpop.f32.mrf.mxu0
        %v3214 = vadd.f32 %v2685, %v3213
        %v3215 = vpop.f32.mrf.mxu0
        %v3216 = vpop.f32.mrf.mxu0
        %v3217 = vadd.f32 %v2685, %v3216
        %v3218 = vpop.f32.mrf.mxu0
        %3219 = vmatprep.mubr.bf16.mxu0 0
        %3220 = vmatmul.mubr.bf16.gmra.mxu0 %v2811
        %v3221 = vpop.f32.mrf.mxu0
        %v3222 = vadd.f32 %v2685, %v3221
        %v3223 = vpop.f32.mrf.mxu0
        %v3224 = vpop.f32.mrf.mxu0
        %v3225 = vadd.f32 %v2685, %v3224
        %v3226 = vpop.f32.mrf.mxu0
        %3227 = vmatprep.mubr.bf16.mxu0 0
        %3228 = vmatmul.mubr.bf16.gmra.mxu0 %v2814
        %v3229 = vpop.f32.mrf.mxu0
        %v3230 = vadd.f32 %v2685, %v3229
        %v3231 = vpop.f32.mrf.mxu0
        %v3232 = vpop.f32.mrf.mxu0
        %v3233 = vadd.f32 %v2685, %v3232
        %v3234 = vpop.f32.mrf.mxu0
        %3235 = vmatprep.mubr.bf16.mxu0 0
        %3236 = vmatmul.mubr.bf16.gmra.mxu0 %v2817
        %v3237 = vpop.f32.mrf.mxu0
        %v3238 = vadd.f32 %v2685, %v3237
        %v3239 = vpop.f32.mrf.mxu0
        %v3240 = vpop.f32.mrf.mxu0
        %v3241 = vadd.f32 %v2685, %v3240
        %v3242 = vpop.f32.mrf.mxu0
        %3243 = vmatprep.mubr.bf16.mxu0 0
        %3244 = vmatmul.mubr.bf16.gmra.mxu0 %v2820
        %v3245 = vpop.f32.mrf.mxu0
        %v3246 = vadd.f32 %v2685, %v3245
        %v3247 = vpop.f32.mrf.mxu0
        %v3248 = vpop.f32.mrf.mxu0
        %v3249 = vadd.f32 %v2685, %v3248
        %v3250 = vpop.f32.mrf.mxu0
        %3251 = vmatprep.mubr.bf16.mxu0 0
        %3252 = vmatmul.mubr.bf16.gmra.mxu0 %v2823
        %v3253 = vpop.f32.mrf.mxu0
        %v3254 = vadd.f32 %v2685, %v3253
        %v3255 = vpop.f32.mrf.mxu0
        %v3256 = vpop.f32.mrf.mxu0
        %v3257 = vadd.f32 %v2685, %v3256
        %v3258 = vpop.f32.mrf.mxu0
        %3259 = vmatprep.mubr.bf16.mxu0 0
        %3260 = vmatmul.mubr.bf16.gmra.mxu0 %v2826
        %v3261 = vpop.f32.mrf.mxu0
        %v3262 = vadd.f32 %v2685, %v3261
        %v3263 = vpop.f32.mrf.mxu0
        %v3264 = vpop.f32.mrf.mxu0
        %v3265 = vadd.f32 %v2685, %v3264
        %v3266 = vpop.f32.mrf.mxu0
        %3267 = vmatprep.mubr.bf16.mxu0 0
        %3268 = vmatmul.mubr.bf16.gmra.mxu0 %v2829
        %v3269 = vpop.f32.mrf.mxu0
        %v3270 = vadd.f32 %v2685, %v3269
        %v3271 = vpop.f32.mrf.mxu0
        %v3272 = vpop.f32.mrf.mxu0
        %v3273 = vadd.f32 %v2685, %v3272
        %v3274 = vpop.f32.mrf.mxu0
        %3275 = vmatprep.mubr.bf16.mxu0 0
        %3276 = vmatmul.mubr.bf16.gmra.mxu0 %v2832
        %v3277 = vpop.f32.mrf.mxu0
        %v3278 = vadd.f32 %v2685, %v3277
        %v3279 = vpop.f32.mrf.mxu0
        %v3280 = vpop.f32.mrf.mxu0
        %v3281 = vadd.f32 %v2685, %v3280
        %v3282 = vpop.f32.mrf.mxu0
        %3283 = vmatprep.mubr.bf16.mxu0 0
        %3284 = vmatmul.mubr.bf16.gmra.mxu0 %v2835
        %v3285 = vpop.f32.mrf.mxu0
        %v3286 = vadd.f32 %v2685, %v3285
        %v3287 = vpop.f32.mrf.mxu0
        %v3288 = vpop.f32.mrf.mxu0
        %v3289 = vadd.f32 %v2685, %v3288
        %v3290 = vpop.f32.mrf.mxu0
        %3291 = vmatprep.mubr.bf16.mxu0 0
        %3292 = vmatmul.mubr.bf16.gmra.mxu0 %v2838
        %v3293 = vpop.f32.mrf.mxu0
        %v3294 = vadd.f32 %v2685, %v3293
        %v3295 = vpop.f32.mrf.mxu0
        %v3296 = vpop.f32.mrf.mxu0
        %v3297 = vadd.f32 %v2685, %v3296
        %v3298 = vpop.f32.mrf.mxu0
        %3299 = vmatprep.mubr.bf16.mxu0 0
        %3300 = vmatmul.mubr.bf16.gmra.mxu0 %v2841
        %v3301 = vpop.f32.mrf.mxu0
        %v3302 = vadd.f32 %v2685, %v3301
        %v3303 = vpop.f32.mrf.mxu0
        %v3304 = vpop.f32.mrf.mxu0
        %v3305 = vadd.f32 %v2685, %v3304
        %v3306 = vpop.f32.mrf.mxu0
        %3307 = vmatprep.mubr.bf16.mxu0 0
        %3308 = vmatmul.mubr.bf16.gmra.mxu0 %v2844
        %v3309 = vpop.f32.mrf.mxu0
        %v3310 = vadd.f32 %v2685, %v3309
        %v3311 = vpop.f32.mrf.mxu0
        %v3312 = vpop.f32.mrf.mxu0
        %v3313 = vadd.f32 %v2685, %v3312
        %v3314 = vpop.f32.mrf.mxu0
        %3315 = vmatprep.mubr.bf16.mxu0 0
        %3316 = vmatmul.mubr.bf16.gmra.mxu0 %v2847
        %v3317 = vpop.f32.mrf.mxu0
        %v3318 = vadd.f32 %v2685, %v3317
        %v3319 = vpop.f32.mrf.mxu0
        %v3320 = vpop.f32.mrf.mxu0
        %v3321 = vadd.f32 %v2685, %v3320
        %v3322 = vpop.f32.mrf.mxu0
        %3323 = vmatprep.mubr.bf16.mxu0 0
        %3324 = vmatmul.mubr.bf16.gmra.mxu0 %v2850
        %v3325 = vpop.f32.mrf.mxu0
        %v3326 = vadd.f32 %v2685, %v3325
        %v3327 = vpop.f32.mrf.mxu0
        %v3328 = vpop.f32.mrf.mxu0
        %v3329 = vadd.f32 %v2685, %v3328
        %v3330 = vpop.f32.mrf.mxu0
        %3331 = vmatprep.mubr.bf16.mxu0 0
        %3332 = vmatmul.mubr.bf16.gmra.mxu0 %v2853
        %v3333 = vpop.f32.mrf.mxu0
        %v3334 = vadd.f32 %v2685, %v3333
        %v3335 = vpop.f32.mrf.mxu0
        %v3336 = vpop.f32.mrf.mxu0
        %v3337 = vadd.f32 %v2685, %v3336
        %v3338 = vpop.f32.mrf.mxu0
        %3339 = vmatprep.mubr.bf16.mxu0 0
        %3340 = vmatmul.mubr.bf16.gmra.mxu0 %v2856
        %v3341 = vpop.f32.mrf.mxu0
        %v3342 = vadd.f32 %v2685, %v3341
        %v3343 = vpop.f32.mrf.mxu0
        %v3344 = vpop.f32.mrf.mxu0
        %v3345 = vadd.f32 %v2685, %v3344
        %v3346 = vpop.f32.mrf.mxu0
        %3347 = vmatprep.mubr.bf16.mxu0 0
        %3348 = vmatmul.mubr.bf16.gmra.mxu0 %v2859
        %v3349 = vpop.f32.mrf.mxu0
        %v3350 = vadd.f32 %v2685, %v3349
        %v3351 = vpop.f32.mrf.mxu0
        %v3352 = vpop.f32.mrf.mxu0
        %v3353 = vadd.f32 %v2685, %v3352
        %v3354 = vpop.f32.mrf.mxu0
        %3355 = vmatprep.mubr.bf16.mxu0 0
        %3356 = vmatmul.mubr.bf16.gmra.mxu0 %v2862
        %v3357 = vpop.f32.mrf.mxu0
        %v3358 = vadd.f32 %v2685, %v3357
        %v3359 = vpop.f32.mrf.mxu0
        %v3360 = vpop.f32.mrf.mxu0
        %v3361 = vadd.f32 %v2685, %v3360
        %v3362 = vpop.f32.mrf.mxu0
        %3363 = vmatprep.mubr.bf16.mxu0 0
        %3364 = vmatmul.mubr.bf16.gmra.mxu0 %v2865
        %v3365 = vpop.f32.mrf.mxu0
        %v3366 = vadd.f32 %v2685, %v3365
        %v3367 = vpop.f32.mrf.mxu0
        %v3368 = vpop.f32.mrf.mxu0
        %v3369 = vadd.f32 %v2685, %v3368
        %v3370 = vpop.f32.mrf.mxu0
        %3371 = vmatprep.mubr.bf16.mxu0 0
        %3372 = vmatmul.mubr.bf16.gmra.mxu0 %v2868
        %v3373 = vpop.f32.mrf.mxu0
        %v3374 = vadd.f32 %v2685, %v3373
        %v3375 = vpop.f32.mrf.mxu0
        %v3376 = vpop.f32.mrf.mxu0
        %v3377 = vadd.f32 %v2685, %v3376
        %v3378 = vpop.f32.mrf.mxu0
        %3379 = vmatprep.mubr.bf16.mxu0 0
        %3380 = vmatmul.mubr.bf16.gmra.mxu0 %v2871
        %v3381 = vpop.f32.mrf.mxu0
        %v3382 = vadd.f32 %v2685, %v3381
        %v3383 = vpop.f32.mrf.mxu0
        %v3384 = vpop.f32.mrf.mxu0
        %v3385 = vadd.f32 %v2685, %v3384
        %v3386 = vpop.f32.mrf.mxu0
        %3387 = vmatprep.mubr.bf16.mxu0 0
        %3388 = vmatmul.mubr.bf16.gmra.mxu0 %v2874
        %v3389 = vpop.f32.mrf.mxu0
        %v3390 = vadd.f32 %v2685, %v3389
        %v3391 = vpop.f32.mrf.mxu0
        %v3392 = vpop.f32.mrf.mxu0
        %v3393 = vadd.f32 %v2685, %v3392
        %v3394 = vpop.f32.mrf.mxu0
        %3395 = vmatprep.mubr.bf16.mxu0 0
        %3396 = vmatmul.mubr.bf16.gmra.mxu0 %v2877
        %v3397 = vpop.f32.mrf.mxu0
        %v3398 = vadd.f32 %v2685, %v3397
        %v3399 = vpop.f32.mrf.mxu0
        %v3400 = vpop.f32.mrf.mxu0
        %v3401 = vadd.f32 %v2685, %v3400
        %v3402 = vpop.f32.mrf.mxu0
        %3403 = vmatprep.mubr.bf16.mxu0 0
        %3404 = vmatmul.mubr.bf16.gmra.mxu0 %v2880
        %v3405 = vpop.f32.mrf.mxu0
        %v3406 = vadd.f32 %v2685, %v3405
        %v3407 = vpop.f32.mrf.mxu0
        %v3408 = vpop.f32.mrf.mxu0
        %v3409 = vadd.f32 %v2685, %v3408
        %v3410 = vpop.f32.mrf.mxu0
        %3411 = vmatprep.mubr.bf16.mxu0 0
        %3412 = vmatmul.mubr.bf16.gmra.mxu0 %v2883
        %v3413 = vpop.f32.mrf.mxu0
        %v3414 = vadd.f32 %v2685, %v3413
        %v3415 = vpop.f32.mrf.mxu0
        %v3416 = vpop.f32.mrf.mxu0
        %v3417 = vadd.f32 %v2685, %v3416
        %v3418 = vpop.f32.mrf.mxu0
        %3419 = vmatprep.mubr.bf16.mxu0 0
        %3420 = vmatmul.mubr.bf16.gmra.mxu0 %v2886
        %v3421 = vpop.f32.mrf.mxu0
        %v3422 = vadd.f32 %v2685, %v3421
        %v3423 = vpop.f32.mrf.mxu0
        %v3424 = vpop.f32.mrf.mxu0
        %v3425 = vadd.f32 %v2685, %v3424
        %v3426 = vpop.f32.mrf.mxu0
        %3427 = vmatprep.mubr.bf16.mxu0 0
        %3428 = vmatmul.mubr.bf16.gmra.mxu0 %v2889
        %v3429 = vpop.f32.mrf.mxu0
        %v3430 = vadd.f32 %v2685, %v3429
        %v3431 = vpop.f32.mrf.mxu0
        %v3432 = vpop.f32.mrf.mxu0
        %v3433 = vadd.f32 %v2685, %v3432
        %v3434 = vpop.f32.mrf.mxu0
        %3435 = vdwg.mxu0
        %v3436 = vld [vmem:[%s326] sm:$0x77]
        %v3437 = vld [vmem:[%s326 + $0x8] sm:$0x77]
        %v3438 = vld [vmem:[%s326 + $0x10] sm:$0x77]
        %v3439 = vld [vmem:[%s326 + $0x18] sm:$0x77]
        %v3440 = vmul.f32 %v3436, -0.48860252
        %v3441 = vmul.f32 %v3437, -0.48860252
        %v3442 = vmul.f32 %v3438, -0.48860252
        %v3443 = vmul.f32 %v3439, -0.48860252
        %v3444 = vmul.f32 %v3436, 0.48860252
        %v3445 = vmul.f32 %v3437, 0.48860252
        %v3446 = vmul.f32 %v3438, 0.48860252
        %v3447 = vmul.f32 %v3439, 0.48860252
        %v3448 = vmul.f32 %v3436, %v3436
        %v3449 = vmul.f32 %v3437, %v3437
        %v3450 = vmul.f32 %v3438, %v3438
        %v3451 = vmul.f32 %v3439, %v3439
        %v3456 = vrot.slane %v3436, 5
        %v3457 = vrot.slane %v3456, 4
        %v3458 = vrot.slane %v3437, 5
        %v3459 = vrot.slane %v3458, 4
        %v3460 = vrot.slane %v3438, 5
        %v3461 = vrot.slane %v3460, 4
        %v3462 = vrot.slane %v3439, 5
        %v3463 = vrot.slane %v3462, 4
        %v3468 = vmul.f32 %v3436, %v3457
        %v3469 = vmul.f32 %v3437, %v3459
        %v3470 = vmul.f32 %v3438, %v3461
        %v3471 = vmul.f32 %v3439, %v3463
        %v3472 = vrot.slane %v3436, 6
        %v3473 = vrot.slane %v3472, 4
        %v3474 = vrot.slane %v3437, 6
        %v3475 = vrot.slane %v3474, 4
        %v3476 = vrot.slane %v3438, 6
        %v3477 = vrot.slane %v3476, 4
        %v3478 = vrot.slane %v3439, 6
        %v3479 = vrot.slane %v3478, 4
        %v3484 = vmul.f32 %v3436, %v3473
        %v3485 = vmul.f32 %v3437, %v3475
        %v3486 = vmul.f32 %v3438, %v3477
        %v3487 = vmul.f32 %v3439, %v3479
        %v3488 = vmul.f32 %v3468, 1.0925485
        %v3489 = vmul.f32 %v3469, 1.0925485
        %v3490 = vmul.f32 %v3470, 1.0925485
        %v3491 = vmul.f32 %v3471, 1.0925485
        %v3492 = vmul.f32 %v3468, -1.0925485
        %v3493 = vmul.f32 %v3469, -1.0925485
        %v3494 = vmul.f32 %v3470, -1.0925485
        %v3495 = vmul.f32 %v3471, -1.0925485
        %v3496 = vmul.f32 %v3448, 2.0
        %v3497 = vmul.f32 %v3449, 2.0
        %v3498 = vmul.f32 %v3450, 2.0
        %v3499 = vmul.f32 %v3451, 2.0
        %v3504 = vrot.slane %v3448, 6
        %v3505 = vrot.slane %v3449, 6
        %v3506 = vrot.slane %v3450, 6
        %v3507 = vrot.slane %v3451, 6
        %v3512 = vsub.f32 %v3496, %v3504
        %v3513 = vsub.f32 %v3497, %v3505
        %v3514 = vsub.f32 %v3498, %v3506
        %v3515 = vsub.f32 %v3499, %v3507
        %v3516 = vrot.slane %v3448, 7
        %v3517 = vrot.slane %v3449, 7
        %v3518 = vrot.slane %v3450, 7
        %v3519 = vrot.slane %v3451, 7
        %v3524 = vsub.f32 %v3512, %v3516
        %v3525 = vsub.f32 %v3513, %v3517
        %v3526 = vsub.f32 %v3514, %v3518
        %v3527 = vsub.f32 %v3515, %v3519
        %v3528 = vmul.f32 %v3524, 0.31539157
        %v3529 = vmul.f32 %v3525, 0.31539157
        %v3530 = vmul.f32 %v3526, 0.31539157
        %v3531 = vmul.f32 %v3527, 0.31539157
        %v3532 = vmul.f32 %v3484, -1.0925485
        %v3533 = vmul.f32 %v3485, -1.0925485
        %v3534 = vmul.f32 %v3486, -1.0925485
        %v3535 = vmul.f32 %v3487, -1.0925485
        %v3536 = vrot.slane %v3448, 5
        %v3537 = vrot.slane %v3536, 4
        %v3538 = vrot.slane %v3449, 5
        %v3539 = vrot.slane %v3538, 4
        %v3540 = vrot.slane %v3450, 5
        %v3541 = vrot.slane %v3540, 4
        %v3542 = vrot.slane %v3451, 5
        %v3543 = vrot.slane %v3542, 4
        %v3548 = vsub.f32 %v3448, %v3537
        %v3549 = vsub.f32 %v3449, %v3539
        %v3550 = vsub.f32 %v3450, %v3541
        %v3551 = vsub.f32 %v3451, %v3543
        %v3552 = vmul.f32 %v3548, 0.54627424
        %v3553 = vmul.f32 %v3549, 0.54627424
        %v3554 = vmul.f32 %v3550, 0.54627424
        %v3555 = vmul.f32 %v3551, 0.54627424
        %v3556 = vmul.f32 %v3436, -0.5900436
        %v3557 = vmul.f32 %v3437, -0.5900436
        %v3558 = vmul.f32 %v3438, -0.5900436
        %v3559 = vmul.f32 %v3439, -0.5900436
        %v3560 = vmul.f32 %v3448, 3.0
        %v3561 = vmul.f32 %v3449, 3.0
        %v3562 = vmul.f32 %v3450, 3.0
        %v3563 = vmul.f32 %v3451, 3.0
        %v3564 = vsub.f32 %v3560, %v3537
        %v3565 = vsub.f32 %v3561, %v3539
        %v3566 = vsub.f32 %v3562, %v3541
        %v3567 = vsub.f32 %v3563, %v3543
        %v3572 = vrot.slane %v3564, 7
        %v3573 = vrot.slane %v3565, 7
        %v3574 = vrot.slane %v3566, 7
        %v3575 = vrot.slane %v3567, 7
        %v3580 = vmul.f32 %v3556, %v3572
        %v3581 = vmul.f32 %v3557, %v3573
        %v3582 = vmul.f32 %v3558, %v3574
        %v3583 = vmul.f32 %v3559, %v3575
        %v3584 = vmul.f32 %v3468, 2.8906114
        %v3585 = vmul.f32 %v3469, 2.8906114
        %v3586 = vmul.f32 %v3470, 2.8906114
        %v3587 = vmul.f32 %v3471, 2.8906114
        %v3588 = vmul.f32 %v3584, %v3473
        %v3589 = vmul.f32 %v3585, %v3475
        %v3590 = vmul.f32 %v3586, %v3477
        %v3591 = vmul.f32 %v3587, %v3479
        %v3592 = vmul.f32 %v3436, -0.4570458
        %v3593 = vmul.f32 %v3437, -0.4570458
        %v3594 = vmul.f32 %v3438, -0.4570458
        %v3595 = vmul.f32 %v3439, -0.4570458
        %v3596 = vmul.f32 %v3448, 4.0
        %v3597 = vmul.f32 %v3449, 4.0
        %v3598 = vmul.f32 %v3450, 4.0
        %v3599 = vmul.f32 %v3451, 4.0
        %v3600 = vsub.f32 %v3596, %v3504
        %v3601 = vsub.f32 %v3597, %v3505
        %v3602 = vsub.f32 %v3598, %v3506
        %v3603 = vsub.f32 %v3599, %v3507
        %v3604 = vsub.f32 %v3600, %v3516
        %v3605 = vsub.f32 %v3601, %v3517
        %v3606 = vsub.f32 %v3602, %v3518
        %v3607 = vsub.f32 %v3603, %v3519
        %v3612 = vrot.slane %v3604, 5
        %v3613 = vrot.slane %v3612, 4
        %v3614 = vrot.slane %v3605, 5
        %v3615 = vrot.slane %v3614, 4
        %v3616 = vrot.slane %v3606, 5
        %v3617 = vrot.slane %v3616, 4
        %v3618 = vrot.slane %v3607, 5
        %v3619 = vrot.slane %v3618, 4
        %v3624 = vmul.f32 %v3592, %v3613
        %v3625 = vmul.f32 %v3593, %v3615
        %v3626 = vmul.f32 %v3594, %v3617
        %v3627 = vmul.f32 %v3595, %v3619
        %v3628 = vmul.f32 %v3436, 0.37317634
        %v3629 = vmul.f32 %v3437, 0.37317634
        %v3630 = vmul.f32 %v3438, 0.37317634
        %v3631 = vmul.f32 %v3439, 0.37317634
        %v3636 = vrot.slane %v3560, 6
        %v3637 = vrot.slane %v3561, 6
        %v3638 = vrot.slane %v3562, 6
        %v3639 = vrot.slane %v3563, 6
        %v3644 = vsub.f32 %v3496, %v3636
        %v3645 = vsub.f32 %v3497, %v3637
        %v3646 = vsub.f32 %v3498, %v3638
        %v3647 = vsub.f32 %v3499, %v3639
        %v3648 = vrot.slane %v3560, 7
        %v3649 = vrot.slane %v3561, 7
        %v3650 = vrot.slane %v3562, 7
        %v3651 = vrot.slane %v3563, 7
        %v3656 = vsub.f32 %v3644, %v3648
        %v3657 = vsub.f32 %v3645, %v3649
        %v3658 = vsub.f32 %v3646, %v3650
        %v3659 = vsub.f32 %v3647, %v3651
        %v3660 = vmul.f32 %v3628, %v3656
        %v3661 = vmul.f32 %v3629, %v3657
        %v3662 = vmul.f32 %v3630, %v3658
        %v3663 = vmul.f32 %v3631, %v3659
        %v3664 = vrot.slane %v3604, 6
        %v3665 = vrot.slane %v3664, 4
        %v3666 = vrot.slane %v3605, 6
        %v3667 = vrot.slane %v3666, 4
        %v3668 = vrot.slane %v3606, 6
        %v3669 = vrot.slane %v3668, 4
        %v3670 = vrot.slane %v3607, 6
        %v3671 = vrot.slane %v3670, 4
        %v3676 = vmul.f32 %v3592, %v3665
        %v3677 = vmul.f32 %v3593, %v3667
        %v3678 = vmul.f32 %v3594, %v3669
        %v3679 = vmul.f32 %v3595, %v3671
        %v3680 = vmul.f32 %v3436, 1.4453057
        %v3681 = vmul.f32 %v3437, 1.4453057
        %v3682 = vmul.f32 %v3438, 1.4453057
        %v3683 = vmul.f32 %v3439, 1.4453057
        %v3688 = vrot.slane %v3548, 6
        %v3689 = vrot.slane %v3549, 6
        %v3690 = vrot.slane %v3550, 6
        %v3691 = vrot.slane %v3551, 6
        %v3696 = vmul.f32 %v3680, %v3688
        %v3697 = vmul.f32 %v3681, %v3689
        %v3698 = vmul.f32 %v3682, %v3690
        %v3699 = vmul.f32 %v3683, %v3691
        %v3700 = vrot.slane %v3560, 5
        %v3701 = vrot.slane %v3700, 4
        %v3702 = vrot.slane %v3561, 5
        %v3703 = vrot.slane %v3702, 4
        %v3704 = vrot.slane %v3562, 5
        %v3705 = vrot.slane %v3704, 4
        %v3706 = vrot.slane %v3563, 5
        %v3707 = vrot.slane %v3706, 4
        %v3712 = vsub.f32 %v3448, %v3701
        %v3713 = vsub.f32 %v3449, %v3703
        %v3714 = vsub.f32 %v3450, %v3705
        %v3715 = vsub.f32 %v3451, %v3707
        %v3716 = vmul.f32 %v3556, %v3712
        %v3717 = vmul.f32 %v3557, %v3713
        %v3718 = vmul.f32 %v3558, %v3714
        %v3719 = vmul.f32 %v3559, %v3715
        %v3724 = vlaneseq
        %v3725 = vshrl.u32 %v3724, 7
        %v3726 = vsub.s32 1, %v3725
        %v3727 = vrot.slane %v3440, %v3726
        %v3728 = vlaneseq
        %v3729 = vshrl.u32 %v3728, 7
        %v3730 = vsub.s32 5, %v3729
        %v3731 = vrot.slane %v3440, %v3730
        %v3732 = vlaneseq
        %v3733 = vshrl.u32 %v3732, 7
        %v3734 = vsub.s32 1, %v3733
        %v3735 = vrot.slane %v3441, %v3734
        %v3736 = vlaneseq
        %v3737 = vshrl.u32 %v3736, 7
        %v3738 = vsub.s32 5, %v3737
        %v3739 = vrot.slane %v3441, %v3738
        %v3740 = vlaneseq
        %v3741 = vshrl.u32 %v3740, 7
        %v3742 = vsub.s32 1, %v3741
        %v3743 = vrot.slane %v3442, %v3742
        %v3744 = vlaneseq
        %v3745 = vshrl.u32 %v3744, 7
        %v3746 = vsub.s32 5, %v3745
        %v3747 = vrot.slane %v3442, %v3746
        %v3748 = vlaneseq
        %v3749 = vshrl.u32 %v3748, 7
        %v3750 = vsub.s32 1, %v3749
        %v3751 = vrot.slane %v3443, %v3750
        %v3752 = vlaneseq
        %v3753 = vshrl.u32 %v3752, 7
        %v3754 = vsub.s32 5, %v3753
        %v3755 = vrot.slane %v3443, %v3754
        %v3768 = vlaneseq
        %v3769 = vshrl.u32 %v3768, 7
        %v3770 = vsub.s32 2, %v3769
        %v3771 = vrot.slane %v3444, %v3770
        %v3772 = vlaneseq
        %v3773 = vshrl.u32 %v3772, 7
        %v3774 = vsub.s32 6, %v3773
        %v3775 = vrot.slane %v3444, %v3774
        %v3776 = vlaneseq
        %v3777 = vshrl.u32 %v3776, 7
        %v3778 = vsub.s32 2, %v3777
        %v3779 = vrot.slane %v3445, %v3778
        %v3780 = vlaneseq
        %v3781 = vshrl.u32 %v3780, 7
        %v3782 = vsub.s32 6, %v3781
        %v3783 = vrot.slane %v3445, %v3782
        %v3784 = vlaneseq
        %v3785 = vshrl.u32 %v3784, 7
        %v3786 = vsub.s32 2, %v3785
        %v3787 = vrot.slane %v3446, %v3786
        %v3788 = vlaneseq
        %v3789 = vshrl.u32 %v3788, 7
        %v3790 = vsub.s32 6, %v3789
        %v3791 = vrot.slane %v3446, %v3790
        %v3792 = vlaneseq
        %v3793 = vshrl.u32 %v3792, 7
        %v3794 = vsub.s32 2, %v3793
        %v3795 = vrot.slane %v3447, %v3794
        %v3796 = vlaneseq
        %v3797 = vshrl.u32 %v3796, 7
        %v3798 = vsub.s32 6, %v3797
        %v3799 = vrot.slane %v3447, %v3798
        %v3808 = vlaneseq
        %v3809 = vshrl.u32 %v3808, 7
        %v3810 = vsub.s32 0, %v3809
        %v3811 = vrot.slane %v3440, %v3810
        %v3812 = vlaneseq
        %v3813 = vshrl.u32 %v3812, 7
        %v3814 = vsub.s32 4, %v3813
        %v3815 = vrot.slane %v3440, %v3814
        %v3816 = vlaneseq
        %v3817 = vshrl.u32 %v3816, 7
        %v3818 = vsub.s32 0, %v3817
        %v3819 = vrot.slane %v3441, %v3818
        %v3820 = vlaneseq
        %v3821 = vshrl.u32 %v3820, 7
        %v3822 = vsub.s32 4, %v3821
        %v3823 = vrot.slane %v3441, %v3822
        %v3824 = vlaneseq
        %v3825 = vshrl.u32 %v3824, 7
        %v3826 = vsub.s32 0, %v3825
        %v3827 = vrot.slane %v3442, %v3826
        %v3828 = vlaneseq
        %v3829 = vshrl.u32 %v3828, 7
        %v3830 = vsub.s32 4, %v3829
        %v3831 = vrot.slane %v3442, %v3830
        %v3832 = vlaneseq
        %v3833 = vshrl.u32 %v3832, 7
        %v3834 = vsub.s32 0, %v3833
        %v3835 = vrot.slane %v3443, %v3834
        %v3836 = vlaneseq
        %v3837 = vshrl.u32 %v3836, 7
        %v3838 = vsub.s32 4, %v3837
        %v3839 = vrot.slane %v3443, %v3838
        %v3852 = vlaneseq
        %v3853 = vshrl.u32 %v3852, 7
        %v3854 = vsub.s32 0, %v3853
        %v3855 = vrot.slane %v3488, %v3854
        %v3856 = vlaneseq
        %v3857 = vshrl.u32 %v3856, 7
        %v3858 = vsub.s32 4, %v3857
        %v3859 = vrot.slane %v3488, %v3858
        %v3860 = vlaneseq
        %v3861 = vshrl.u32 %v3860, 7
        %v3862 = vsub.s32 0, %v3861
        %v3863 = vrot.slane %v3489, %v3862
        %v3864 = vlaneseq
        %v3865 = vshrl.u32 %v3864, 7
        %v3866 = vsub.s32 4, %v3865
        %v3867 = vrot.slane %v3489, %v3866
        %v3868 = vlaneseq
        %v3869 = vshrl.u32 %v3868, 7
        %v3870 = vsub.s32 0, %v3869
        %v3871 = vrot.slane %v3490, %v3870
        %v3872 = vlaneseq
        %v3873 = vshrl.u32 %v3872, 7
        %v3874 = vsub.s32 4, %v3873
        %v3875 = vrot.slane %v3490, %v3874
        %v3876 = vlaneseq
        %v3877 = vshrl.u32 %v3876, 7
        %v3878 = vsub.s32 0, %v3877
        %v3879 = vrot.slane %v3491, %v3878
        %v3880 = vlaneseq
        %v3881 = vshrl.u32 %v3880, 7
        %v3882 = vsub.s32 4, %v3881
        %v3883 = vrot.slane %v3491, %v3882
        %v3896 = vlaneseq
        %v3897 = vshrl.u32 %v3896, 7
        %v3898 = vsub.s32 1, %v3897
        %v3899 = vrot.slane %v3492, %v3898
        %v3900 = vlaneseq
        %v3901 = vshrl.u32 %v3900, 7
        %v3902 = vsub.s32 5, %v3901
        %v3903 = vrot.slane %v3492, %v3902
        %v3904 = vlaneseq
        %v3905 = vshrl.u32 %v3904, 7
        %v3906 = vsub.s32 1, %v3905
        %v3907 = vrot.slane %v3493, %v3906
        %v3908 = vlaneseq
        %v3909 = vshrl.u32 %v3908, 7
        %v3910 = vsub.s32 5, %v3909
        %v3911 = vrot.slane %v3493, %v3910
        %v3912 = vlaneseq
        %v3913 = vshrl.u32 %v3912, 7
        %v3914 = vsub.s32 1, %v3913
        %v3915 = vrot.slane %v3494, %v3914
        %v3916 = vlaneseq
        %v3917 = vshrl.u32 %v3916, 7
        %v3918 = vsub.s32 5, %v3917
        %v3919 = vrot.slane %v3494, %v3918
        %v3920 = vlaneseq
        %v3921 = vshrl.u32 %v3920, 7
        %v3922 = vsub.s32 1, %v3921
        %v3923 = vrot.slane %v3495, %v3922
        %v3924 = vlaneseq
        %v3925 = vshrl.u32 %v3924, 7
        %v3926 = vsub.s32 5, %v3925
        %v3927 = vrot.slane %v3495, %v3926
        %v3940 = vlaneseq
        %v3941 = vshrl.u32 %v3940, 7
        %v3942 = vsub.s32 2, %v3941
        %v3943 = vrot.slane %v3528, %v3942
        %v3944 = vlaneseq
        %v3945 = vshrl.u32 %v3944, 7
        %v3946 = vsub.s32 6, %v3945
        %v3947 = vrot.slane %v3528, %v3946
        %v3948 = vlaneseq
        %v3949 = vshrl.u32 %v3948, 7
        %v3950 = vsub.s32 2, %v3949
        %v3951 = vrot.slane %v3529, %v3950
        %v3952 = vlaneseq
        %v3953 = vshrl.u32 %v3952, 7
        %v3954 = vsub.s32 6, %v3953
        %v3955 = vrot.slane %v3529, %v3954
        %v3956 = vlaneseq
        %v3957 = vshrl.u32 %v3956, 7
        %v3958 = vsub.s32 2, %v3957
        %v3959 = vrot.slane %v3530, %v3958
        %v3960 = vlaneseq
        %v3961 = vshrl.u32 %v3960, 7
        %v3962 = vsub.s32 6, %v3961
        %v3963 = vrot.slane %v3530, %v3962
        %v3964 = vlaneseq
        %v3965 = vshrl.u32 %v3964, 7
        %v3966 = vsub.s32 2, %v3965
        %v3967 = vrot.slane %v3531, %v3966
        %v3968 = vlaneseq
        %v3969 = vshrl.u32 %v3968, 7
        %v3970 = vsub.s32 6, %v3969
        %v3971 = vrot.slane %v3531, %v3970
        %v3984 = vlaneseq
        %v3985 = vshrl.u32 %v3984, 7
        %v3986 = vsub.s32 0, %v3985
        %v3987 = vrot.slane %v3532, %v3986
        %v3988 = vlaneseq
        %v3989 = vshrl.u32 %v3988, 7
        %v3990 = vsub.s32 4, %v3989
        %v3991 = vrot.slane %v3532, %v3990
        %v3992 = vlaneseq
        %v3993 = vshrl.u32 %v3992, 7
        %v3994 = vsub.s32 0, %v3993
        %v3995 = vrot.slane %v3533, %v3994
        %v3996 = vlaneseq
        %v3997 = vshrl.u32 %v3996, 7
        %v3998 = vsub.s32 4, %v3997
        %v3999 = vrot.slane %v3533, %v3998
        %v4000 = vlaneseq
        %v4001 = vshrl.u32 %v4000, 7
        %v4002 = vsub.s32 0, %v4001
        %v4003 = vrot.slane %v3534, %v4002
        %v4004 = vlaneseq
        %v4005 = vshrl.u32 %v4004, 7
        %v4006 = vsub.s32 4, %v4005
        %v4007 = vrot.slane %v3534, %v4006
        %v4008 = vlaneseq
        %v4009 = vshrl.u32 %v4008, 7
        %v4010 = vsub.s32 0, %v4009
        %v4011 = vrot.slane %v3535, %v4010
        %v4012 = vlaneseq
        %v4013 = vshrl.u32 %v4012, 7
        %v4014 = vsub.s32 4, %v4013
        %v4015 = vrot.slane %v3535, %v4014
        %v4028 = vlaneseq
        %v4029 = vshrl.u32 %v4028, 7
        %v4030 = vsub.s32 0, %v4029
        %v4031 = vrot.slane %v3552, %v4030
        %v4032 = vlaneseq
        %v4033 = vshrl.u32 %v4032, 7
        %v4034 = vsub.s32 4, %v4033
        %v4035 = vrot.slane %v3552, %v4034
        %v4036 = vlaneseq
        %v4037 = vshrl.u32 %v4036, 7
        %v4038 = vsub.s32 0, %v4037
        %v4039 = vrot.slane %v3553, %v4038
        %v4040 = vlaneseq
        %v4041 = vshrl.u32 %v4040, 7
        %v4042 = vsub.s32 4, %v4041
        %v4043 = vrot.slane %v3553, %v4042
        %v4044 = vlaneseq
        %v4045 = vshrl.u32 %v4044, 7
        %v4046 = vsub.s32 0, %v4045
        %v4047 = vrot.slane %v3554, %v4046
        %v4048 = vlaneseq
        %v4049 = vshrl.u32 %v4048, 7
        %v4050 = vsub.s32 4, %v4049
        %v4051 = vrot.slane %v3554, %v4050
        %v4052 = vlaneseq
        %v4053 = vshrl.u32 %v4052, 7
        %v4054 = vsub.s32 0, %v4053
        %v4055 = vrot.slane %v3555, %v4054
        %v4056 = vlaneseq
        %v4057 = vshrl.u32 %v4056, 7
        %v4058 = vsub.s32 4, %v4057
        %v4059 = vrot.slane %v3555, %v4058
        %v4072 = vlaneseq
        %v4073 = vshrl.u32 %v4072, 7
        %v4074 = vsub.s32 1, %v4073
        %v4075 = vrot.slane %v3580, %v4074
        %v4076 = vlaneseq
        %v4077 = vshrl.u32 %v4076, 7
        %v4078 = vsub.s32 5, %v4077
        %v4079 = vrot.slane %v3580, %v4078
        %v4080 = vlaneseq
        %v4081 = vshrl.u32 %v4080, 7
        %v4082 = vsub.s32 1, %v4081
        %v4083 = vrot.slane %v3581, %v4082
        %v4084 = vlaneseq
        %v4085 = vshrl.u32 %v4084, 7
        %v4086 = vsub.s32 5, %v4085
        %v4087 = vrot.slane %v3581, %v4086
        %v4088 = vlaneseq
        %v4089 = vshrl.u32 %v4088, 7
        %v4090 = vsub.s32 1, %v4089
        %v4091 = vrot.slane %v3582, %v4090
        %v4092 = vlaneseq
        %v4093 = vshrl.u32 %v4092, 7
        %v4094 = vsub.s32 5, %v4093
        %v4095 = vrot.slane %v3582, %v4094
        %v4096 = vlaneseq
        %v4097 = vshrl.u32 %v4096, 7
        %v4098 = vsub.s32 1, %v4097
        %v4099 = vrot.slane %v3583, %v4098
        %v4100 = vlaneseq
        %v4101 = vshrl.u32 %v4100, 7
        %v4102 = vsub.s32 5, %v4101
        %v4103 = vrot.slane %v3583, %v4102
        %v4116 = vlaneseq
        %v4117 = vshrl.u32 %v4116, 7
        %v4118 = vsub.s32 0, %v4117
        %v4119 = vrot.slane %v3588, %v4118
        %v4120 = vlaneseq
        %v4121 = vshrl.u32 %v4120, 7
        %v4122 = vsub.s32 4, %v4121
        %v4123 = vrot.slane %v3588, %v4122
        %v4124 = vlaneseq
        %v4125 = vshrl.u32 %v4124, 7
        %v4126 = vsub.s32 0, %v4125
        %v4127 = vrot.slane %v3589, %v4126
        %v4128 = vlaneseq
        %v4129 = vshrl.u32 %v4128, 7
        %v4130 = vsub.s32 4, %v4129
        %v4131 = vrot.slane %v3589, %v4130
        %v4132 = vlaneseq
        %v4133 = vshrl.u32 %v4132, 7
        %v4134 = vsub.s32 0, %v4133
        %v4135 = vrot.slane %v3590, %v4134
        %v4136 = vlaneseq
        %v4137 = vshrl.u32 %v4136, 7
        %v4138 = vsub.s32 4, %v4137
        %v4139 = vrot.slane %v3590, %v4138
        %v4140 = vlaneseq
        %v4141 = vshrl.u32 %v4140, 7
        %v4142 = vsub.s32 0, %v4141
        %v4143 = vrot.slane %v3591, %v4142
        %v4144 = vlaneseq
        %v4145 = vshrl.u32 %v4144, 7
        %v4146 = vsub.s32 4, %v4145
        %v4147 = vrot.slane %v3591, %v4146
        %v4160 = vlaneseq
        %v4161 = vshrl.u32 %v4160, 7
        %v4162 = vsub.s32 1, %v4161
        %v4163 = vrot.slane %v3624, %v4162
        %v4164 = vlaneseq
        %v4165 = vshrl.u32 %v4164, 7
        %v4166 = vsub.s32 5, %v4165
        %v4167 = vrot.slane %v3624, %v4166
        %v4168 = vlaneseq
        %v4169 = vshrl.u32 %v4168, 7
        %v4170 = vsub.s32 1, %v4169
        %v4171 = vrot.slane %v3625, %v4170
        %v4172 = vlaneseq
        %v4173 = vshrl.u32 %v4172, 7
        %v4174 = vsub.s32 5, %v4173
        %v4175 = vrot.slane %v3625, %v4174
        %v4176 = vlaneseq
        %v4177 = vshrl.u32 %v4176, 7
        %v4178 = vsub.s32 1, %v4177
        %v4179 = vrot.slane %v3626, %v4178
        %v4180 = vlaneseq
        %v4181 = vshrl.u32 %v4180, 7
        %v4182 = vsub.s32 5, %v4181
        %v4183 = vrot.slane %v3626, %v4182
        %v4184 = vlaneseq
        %v4185 = vshrl.u32 %v4184, 7
        %v4186 = vsub.s32 1, %v4185
        %v4187 = vrot.slane %v3627, %v4186
        %v4188 = vlaneseq
        %v4189 = vshrl.u32 %v4188, 7
        %v4190 = vsub.s32 5, %v4189
        %v4191 = vrot.slane %v3627, %v4190
        %v4204 = vlaneseq
        %v4205 = vshrl.u32 %v4204, 7
        %v4206 = vsub.s32 2, %v4205
        %v4207 = vrot.slane %v3660, %v4206
        %v4208 = vlaneseq
        %v4209 = vshrl.u32 %v4208, 7
        %v4210 = vsub.s32 6, %v4209
        %v4211 = vrot.slane %v3660, %v4210
        %v4212 = vlaneseq
        %v4213 = vshrl.u32 %v4212, 7
        %v4214 = vsub.s32 2, %v4213
        %v4215 = vrot.slane %v3661, %v4214
        %v4216 = vlaneseq
        %v4217 = vshrl.u32 %v4216, 7
        %v4218 = vsub.s32 6, %v4217
        %v4219 = vrot.slane %v3661, %v4218
        %v4220 = vlaneseq
        %v4221 = vshrl.u32 %v4220, 7
        %v4222 = vsub.s32 2, %v4221
        %v4223 = vrot.slane %v3662, %v4222
        %v4224 = vlaneseq
        %v4225 = vshrl.u32 %v4224, 7
        %v4226 = vsub.s32 6, %v4225
        %v4227 = vrot.slane %v3662, %v4226
        %v4228 = vlaneseq
        %v4229 = vshrl.u32 %v4228, 7
        %v4230 = vsub.s32 2, %v4229
        %v4231 = vrot.slane %v3663, %v4230
        %v4232 = vlaneseq
        %v4233 = vshrl.u32 %v4232, 7
        %v4234 = vsub.s32 6, %v4233
        %v4235 = vrot.slane %v3663, %v4234
        %v4248 = vlaneseq
        %v4249 = vshrl.u32 %v4248, 7
        %v4250 = vsub.s32 0, %v4249
        %v4251 = vrot.slane %v3676, %v4250
        %v4252 = vlaneseq
        %v4253 = vshrl.u32 %v4252, 7
        %v4254 = vsub.s32 4, %v4253
        %v4255 = vrot.slane %v3676, %v4254
        %v4256 = vlaneseq
        %v4257 = vshrl.u32 %v4256, 7
        %v4258 = vsub.s32 0, %v4257
        %v4259 = vrot.slane %v3677, %v4258
        %v4260 = vlaneseq
        %v4261 = vshrl.u32 %v4260, 7
        %v4262 = vsub.s32 4, %v4261
        %v4263 = vrot.slane %v3677, %v4262
        %v4264 = vlaneseq
        %v4265 = vshrl.u32 %v4264, 7
        %v4266 = vsub.s32 0, %v4265
        %v4267 = vrot.slane %v3678, %v4266
        %v4268 = vlaneseq
        %v4269 = vshrl.u32 %v4268, 7
        %v4270 = vsub.s32 4, %v4269
        %v4271 = vrot.slane %v3678, %v4270
        %v4272 = vlaneseq
        %v4273 = vshrl.u32 %v4272, 7
        %v4274 = vsub.s32 0, %v4273
        %v4275 = vrot.slane %v3679, %v4274
        %v4276 = vlaneseq
        %v4277 = vshrl.u32 %v4276, 7
        %v4278 = vsub.s32 4, %v4277
        %v4279 = vrot.slane %v3679, %v4278
        %v4292 = vlaneseq
        %v4293 = vshrl.u32 %v4292, 7
        %v4294 = vsub.s32 2, %v4293
        %v4295 = vrot.slane %v3696, %v4294
        %v4296 = vlaneseq
        %v4297 = vshrl.u32 %v4296, 7
        %v4298 = vsub.s32 6, %v4297
        %v4299 = vrot.slane %v3696, %v4298
        %v4300 = vlaneseq
        %v4301 = vshrl.u32 %v4300, 7
        %v4302 = vsub.s32 2, %v4301
        %v4303 = vrot.slane %v3697, %v4302
        %v4304 = vlaneseq
        %v4305 = vshrl.u32 %v4304, 7
        %v4306 = vsub.s32 6, %v4305
        %v4307 = vrot.slane %v3697, %v4306
        %v4308 = vlaneseq
        %v4309 = vshrl.u32 %v4308, 7
        %v4310 = vsub.s32 2, %v4309
        %v4311 = vrot.slane %v3698, %v4310
        %v4312 = vlaneseq
        %v4313 = vshrl.u32 %v4312, 7
        %v4314 = vsub.s32 6, %v4313
        %v4315 = vrot.slane %v3698, %v4314
        %v4316 = vlaneseq
        %v4317 = vshrl.u32 %v4316, 7
        %v4318 = vsub.s32 2, %v4317
        %v4319 = vrot.slane %v3699, %v4318
        %v4320 = vlaneseq
        %v4321 = vshrl.u32 %v4320, 7
        %v4322 = vsub.s32 6, %v4321
        %v4323 = vrot.slane %v3699, %v4322
        %v4336 = vlaneseq
        %v4337 = vshrl.u32 %v4336, 7
        %v4338 = vsub.s32 0, %v4337
        %v4339 = vrot.slane %v3716, %v4338
        %v4340 = vlaneseq
        %v4341 = vshrl.u32 %v4340, 7
        %v4342 = vsub.s32 4, %v4341
        %v4343 = vrot.slane %v3716, %v4342
        %v4344 = vlaneseq
        %v4345 = vshrl.u32 %v4344, 7
        %v4346 = vsub.s32 0, %v4345
        %v4347 = vrot.slane %v3717, %v4346
        %v4348 = vlaneseq
        %v4349 = vshrl.u32 %v4348, 7
        %v4350 = vsub.s32 4, %v4349
        %v4351 = vrot.slane %v3717, %v4350
        %v4352 = vlaneseq
        %v4353 = vshrl.u32 %v4352, 7
        %v4354 = vsub.s32 0, %v4353
        %v4355 = vrot.slane %v3718, %v4354
        %v4356 = vlaneseq
        %v4357 = vshrl.u32 %v4356, 7
        %v4358 = vsub.s32 4, %v4357
        %v4359 = vrot.slane %v3718, %v4358
        %v4360 = vlaneseq
        %v4361 = vshrl.u32 %v4360, 7
        %v4362 = vsub.s32 0, %v4361
        %v4363 = vrot.slane %v3719, %v4362
        %v4364 = vlaneseq
        %v4365 = vshrl.u32 %v4364, 7
        %v4366 = vsub.s32 4, %v4365
        %v4367 = vrot.slane %v3719, %v4366
        %vm4376 = vcmask 1040384
        %v4377 = vsel %vm4376, 0.2820948, %v3727
        %v4378 = vsel %vm4376, 0.2820948, %v3731
        %v4379 = vsel %vm4376, 0.2820948, %v3735
        %v4380 = vsel %vm4376, 0.2820948, %v3739
        %v4381 = vsel %vm4376, 0.2820948, %v3743
        %v4382 = vsel %vm4376, 0.2820948, %v3747
        %v4383 = vsel %vm4376, 0.2820948, %v3751
        %v4384 = vsel %vm4376, 0.2820948, %v3755
        %vm4385 = vcmask 1041408
        %v4386 = vsel %vm4385, %v4377, %v3771
        %v4387 = vsel %vm4385, %v4378, %v3775
        %v4388 = vsel %vm4385, %v4379, %v3779
        %v4389 = vsel %vm4385, %v4380, %v3783
        %v4390 = vsel %vm4385, %v4381, %v3787
        %v4391 = vsel %vm4385, %v4382, %v3791
        %v4392 = vsel %vm4385, %v4383, %v3795
        %v4393 = vsel %vm4385, %v4384, %v3799
        %vm4394 = vcmask 1042432
        %v4395 = vsel %vm4394, %v4386, %v3811
        %v4396 = vsel %vm4394, %v4387, %v3815
        %v4397 = vsel %vm4394, %v4388, %v3819
        %v4398 = vsel %vm4394, %v4389, %v3823
        %v4399 = vsel %vm4394, %v4390, %v3827
        %v4400 = vsel %vm4394, %v4391, %v3831
        %v4401 = vsel %vm4394, %v4392, %v3835
        %v4402 = vsel %vm4394, %v4393, %v3839
        %vm4403 = vcmask 1043456
        %v4404 = vsel %vm4403, %v4395, %v3855
        %v4405 = vsel %vm4403, %v4396, %v3859
        %v4406 = vsel %vm4403, %v4397, %v3863
        %v4407 = vsel %vm4403, %v4398, %v3867
        %v4408 = vsel %vm4403, %v4399, %v3871
        %v4409 = vsel %vm4403, %v4400, %v3875
        %v4410 = vsel %vm4403, %v4401, %v3879
        %v4411 = vsel %vm4403, %v4402, %v3883
        %vm4412 = vcmask 1044480
        %v4413 = vsel %vm4412, %v4404, %v3899
        %v4414 = vsel %vm4412, %v4405, %v3903
        %v4415 = vsel %vm4412, %v4406, %v3907
        %v4416 = vsel %vm4412, %v4407, %v3911
        %v4417 = vsel %vm4412, %v4408, %v3915
        %v4418 = vsel %vm4412, %v4409, %v3919
        %v4419 = vsel %vm4412, %v4410, %v3923
        %v4420 = vsel %vm4412, %v4411, %v3927
        %vm4421 = vcmask 1045504
        %v4422 = vsel %vm4421, %v4413, %v3943
        %v4423 = vsel %vm4421, %v4414, %v3947
        %v4424 = vsel %vm4421, %v4415, %v3951
        %v4425 = vsel %vm4421, %v4416, %v3955
        %v4426 = vsel %vm4421, %v4417, %v3959
        %v4427 = vsel %vm4421, %v4418, %v3963
        %v4428 = vsel %vm4421, %v4419, %v3967
        %v4429 = vsel %vm4421, %v4420, %v3971
        %vm4430 = vcmask 1046528
        %v4431 = vsel %vm4430, %v4422, %v3987
        %v4432 = vsel %vm4430, %v4423, %v3991
        %v4433 = vsel %vm4430, %v4424, %v3995
        %v4434 = vsel %vm4430, %v4425, %v3999
        %v4435 = vsel %vm4430, %v4426, %v4003
        %v4436 = vsel %vm4430, %v4427, %v4007
        %v4437 = vsel %vm4430, %v4428, %v4011
        %v4438 = vsel %vm4430, %v4429, %v4015
        %v4439 = vsel %vm4376, %v4031, %v4075
        %v4440 = vsel %vm4376, %v4035, %v4079
        %v4441 = vsel %vm4376, %v4039, %v4083
        %v4442 = vsel %vm4376, %v4043, %v4087
        %v4443 = vsel %vm4376, %v4047, %v4091
        %v4444 = vsel %vm4376, %v4051, %v4095
        %v4445 = vsel %vm4376, %v4055, %v4099
        %v4446 = vsel %vm4376, %v4059, %v4103
        %v4447 = vsel %vm4385, %v4439, %v4119
        %v4448 = vsel %vm4385, %v4440, %v4123
        %v4449 = vsel %vm4385, %v4441, %v4127
        %v4450 = vsel %vm4385, %v4442, %v4131
        %v4451 = vsel %vm4385, %v4443, %v4135
        %v4452 = vsel %vm4385, %v4444, %v4139
        %v4453 = vsel %vm4385, %v4445, %v4143
        %v4454 = vsel %vm4385, %v4446, %v4147
        %v4455 = vsel %vm4394, %v4447, %v4163
        %v4456 = vsel %vm4394, %v4448, %v4167
        %v4457 = vsel %vm4394, %v4449, %v4171
        %v4458 = vsel %vm4394, %v4450, %v4175
        %v4459 = vsel %vm4394, %v4451, %v4179
        %v4460 = vsel %vm4394, %v4452, %v4183
        %v4461 = vsel %vm4394, %v4453, %v4187
        %v4462 = vsel %vm4394, %v4454, %v4191
        %v4463 = vsel %vm4403, %v4455, %v4207
        %v4464 = vsel %vm4403, %v4456, %v4211
        %v4465 = vsel %vm4403, %v4457, %v4215
        %v4466 = vsel %vm4403, %v4458, %v4219
        %v4467 = vsel %vm4403, %v4459, %v4223
        %v4468 = vsel %vm4403, %v4460, %v4227
        %v4469 = vsel %vm4403, %v4461, %v4231
        %v4470 = vsel %vm4403, %v4462, %v4235
        %v4471 = vsel %vm4412, %v4463, %v4251
        %v4472 = vsel %vm4412, %v4464, %v4255
        %v4473 = vsel %vm4412, %v4465, %v4259
        %v4474 = vsel %vm4412, %v4466, %v4263
        %v4475 = vsel %vm4412, %v4467, %v4267
        %v4476 = vsel %vm4412, %v4468, %v4271
        %v4477 = vsel %vm4412, %v4469, %v4275
        %v4478 = vsel %vm4412, %v4470, %v4279
        %v4479 = vsel %vm4421, %v4471, %v4295
        %v4480 = vsel %vm4421, %v4472, %v4299
        %v4481 = vsel %vm4421, %v4473, %v4303
        %v4482 = vsel %vm4421, %v4474, %v4307
        %v4483 = vsel %vm4421, %v4475, %v4311
        %v4484 = vsel %vm4421, %v4476, %v4315
        %v4485 = vsel %vm4421, %v4477, %v4319
        %v4486 = vsel %vm4421, %v4478, %v4323
        %v4487 = vsel %vm4430, %v4479, %v4339
        %v4488 = vsel %vm4430, %v4480, %v4343
        %v4489 = vsel %vm4430, %v4481, %v4347
        %v4490 = vsel %vm4430, %v4482, %v4351
        %v4491 = vsel %vm4430, %v4483, %v4355
        %v4492 = vsel %vm4430, %v4484, %v4359
        %v4493 = vsel %vm4430, %v4485, %v4363
        %v4494 = vsel %vm4430, %v4486, %v4367
        %4495 = vxpose.xlu0.b32.start [1/16] %v4431, 128
        %4496 = vxpose.xlu0.b32.cont [2/16] %v4487, 128
        %4497 = vxpose.xlu0.b32.cont [3/16] %v4431, 128
        %4498 = vxpose.xlu0.b32.cont [4/16] %v4487, 128
        %4499 = vxpose.xlu0.b32.cont [5/16] %v4431, 128
        %4500 = vxpose.xlu0.b32.cont [6/16] %v4487, 128
        %4501 = vxpose.xlu0.b32.cont [7/16] 0.0, 128
        %4502 = vxpose.xlu0.b32.cont [8/16] 0.0, 128
        %4503 = vxpose.xlu0.b32.cont [9/16] 0.0, 128
        %4504 = vxpose.xlu0.b32.cont [10/16] 0.0, 128
        %4505 = vxpose.xlu0.b32.cont [11/16] 0.0, 128
        %4506 = vxpose.xlu0.b32.cont [12/16] 0.0, 128
        %4507 = vxpose.xlu0.b32.cont [13/16] 0.0, 128
        %4508 = vxpose.xlu0.b32.cont [14/16] 0.0, 128
        %4509 = vxpose.xlu0.b32.cont [15/16] 0.0, 128
        %4510 = vxpose.xlu0.b32.end [16/16] 0.0, 128
        %v4511 = vpop.trf.xlu0
        %v4512 = vpop.trf.xlu0
        %v4513 = vpop.trf.xlu0
        %v4514 = vpop.trf.xlu0
        %v4515 = vpop.trf.xlu0
        %v4516 = vpop.trf.xlu0
        %v4517 = vpop.trf.xlu0
        %v4518 = vpop.trf.xlu0
        %v4519 = vpop.trf.xlu0
        %v4520 = vpop.trf.xlu0
        %v4521 = vpop.trf.xlu0
        %v4522 = vpop.trf.xlu0
        %v4523 = vpop.trf.xlu0
        %v4524 = vpop.trf.xlu0
        %v4525 = vpop.trf.xlu0
        %v4526 = vpop.trf.xlu0
        %4527 = vxpose.xlu0.b32.start [1/16] %v4432, 128
        %4528 = vxpose.xlu0.b32.cont [2/16] %v4488, 128
        %4529 = vxpose.xlu0.b32.cont [3/16] %v4432, 128
        %4530 = vxpose.xlu0.b32.cont [4/16] %v4488, 128
        %4531 = vxpose.xlu0.b32.cont [5/16] %v4432, 128
        %4532 = vxpose.xlu0.b32.cont [6/16] %v4488, 128
        %4533 = vxpose.xlu0.b32.cont [7/16] 0.0, 128
        %4534 = vxpose.xlu0.b32.cont [8/16] 0.0, 128
        %4535 = vxpose.xlu0.b32.cont [9/16] 0.0, 128
        %4536 = vxpose.xlu0.b32.cont [10/16] 0.0, 128
        %4537 = vxpose.xlu0.b32.cont [11/16] 0.0, 128
        %4538 = vxpose.xlu0.b32.cont [12/16] 0.0, 128
        %4539 = vxpose.xlu0.b32.cont [13/16] 0.0, 128
        %4540 = vxpose.xlu0.b32.cont [14/16] 0.0, 128
        %4541 = vxpose.xlu0.b32.cont [15/16] 0.0, 128
        %4542 = vxpose.xlu0.b32.end [16/16] 0.0, 128
        %v4543 = vpop.trf.xlu0
        %v4544 = vpop.trf.xlu0
        %v4545 = vpop.trf.xlu0
        %v4546 = vpop.trf.xlu0
        %v4547 = vpop.trf.xlu0
        %v4548 = vpop.trf.xlu0
        %v4549 = vpop.trf.xlu0
        %v4550 = vpop.trf.xlu0
        %v4551 = vpop.trf.xlu0
        %v4552 = vpop.trf.xlu0
        %v4553 = vpop.trf.xlu0
        %v4554 = vpop.trf.xlu0
        %v4555 = vpop.trf.xlu0
        %v4556 = vpop.trf.xlu0
        %v4557 = vpop.trf.xlu0
        %v4558 = vpop.trf.xlu0
        %4559 = vxpose.xlu0.b32.start [1/16] %v4433, 128
        %4560 = vxpose.xlu0.b32.cont [2/16] %v4489, 128
        %4561 = vxpose.xlu0.b32.cont [3/16] %v4433, 128
        %4562 = vxpose.xlu0.b32.cont [4/16] %v4489, 128
        %4563 = vxpose.xlu0.b32.cont [5/16] %v4433, 128
        %4564 = vxpose.xlu0.b32.cont [6/16] %v4489, 128
        %4565 = vxpose.xlu0.b32.cont [7/16] 0.0, 128
        %4566 = vxpose.xlu0.b32.cont [8/16] 0.0, 128
        %4567 = vxpose.xlu0.b32.cont [9/16] 0.0, 128
        %4568 = vxpose.xlu0.b32.cont [10/16] 0.0, 128
        %4569 = vxpose.xlu0.b32.cont [11/16] 0.0, 128
        %4570 = vxpose.xlu0.b32.cont [12/16] 0.0, 128
        %4571 = vxpose.xlu0.b32.cont [13/16] 0.0, 128
        %4572 = vxpose.xlu0.b32.cont [14/16] 0.0, 128
        %4573 = vxpose.xlu0.b32.cont [15/16] 0.0, 128
        %4574 = vxpose.xlu0.b32.end [16/16] 0.0, 128
        %v4575 = vpop.trf.xlu0
        %v4576 = vpop.trf.xlu0
        %v4577 = vpop.trf.xlu0
        %v4578 = vpop.trf.xlu0
        %v4579 = vpop.trf.xlu0
        %v4580 = vpop.trf.xlu0
        %v4581 = vpop.trf.xlu0
        %v4582 = vpop.trf.xlu0
        %v4583 = vpop.trf.xlu0
        %v4584 = vpop.trf.xlu0
        %v4585 = vpop.trf.xlu0
        %v4586 = vpop.trf.xlu0
        %v4587 = vpop.trf.xlu0
        %v4588 = vpop.trf.xlu0
        %v4589 = vpop.trf.xlu0
        %v4590 = vpop.trf.xlu0
        %4591 = vxpose.xlu0.b32.start [1/16] %v4434, 128
        %4592 = vxpose.xlu0.b32.cont [2/16] %v4490, 128
        %4593 = vxpose.xlu0.b32.cont [3/16] %v4434, 128
        %4594 = vxpose.xlu0.b32.cont [4/16] %v4490, 128
        %4595 = vxpose.xlu0.b32.cont [5/16] %v4434, 128
        %4596 = vxpose.xlu0.b32.cont [6/16] %v4490, 128
        %4597 = vxpose.xlu0.b32.cont [7/16] 0.0, 128
        %4598 = vxpose.xlu0.b32.cont [8/16] 0.0, 128
        %4599 = vxpose.xlu0.b32.cont [9/16] 0.0, 128
        %4600 = vxpose.xlu0.b32.cont [10/16] 0.0, 128
        %4601 = vxpose.xlu0.b32.cont [11/16] 0.0, 128
        %4602 = vxpose.xlu0.b32.cont [12/16] 0.0, 128
        %4603 = vxpose.xlu0.b32.cont [13/16] 0.0, 128
        %4604 = vxpose.xlu0.b32.cont [14/16] 0.0, 128
        %4605 = vxpose.xlu0.b32.cont [15/16] 0.0, 128
        %4606 = vxpose.xlu0.b32.end [16/16] 0.0, 128
        %v4607 = vpop.trf.xlu0
        %v4608 = vpop.trf.xlu0
        %v4609 = vpop.trf.xlu0
        %v4610 = vpop.trf.xlu0
        %v4611 = vpop.trf.xlu0
        %v4612 = vpop.trf.xlu0
        %v4613 = vpop.trf.xlu0
        %v4614 = vpop.trf.xlu0
        %v4615 = vpop.trf.xlu0
        %v4616 = vpop.trf.xlu0
        %v4617 = vpop.trf.xlu0
        %v4618 = vpop.trf.xlu0
        %v4619 = vpop.trf.xlu0
        %v4620 = vpop.trf.xlu0
        %v4621 = vpop.trf.xlu0
        %v4622 = vpop.trf.xlu0
        %4623 = vxpose.xlu0.b32.start [1/16] %v4435, 128
        %4624 = vxpose.xlu0.b32.cont [2/16] %v4491, 128
        %4625 = vxpose.xlu0.b32.cont [3/16] %v4435, 128
        %4626 = vxpose.xlu0.b32.cont [4/16] %v4491, 128
        %4627 = vxpose.xlu0.b32.cont [5/16] %v4435, 128
        %4628 = vxpose.xlu0.b32.cont [6/16] %v4491, 128
        %4629 = vxpose.xlu0.b32.cont [7/16] 0.0, 128
        %4630 = vxpose.xlu0.b32.cont [8/16] 0.0, 128
        %4631 = vxpose.xlu0.b32.cont [9/16] 0.0, 128
        %4632 = vxpose.xlu0.b32.cont [10/16] 0.0, 128
        %4633 = vxpose.xlu0.b32.cont [11/16] 0.0, 128
        %4634 = vxpose.xlu0.b32.cont [12/16] 0.0, 128
        %4635 = vxpose.xlu0.b32.cont [13/16] 0.0, 128
        %4636 = vxpose.xlu0.b32.cont [14/16] 0.0, 128
        %4637 = vxpose.xlu0.b32.cont [15/16] 0.0, 128
        %4638 = vxpose.xlu0.b32.end [16/16] 0.0, 128
        %v4639 = vpop.trf.xlu0
        %v4640 = vpop.trf.xlu0
        %v4641 = vpop.trf.xlu0
        %v4642 = vpop.trf.xlu0
        %v4643 = vpop.trf.xlu0
        %v4644 = vpop.trf.xlu0
        %v4645 = vpop.trf.xlu0
        %v4646 = vpop.trf.xlu0
        %v4647 = vpop.trf.xlu0
        %v4648 = vpop.trf.xlu0
        %v4649 = vpop.trf.xlu0
        %v4650 = vpop.trf.xlu0
        %v4651 = vpop.trf.xlu0
        %v4652 = vpop.trf.xlu0
        %v4653 = vpop.trf.xlu0
        %v4654 = vpop.trf.xlu0
        %4655 = vxpose.xlu0.b32.start [1/16] %v4436, 128
        %4656 = vxpose.xlu0.b32.cont [2/16] %v4492, 128
        %4657 = vxpose.xlu0.b32.cont [3/16] %v4436, 128
        %4658 = vxpose.xlu0.b32.cont [4/16] %v4492, 128
        %4659 = vxpose.xlu0.b32.cont [5/16] %v4436, 128
        %4660 = vxpose.xlu0.b32.cont [6/16] %v4492, 128
        %4661 = vxpose.xlu0.b32.cont [7/16] 0.0, 128
        %4662 = vxpose.xlu0.b32.cont [8/16] 0.0, 128
        %4663 = vxpose.xlu0.b32.cont [9/16] 0.0, 128
        %4664 = vxpose.xlu0.b32.cont [10/16] 0.0, 128
        %4665 = vxpose.xlu0.b32.cont [11/16] 0.0, 128
        %4666 = vxpose.xlu0.b32.cont [12/16] 0.0, 128
        %4667 = vxpose.xlu0.b32.cont [13/16] 0.0, 128
        %4668 = vxpose.xlu0.b32.cont [14/16] 0.0, 128
        %4669 = vxpose.xlu0.b32.cont [15/16] 0.0, 128
        %4670 = vxpose.xlu0.b32.end [16/16] 0.0, 128
        %v4671 = vpop.trf.xlu0
        %v4672 = vpop.trf.xlu0
        %v4673 = vpop.trf.xlu0
        %v4674 = vpop.trf.xlu0
        %v4675 = vpop.trf.xlu0
        %v4676 = vpop.trf.xlu0
        %v4677 = vpop.trf.xlu0
        %v4678 = vpop.trf.xlu0
        %v4679 = vpop.trf.xlu0
        %v4680 = vpop.trf.xlu0
        %v4681 = vpop.trf.xlu0
        %v4682 = vpop.trf.xlu0
        %v4683 = vpop.trf.xlu0
        %v4684 = vpop.trf.xlu0
        %v4685 = vpop.trf.xlu0
        %v4686 = vpop.trf.xlu0
        %4687 = vxpose.xlu0.b32.start [1/16] %v4437, 128
        %4688 = vxpose.xlu0.b32.cont [2/16] %v4493, 128
        %4689 = vxpose.xlu0.b32.cont [3/16] %v4437, 128
        %4690 = vxpose.xlu0.b32.cont [4/16] %v4493, 128
        %4691 = vxpose.xlu0.b32.cont [5/16] %v4437, 128
        %4692 = vxpose.xlu0.b32.cont [6/16] %v4493, 128
        %4693 = vxpose.xlu0.b32.cont [7/16] 0.0, 128
        %4694 = vxpose.xlu0.b32.cont [8/16] 0.0, 128
        %4695 = vxpose.xlu0.b32.cont [9/16] 0.0, 128
        %4696 = vxpose.xlu0.b32.cont [10/16] 0.0, 128
        %4697 = vxpose.xlu0.b32.cont [11/16] 0.0, 128
        %4698 = vxpose.xlu0.b32.cont [12/16] 0.0, 128
        %4699 = vxpose.xlu0.b32.cont [13/16] 0.0, 128
        %4700 = vxpose.xlu0.b32.cont [14/16] 0.0, 128
        %4701 = vxpose.xlu0.b32.cont [15/16] 0.0, 128
        %4702 = vxpose.xlu0.b32.end [16/16] 0.0, 128
        %v4703 = vpop.trf.xlu0
        %v4704 = vpop.trf.xlu0
        %v4705 = vpop.trf.xlu0
        %v4706 = vpop.trf.xlu0
        %v4707 = vpop.trf.xlu0
        %v4708 = vpop.trf.xlu0
        %v4709 = vpop.trf.xlu0
        %v4710 = vpop.trf.xlu0
        %v4711 = vpop.trf.xlu0
        %v4712 = vpop.trf.xlu0
        %v4713 = vpop.trf.xlu0
        %v4714 = vpop.trf.xlu0
        %v4715 = vpop.trf.xlu0
        %v4716 = vpop.trf.xlu0
        %v4717 = vpop.trf.xlu0
        %v4718 = vpop.trf.xlu0
        %4719 = vxpose.xlu0.b32.start [1/16] %v4438, 128
        %4720 = vxpose.xlu0.b32.cont [2/16] %v4494, 128
        %4721 = vxpose.xlu0.b32.cont [3/16] %v4438, 128
        %4722 = vxpose.xlu0.b32.cont [4/16] %v4494, 128
        %4723 = vxpose.xlu0.b32.cont [5/16] %v4438, 128
        %4724 = vxpose.xlu0.b32.cont [6/16] %v4494, 128
        %4725 = vxpose.xlu0.b32.cont [7/16] 0.0, 128
        %4726 = vxpose.xlu0.b32.cont [8/16] 0.0, 128
        %4727 = vxpose.xlu0.b32.cont [9/16] 0.0, 128
        %4728 = vxpose.xlu0.b32.cont [10/16] 0.0, 128
        %4729 = vxpose.xlu0.b32.cont [11/16] 0.0, 128
        %4730 = vxpose.xlu0.b32.cont [12/16] 0.0, 128
        %4731 = vxpose.xlu0.b32.cont [13/16] 0.0, 128
        %4732 = vxpose.xlu0.b32.cont [14/16] 0.0, 128
        %4733 = vxpose.xlu0.b32.cont [15/16] 0.0, 128
        %4734 = vxpose.xlu0.b32.end [16/16] 0.0, 128
        %v4735 = vpop.trf.xlu0
        %v4736 = vpop.trf.xlu0
        %v4737 = vpop.trf.xlu0
        %v4738 = vpop.trf.xlu0
        %v4739 = vpop.trf.xlu0
        %v4740 = vpop.trf.xlu0
        %v4741 = vpop.trf.xlu0
        %v4742 = vpop.trf.xlu0
        %v4743 = vpop.trf.xlu0
        %v4744 = vpop.trf.xlu0
        %v4745 = vpop.trf.xlu0
        %v4746 = vpop.trf.xlu0
        %v4747 = vpop.trf.xlu0
        %v4748 = vpop.trf.xlu0
        %v4749 = vpop.trf.xlu0
        %v4750 = vpop.trf.xlu0
        %v4751 = vmul.f32 %v2926, %v4511
        %v4752 = vmul.f32 %v2929, %v4512
        %v4753 = vmul.f32 %v2934, %v4513
        %v4754 = vmul.f32 %v2937, %v4514
        %v4755 = vmul.f32 %v2942, %v4515
        %v4756 = vmul.f32 %v2945, %v4516
        %v4757 = vmul.f32 %v2950, %v4517
        %v4758 = vmul.f32 %v2953, %v4518
        %v4759 = vmul.f32 %v2958, %v4519
        %v4760 = vmul.f32 %v2961, %v4520
        %v4761 = vmul.f32 %v2966, %v4521
        %v4762 = vmul.f32 %v2969, %v4522
        %v4763 = vmul.f32 %v2974, %v4523
        %v4764 = vmul.f32 %v2977, %v4524
        %v4765 = vmul.f32 %v2982, %v4525
        %v4766 = vmul.f32 %v2985, %v4526
        %v4767 = vmul.f32 %v2990, %v4543
        %v4768 = vmul.f32 %v2993, %v4544
        %v4769 = vmul.f32 %v2998, %v4545
        %v4770 = vmul.f32 %v3001, %v4546
        %v4771 = vmul.f32 %v3006, %v4547
        %v4772 = vmul.f32 %v3009, %v4548
        %v4773 = vmul.f32 %v3014, %v4549
        %v4774 = vmul.f32 %v3017, %v4550
        %v4775 = vmul.f32 %v3022, %v4551
        %v4776 = vmul.f32 %v3025, %v4552
        %v4777 = vmul.f32 %v3030, %v4553
        %v4778 = vmul.f32 %v3033, %v4554
        %v4779 = vmul.f32 %v3038, %v4555
        %v4780 = vmul.f32 %v3041, %v4556
        %v4781 = vmul.f32 %v3046, %v4557
        %v4782 = vmul.f32 %v3049, %v4558
        %v4783 = vmul.f32 %v3054, %v4575
        %v4784 = vmul.f32 %v3057, %v4576
        %v4785 = vmul.f32 %v3062, %v4577
        %v4786 = vmul.f32 %v3065, %v4578
        %v4787 = vmul.f32 %v3070, %v4579
        %v4788 = vmul.f32 %v3073, %v4580
        %v4789 = vmul.f32 %v3078, %v4581
        %v4790 = vmul.f32 %v3081, %v4582
        %v4791 = vmul.f32 %v3086, %v4583
        %v4792 = vmul.f32 %v3089, %v4584
        %v4793 = vmul.f32 %v3094, %v4585
        %v4794 = vmul.f32 %v3097, %v4586
        %v4795 = vmul.f32 %v3102, %v4587
        %v4796 = vmul.f32 %v3105, %v4588
        %v4797 = vmul.f32 %v3110, %v4589
        %v4798 = vmul.f32 %v3113, %v4590
        %v4799 = vmul.f32 %v3118, %v4607
        %v4800 = vmul.f32 %v3121, %v4608
        %v4801 = vmul.f32 %v3126, %v4609
        %v4802 = vmul.f32 %v3129, %v4610
        %v4803 = vmul.f32 %v3134, %v4611
        %v4804 = vmul.f32 %v3137, %v4612
        %v4805 = vmul.f32 %v3142, %v4613
        %v4806 = vmul.f32 %v3145, %v4614
        %v4807 = vmul.f32 %v3150, %v4615
        %v4808 = vmul.f32 %v3153, %v4616
        %v4809 = vmul.f32 %v3158, %v4617
        %v4810 = vmul.f32 %v3161, %v4618
        %v4811 = vmul.f32 %v3166, %v4619
        %v4812 = vmul.f32 %v3169, %v4620
        %v4813 = vmul.f32 %v3174, %v4621
        %v4814 = vmul.f32 %v3177, %v4622
        %v4815 = vmul.f32 %v3182, %v4639
        %v4816 = vmul.f32 %v3185, %v4640
        %v4817 = vmul.f32 %v3190, %v4641
        %v4818 = vmul.f32 %v3193, %v4642
        %v4819 = vmul.f32 %v3198, %v4643
        %v4820 = vmul.f32 %v3201, %v4644
        %v4821 = vmul.f32 %v3206, %v4645
        %v4822 = vmul.f32 %v3209, %v4646
        %v4823 = vmul.f32 %v3214, %v4647
        %v4824 = vmul.f32 %v3217, %v4648
        %v4825 = vmul.f32 %v3222, %v4649
        %v4826 = vmul.f32 %v3225, %v4650
        %v4827 = vmul.f32 %v3230, %v4651
        %v4828 = vmul.f32 %v3233, %v4652
        %v4829 = vmul.f32 %v3238, %v4653
        %v4830 = vmul.f32 %v3241, %v4654
        %v4831 = vmul.f32 %v3246, %v4671
        %v4832 = vmul.f32 %v3249, %v4672
        %v4833 = vmul.f32 %v3254, %v4673
        %v4834 = vmul.f32 %v3257, %v4674
        %v4835 = vmul.f32 %v3262, %v4675
        %v4836 = vmul.f32 %v3265, %v4676
        %v4837 = vmul.f32 %v3270, %v4677
        %v4838 = vmul.f32 %v3273, %v4678
        %v4839 = vmul.f32 %v3278, %v4679
        %v4840 = vmul.f32 %v3281, %v4680
        %v4841 = vmul.f32 %v3286, %v4681
        %v4842 = vmul.f32 %v3289, %v4682
        %v4843 = vmul.f32 %v3294, %v4683
        %v4844 = vmul.f32 %v3297, %v4684
        %v4845 = vmul.f32 %v3302, %v4685
        %v4846 = vmul.f32 %v3305, %v4686
        %v4847 = vmul.f32 %v3310, %v4703
        %v4848 = vmul.f32 %v3313, %v4704
        %v4849 = vmul.f32 %v3318, %v4705
        %v4850 = vmul.f32 %v3321, %v4706
        %v4851 = vmul.f32 %v3326, %v4707
        %v4852 = vmul.f32 %v3329, %v4708
        %v4853 = vmul.f32 %v3334, %v4709
        %v4854 = vmul.f32 %v3337, %v4710
        %v4855 = vmul.f32 %v3342, %v4711
        %v4856 = vmul.f32 %v3345, %v4712
        %v4857 = vmul.f32 %v3350, %v4713
        %v4858 = vmul.f32 %v3353, %v4714
        %v4859 = vmul.f32 %v3358, %v4715
        %v4860 = vmul.f32 %v3361, %v4716
        %v4861 = vmul.f32 %v3366, %v4717
        %v4862 = vmul.f32 %v3369, %v4718
        %v4863 = vmul.f32 %v3374, %v4735
        %v4864 = vmul.f32 %v3377, %v4736
        %v4865 = vmul.f32 %v3382, %v4737
        %v4866 = vmul.f32 %v3385, %v4738
        %v4867 = vmul.f32 %v3390, %v4739
        %v4868 = vmul.f32 %v3393, %v4740
        %v4869 = vmul.f32 %v3398, %v4741
        %v4870 = vmul.f32 %v3401, %v4742
        %v4871 = vmul.f32 %v3406, %v4743
        %v4872 = vmul.f32 %v3409, %v4744
        %v4873 = vmul.f32 %v3414, %v4745
        %v4874 = vmul.f32 %v3417, %v4746
        %v4875 = vmul.f32 %v3422, %v4747
        %v4876 = vmul.f32 %v3425, %v4748
        %v4877 = vmul.f32 %v3430, %v4749
        %v4878 = vmul.f32 %v3433, %v4750
        %v4879 = vlaneseq
        %v4880 = vshrl.u32 %v4879, 7
        %v4881 = vlaneseq
        %v4882 = vand.u32 %v4881, 127
        %v4883 = vmul.u32 %v4880, 16
        %vm4884 = vcmp.ge.s32.totalorder %v4882, %v4883
        %v4885 = vadd.s32 %v4880, 1
        %v4886 = vmul.u32 %v4885, 16
        %vm4887 = vcmp.lt.s32.totalorder %v4882, %v4886
        %vm4888 = vmand %vm4884, %vm4887
        %v4889 = vsel %vm4888, 1.0, 0.0
        %v4890 = vpack.c.bf16 %v4889, %v4889
        %v4891 = vpack.c.bf16 %v4752, %v4751
        %v4892 = vpack.c.bf16 %v4754, %v4753
        %v4893 = vpack.c.bf16 %v4756, %v4755
        %v4894 = vpack.c.bf16 %v4758, %v4757
        %v4895 = vpack.c.bf16 %v4760, %v4759
        %v4896 = vpack.c.bf16 %v4762, %v4761
        %v4897 = vpack.c.bf16 %v4764, %v4763
        %v4898 = vpack.c.bf16 %v4766, %v4765
        %v4899 = vpack.c.bf16 %v4768, %v4767
        %v4900 = vpack.c.bf16 %v4770, %v4769
        %v4901 = vpack.c.bf16 %v4772, %v4771
        %v4902 = vpack.c.bf16 %v4774, %v4773
        %v4903 = vpack.c.bf16 %v4776, %v4775
        %v4904 = vpack.c.bf16 %v4778, %v4777
        %v4905 = vpack.c.bf16 %v4780, %v4779
        %v4906 = vpack.c.bf16 %v4782, %v4781
        %v4907 = vpack.c.bf16 %v4784, %v4783
        %v4908 = vpack.c.bf16 %v4786, %v4785
        %v4909 = vpack.c.bf16 %v4788, %v4787
        %v4910 = vpack.c.bf16 %v4790, %v4789
        %v4911 = vpack.c.bf16 %v4792, %v4791
        %v4912 = vpack.c.bf16 %v4794, %v4793
        %v4913 = vpack.c.bf16 %v4796, %v4795
        %v4914 = vpack.c.bf16 %v4798, %v4797
        %v4915 = vpack.c.bf16 %v4800, %v4799
        %v4916 = vpack.c.bf16 %v4802, %v4801
        %v4917 = vpack.c.bf16 %v4804, %v4803
        %v4918 = vpack.c.bf16 %v4806, %v4805
        %v4919 = vpack.c.bf16 %v4808, %v4807
        %v4920 = vpack.c.bf16 %v4810, %v4809
        %v4921 = vpack.c.bf16 %v4812, %v4811
        %v4922 = vpack.c.bf16 %v4814, %v4813
        %v4923 = vpack.c.bf16 %v4816, %v4815
        %v4924 = vpack.c.bf16 %v4818, %v4817
        %v4925 = vpack.c.bf16 %v4820, %v4819
        %v4926 = vpack.c.bf16 %v4822, %v4821
        %v4927 = vpack.c.bf16 %v4824, %v4823
        %v4928 = vpack.c.bf16 %v4826, %v4825
        %v4929 = vpack.c.bf16 %v4828, %v4827
        %v4930 = vpack.c.bf16 %v4830, %v4829
        %v4931 = vpack.c.bf16 %v4832, %v4831
        %v4932 = vpack.c.bf16 %v4834, %v4833
        %v4933 = vpack.c.bf16 %v4836, %v4835
        %v4934 = vpack.c.bf16 %v4838, %v4837
        %v4935 = vpack.c.bf16 %v4840, %v4839
        %v4936 = vpack.c.bf16 %v4842, %v4841
        %v4937 = vpack.c.bf16 %v4844, %v4843
        %v4938 = vpack.c.bf16 %v4846, %v4845
        %v4939 = vpack.c.bf16 %v4848, %v4847
        %v4940 = vpack.c.bf16 %v4850, %v4849
        %v4941 = vpack.c.bf16 %v4852, %v4851
        %v4942 = vpack.c.bf16 %v4854, %v4853
        %v4943 = vpack.c.bf16 %v4856, %v4855
        %v4944 = vpack.c.bf16 %v4858, %v4857
        %v4945 = vpack.c.bf16 %v4860, %v4859
        %v4946 = vpack.c.bf16 %v4862, %v4861
        %v4947 = vpack.c.bf16 %v4864, %v4863
        %v4948 = vpack.c.bf16 %v4866, %v4865
        %v4949 = vpack.c.bf16 %v4868, %v4867
        %v4950 = vpack.c.bf16 %v4870, %v4869
        %v4951 = vpack.c.bf16 %v4872, %v4871
        %v4952 = vpack.c.bf16 %v4874, %v4873
        %v4953 = vpack.c.bf16 %v4876, %v4875
        %v4954 = vpack.c.bf16 %v4878, %v4877
        %4955 = vmatprep.subr.bf16.mxu0 0
        %4956 = vmatpush1.bf16.xpose.msra.mxu0 %v4898
        %4957 = vmatprep.subr.bf16.mxu0 0
        %4958 = vmatpush1.bf16.xpose.msra.mxu0 %v4897
        %4959 = vmatprep.subr.bf16.mxu0 0
        %4960 = vmatpush1.bf16.xpose.msra.mxu0 %v4896
        %4961 = vmatprep.subr.bf16.mxu0 0
        %4962 = vmatpush1.bf16.xpose.msra.mxu0 %v4895
        %4963 = vmatprep.subr.bf16.mxu0 0
        %4964 = vmatpush1.bf16.xpose.msra.mxu0 %v4894
        %4965 = vmatprep.subr.bf16.mxu0 0
        %4966 = vmatpush1.bf16.xpose.msra.mxu0 %v4893
        %4967 = vmatprep.subr.bf16.mxu0 0
        %4968 = vmatpush1.bf16.xpose.msra.mxu0 %v4892
        %4969 = vmatprep.subr.bf16.mxu0 0
        %4970 = vmatpush1.bf16.xpose.msra.mxu0 %v4891
        %4971 = vmatprep.subr.bf16.mxu0 0
        %4972 = vmatpush2.bf16.xpose.msra.mxu0 %v4906
        %4973 = vmatprep.subr.bf16.mxu0 0
        %4974 = vmatpush2.bf16.xpose.msra.mxu0 %v4905
        %4975 = vmatprep.subr.bf16.mxu0 0
        %4976 = vmatpush2.bf16.xpose.msra.mxu0 %v4904
        %4977 = vmatprep.subr.bf16.mxu0 0
        %4978 = vmatpush2.bf16.xpose.msra.mxu0 %v4903
        %4979 = vmatprep.subr.bf16.mxu0 0
        %4980 = vmatpush2.bf16.xpose.msra.mxu0 %v4902
        %4981 = vmatprep.subr.bf16.mxu0 0
        %4982 = vmatpush2.bf16.xpose.msra.mxu0 %v4901
        %4983 = vmatprep.subr.bf16.mxu0 0
        %4984 = vmatpush2.bf16.xpose.msra.mxu0 %v4900
        %4985 = vmatprep.subr.bf16.mxu0 0
        %4986 = vmatpush2.bf16.xpose.msra.mxu0 %v4899
        %4987 = vmatprep.mubr.bf16.mxu0 0
        %4988 = vmatmul.mubr.bf16.gmra.mxu0 %v4890
        %v4989 = vpop.f32.mrf.mxu0
        %v4990 = vadd.f32 0.0, %v4989
        %v4991 = vpop.f32.mrf.mxu0
        %v4992 = vadd.f32 0.0, %v4991
        %v4993 = vpop.f32.mrf.mxu0
        %v4994 = vpop.f32.mrf.mxu0
        %4995 = vdwg.mxu0
        %4996 = vmatprep.subr.bf16.mxu0 0
        %4997 = vmatpush1.bf16.xpose.msra.mxu0 %v4914
        %4998 = vmatprep.subr.bf16.mxu0 0
        %4999 = vmatpush1.bf16.xpose.msra.mxu0 %v4913
        %5000 = vmatprep.subr.bf16.mxu0 0
        %5001 = vmatpush1.bf16.xpose.msra.mxu0 %v4912
        %5002 = vmatprep.subr.bf16.mxu0 0
        %5003 = vmatpush1.bf16.xpose.msra.mxu0 %v4911
        %5004 = vmatprep.subr.bf16.mxu0 0
        %5005 = vmatpush1.bf16.xpose.msra.mxu0 %v4910
        %5006 = vmatprep.subr.bf16.mxu0 0
        %5007 = vmatpush1.bf16.xpose.msra.mxu0 %v4909
        %5008 = vmatprep.subr.bf16.mxu0 0
        %5009 = vmatpush1.bf16.xpose.msra.mxu0 %v4908
        %5010 = vmatprep.subr.bf16.mxu0 0
        %5011 = vmatpush1.bf16.xpose.msra.mxu0 %v4907
        %5012 = vmatprep.subr.bf16.mxu0 0
        %5013 = vmatpush2.bf16.xpose.msra.mxu0 %v4922
        %5014 = vmatprep.subr.bf16.mxu0 0
        %5015 = vmatpush2.bf16.xpose.msra.mxu0 %v4921
        %5016 = vmatprep.subr.bf16.mxu0 0
        %5017 = vmatpush2.bf16.xpose.msra.mxu0 %v4920
        %5018 = vmatprep.subr.bf16.mxu0 0
        %5019 = vmatpush2.bf16.xpose.msra.mxu0 %v4919
        %5020 = vmatprep.subr.bf16.mxu0 0
        %5021 = vmatpush2.bf16.xpose.msra.mxu0 %v4918
        %5022 = vmatprep.subr.bf16.mxu0 0
        %5023 = vmatpush2.bf16.xpose.msra.mxu0 %v4917
        %5024 = vmatprep.subr.bf16.mxu0 0
        %5025 = vmatpush2.bf16.xpose.msra.mxu0 %v4916
        %5026 = vmatprep.subr.bf16.mxu0 0
        %5027 = vmatpush2.bf16.xpose.msra.mxu0 %v4915
        %5028 = vmatprep.mubr.bf16.mxu0 0
        %5029 = vmatmul.mubr.bf16.gmra.mxu0 %v4890
        %v5030 = vpop.f32.mrf.mxu0
        %v5031 = vadd.f32 0.0, %v5030
        %v5032 = vpop.f32.mrf.mxu0
        %v5033 = vadd.f32 0.0, %v5032
        %v5034 = vpop.f32.mrf.mxu0
        %v5035 = vpop.f32.mrf.mxu0
        %5036 = vdwg.mxu0
        %5037 = vmatprep.subr.bf16.mxu0 0
        %5038 = vmatpush1.bf16.xpose.msra.mxu0 %v4930
        %5039 = vmatprep.subr.bf16.mxu0 0
        %5040 = vmatpush1.bf16.xpose.msra.mxu0 %v4929
        %5041 = vmatprep.subr.bf16.mxu0 0
        %5042 = vmatpush1.bf16.xpose.msra.mxu0 %v4928
        %5043 = vmatprep.subr.bf16.mxu0 0
        %5044 = vmatpush1.bf16.xpose.msra.mxu0 %v4927
        %5045 = vmatprep.subr.bf16.mxu0 0
        %5046 = vmatpush1.bf16.xpose.msra.mxu0 %v4926
        %5047 = vmatprep.subr.bf16.mxu0 0
        %5048 = vmatpush1.bf16.xpose.msra.mxu0 %v4925
        %5049 = vmatprep.subr.bf16.mxu0 0
        %5050 = vmatpush1.bf16.xpose.msra.mxu0 %v4924
        %5051 = vmatprep.subr.bf16.mxu0 0
        %5052 = vmatpush1.bf16.xpose.msra.mxu0 %v4923
        %5053 = vmatprep.subr.bf16.mxu0 0
        %5054 = vmatpush2.bf16.xpose.msra.mxu0 %v4938
        %5055 = vmatprep.subr.bf16.mxu0 0
        %5056 = vmatpush2.bf16.xpose.msra.mxu0 %v4937
        %5057 = vmatprep.subr.bf16.mxu0 0
        %5058 = vmatpush2.bf16.xpose.msra.mxu0 %v4936
        %5059 = vmatprep.subr.bf16.mxu0 0
        %5060 = vmatpush2.bf16.xpose.msra.mxu0 %v4935
        %5061 = vmatprep.subr.bf16.mxu0 0
        %5062 = vmatpush2.bf16.xpose.msra.mxu0 %v4934
        %5063 = vmatprep.subr.bf16.mxu0 0
        %5064 = vmatpush2.bf16.xpose.msra.mxu0 %v4933
        %5065 = vmatprep.subr.bf16.mxu0 0
        %5066 = vmatpush2.bf16.xpose.msra.mxu0 %v4932
        %5067 = vmatprep.subr.bf16.mxu0 0
        %5068 = vmatpush2.bf16.xpose.msra.mxu0 %v4931
        %5069 = vmatprep.mubr.bf16.mxu0 0
        %5070 = vmatmul.mubr.bf16.gmra.mxu0 %v4890
        %v5071 = vpop.f32.mrf.mxu0
        %v5072 = vadd.f32 0.0, %v5071
        %v5073 = vpop.f32.mrf.mxu0
        %v5074 = vadd.f32 0.0, %v5073
        %v5075 = vpop.f32.mrf.mxu0
        %v5076 = vpop.f32.mrf.mxu0
        %5077 = vdwg.mxu0
        %5078 = vmatprep.subr.bf16.mxu0 0
        %5079 = vmatpush1.bf16.xpose.msra.mxu0 %v4946
        %5080 = vmatprep.subr.bf16.mxu0 0
        %5081 = vmatpush1.bf16.xpose.msra.mxu0 %v4945
        %5082 = vmatprep.subr.bf16.mxu0 0
        %5083 = vmatpush1.bf16.xpose.msra.mxu0 %v4944
        %5084 = vmatprep.subr.bf16.mxu0 0
        %5085 = vmatpush1.bf16.xpose.msra.mxu0 %v4943
        %5086 = vmatprep.subr.bf16.mxu0 0
        %5087 = vmatpush1.bf16.xpose.msra.mxu0 %v4942
        %5088 = vmatprep.subr.bf16.mxu0 0
        %5089 = vmatpush1.bf16.xpose.msra.mxu0 %v4941
        %5090 = vmatprep.subr.bf16.mxu0 0
        %5091 = vmatpush1.bf16.xpose.msra.mxu0 %v4940
        %5092 = vmatprep.subr.bf16.mxu0 0
        %5093 = vmatpush1.bf16.xpose.msra.mxu0 %v4939
        %5094 = vmatprep.subr.bf16.mxu0 0
        %5095 = vmatpush2.bf16.xpose.msra.mxu0 %v4954
        %5096 = vmatprep.subr.bf16.mxu0 0
        %5097 = vmatpush2.bf16.xpose.msra.mxu0 %v4953
        %5098 = vmatprep.subr.bf16.mxu0 0
        %5099 = vmatpush2.bf16.xpose.msra.mxu0 %v4952
        %5100 = vmatprep.subr.bf16.mxu0 0
        %5101 = vmatpush2.bf16.xpose.msra.mxu0 %v4951
        %5102 = vmatprep.subr.bf16.mxu0 0
        %5103 = vmatpush2.bf16.xpose.msra.mxu0 %v4950
        %5104 = vmatprep.subr.bf16.mxu0 0
        %5105 = vmatpush2.bf16.xpose.msra.mxu0 %v4949
        %5106 = vmatprep.subr.bf16.mxu0 0
        %5107 = vmatpush2.bf16.xpose.msra.mxu0 %v4948
        %5108 = vmatprep.subr.bf16.mxu0 0
        %5109 = vmatpush2.bf16.xpose.msra.mxu0 %v4947
        %5110 = vmatprep.mubr.bf16.mxu0 0
        %5111 = vmatmul.mubr.bf16.gmra.mxu0 %v4890
        %v5112 = vpop.f32.mrf.mxu0
        %v5113 = vadd.f32 0.0, %v5112
        %v5114 = vpop.f32.mrf.mxu0
        %v5115 = vadd.f32 0.0, %v5114
        %v5116 = vpop.f32.mrf.mxu0
        %v5117 = vpop.f32.mrf.mxu0
        %5118 = vdwg.mxu0
        %v5119 = vxor.u32 %v4990, 2147483648
        %v5120 = vxor.u32 %v4992, 2147483648
        %v5121 = vxor.u32 %v5031, 2147483648
        %v5122 = vxor.u32 %v5033, 2147483648
        %v5123 = vxor.u32 %v5072, 2147483648
        %v5124 = vxor.u32 %v5074, 2147483648
        %v5125 = vxor.u32 %v5113, 2147483648
        %v5126 = vxor.u32 %v5115, 2147483648
        %v5127 = vmul.f32 %v5119, 1.442695
        %v5128 = vpow.pop %v5127
        %v5129 = vmul.f32 %v5120, 1.442695
        %v5130 = vpow.pop %v5129
        %v5131 = vmul.f32 %v5121, 1.442695
        %v5132 = vpow.pop %v5131
        %v5133 = vmul.f32 %v5122, 1.442695
        %v5134 = vpow.pop %v5133
        %v5135 = vmul.f32 %v5123, 1.442695
        %v5136 = vpow.pop %v5135
        %v5137 = vmul.f32 %v5124, 1.442695
        %v5138 = vpow.pop %v5137
        %v5139 = vmul.f32 %v5125, 1.442695
        %v5140 = vpow.pop %v5139
        %v5141 = vmul.f32 %v5126, 1.442695
        %v5142 = vpow.pop %v5141
        %v5143 = vadd.f32 %v5128, 1.0
        %v5144 = vadd.f32 %v5130, 1.0
        %v5145 = vadd.f32 %v5132, 1.0
        %v5146 = vadd.f32 %v5134, 1.0
        %v5147 = vadd.f32 %v5136, 1.0
        %v5148 = vadd.f32 %v5138, 1.0
        %v5149 = vadd.f32 %v5140, 1.0
        %v5150 = vadd.f32 %v5142, 1.0
        %v5151 = vrcp.pop %v5143
        %v5152 = vmul.f32 1.0, %v5151
        %v5153 = vrcp.pop %v5144
        %v5154 = vmul.f32 1.0, %v5153
        %v5155 = vrcp.pop %v5145
        %v5156 = vmul.f32 1.0, %v5155
        %v5157 = vrcp.pop %v5146
        %v5158 = vmul.f32 1.0, %v5157
        %v5159 = vrcp.pop %v5147
        %v5160 = vmul.f32 1.0, %v5159
        %v5161 = vrcp.pop %v5148
        %v5162 = vmul.f32 1.0, %v5161
        %v5163 = vrcp.pop %v5149
        %v5164 = vmul.f32 1.0, %v5163
        %v5165 = vrcp.pop %v5150
        %v5166 = vmul.f32 1.0, %v5165
        %v5175 = vcombine.low %v5152, %v5154
        %v5176 = vcombine.low %v5156, %v5158
        %v5177 = vcombine.low %v5160, %v5162
        %v5178 = vcombine.low %v5164, %v5166
        %5183 = vst [vmem:[%s315] sm:$0x77] %v5175
        %5184 = vst [vmem:[%s315 + $0x8] sm:$0x77] %v5176
        %5185 = vst [vmem:[%s315 + $0x10] sm:$0x77] %v5177
        %5186 = vst [vmem:[%s315 + $0x18] sm:$0x77] %v5178
        %s5187 = sand.u32 %s208, 1
        %s5188 = scalar_lea.sflag [#allocation3], %s5187
        %s5189 = sand.u32 %s208, 1
        %s5190 = smul.addr %s5189, 32
        %s5191 = scalar_lea.vmem [#allocation2], %s5190
        // Predicated region
        $region53: #{tpu_custom_call.1} parent=51 // pred_check
          %p5192 = pneg %p218
        $region54: #{tpu_custom_call.1} parent=51 // pred_check_branch
          %5194 = sbr.rel (%p5192) target = $region56
        $region55: #{tpu_custom_call.1} parent=51 // pred_region
          %s5195 = smul.u32 8, %s22
          %s5197 = ssub.s32 512, 512
          %5198 = vsyncadd %s5188, %s5197
          %s5199 = smul.addr %s5195, 64
          %s5200 = scalar_lea.hbm %s8, %s5199
          %s5202 = sshll.u32 %s5191, 4
          %s5203 = int_to_ptr.vmem [resolvable:$true] %s5202
          %5205 = dma.vmem_to_hbm [thread:$0]  %s5203, 512, %s5200, %s5188
        $region56: #{tpu_custom_call.1} parent=51 // pred_fallthru
          _
      $region52: #{tpu_custom_call.1} parent=5 // pred_fallthru
        _
      %p5206 = scmp.le.s32.totalorder 2, %s17
      // Predicated region
      $region57: #{tpu_custom_call.1} parent=5 // pred_check
        %p5207 = pneg %p5206
      $region58: #{tpu_custom_call.1} parent=5 // pred_check_branch
        %5209 = sbr.rel (%p5207) target = $region60
      $region59: #{tpu_custom_call.1} parent=5 // pred_region
        %s5210 = ssub.s32 %s17, 2
        // Predicated region
        $region61: #{tpu_custom_call.1} parent=59 // pred_check
          %p5211 = pneg %p224
        $region62: #{tpu_custom_call.1} parent=59 // pred_check_branch
          %5213 = sbr.rel (%p5211) target = $region64
        $region63: #{tpu_custom_call.1} parent=59 // pred_region
          %s5214 = sand.u32 %s209, 1
          %s5215 = scalar_lea.sflag [#allocation3], %s5214
          %s5216 = sand.u32 %s209, 1
          %s5217 = smul.addr %s5216, 32
          %s5218 = scalar_lea.vmem [#allocation2], %s5217
          %5219 = dma.done %s5215, 512
        $region64: #{tpu_custom_call.1} parent=59 // pred_fallthru
          _
      $region60: #{tpu_custom_call.1} parent=5 // pred_fallthru
        _
    $region6: #{tpu_custom_call.1} parent=1 // loop_footer
      %s21 = sadd.s32 1, %s17
    $region7: #{tpu_custom_call.1} parent=1 // loop_footer_branch
      %16 = sbr.rel target = $region3
    $region8: #{tpu_custom_call.1} parent=1 // loop_exit
      _
    %5220 = vsyncpa [#allocation3], 1
    %s5221 = scalar_lea.sflag [#allocation3], 1
    %5222 = vsyncpa %s5221, 1

</llo_original>
